<compile_context>
chip_gen: v7x
topology: tpu7x:2x2x1
jax: 0.10.0
libtpu: 0.0.40
codegen_flags: <defaults>
</compile_context>

<pallas_src>
import math
import functools

import jax
import jax.numpy as jnp
from jax import lax
from jax.experimental import pallas as pl
from jax.experimental.pallas import tpu as pltpu

BN_EPS = 1e-5


def _round_up(x, m):
    return ((x + m - 1) // m) * m


# ----------------------------------------------------------------------------
# Pallas kernels
# ----------------------------------------------------------------------------
def _conv9_kernel(*refs, Ho, Wo, Cin, stride, has_aff1, has_aff2,
                  has_sc, has_res, write_y1):
    """3x3 conv as 9 shifted MXU dots + fused epilogue.

    epilogue:  acc [+ residual] -> [relu(.*s1+t1)] -> (write y1) -> [relu(.*s2+t2)] -> out
    optionally also emits the 1x1 (stride-matched) shortcut conv from the center tap.
    """
    it = iter(refs)
    x_ref = next(it)
    w_ref = next(it)
    s1 = t1 = s2 = t2 = scw = res = None
    if has_aff1:
        s1 = next(it); t1 = next(it)
    if has_aff2:
        s2 = next(it); t2 = next(it)
    if has_sc:
        scw = next(it)
    if has_res:
        res = next(it)
    o_ref = next(it)
    osc = next(it) if has_sc else None
    oy1 = next(it) if write_y1 else None

    M = Ho * Wo
    acc = None
    for kh in range(3):
        for kw in range(3):
            tap = kh * 3 + kw
            if stride == 1:
                # x_ref: (Hp, Wp, Cin) zero-padded slab
                xt = x_ref[kh:kh + Ho, kw:kw + Wo, :]
            else:
                # x_ref: (4, Hp2, Wp2, Cin) phase-split padded slab
                p = 2 * (kh % 2) + (kw % 2)
                xt = x_ref[p, (kh // 2):(kh // 2) + Ho,
                           (kw // 2):(kw // 2) + Wo, :]
            a = xt.reshape(M, Cin)
            d = jnp.dot(a, w_ref[tap * Cin:(tap + 1) * Cin, :],
                        preferred_element_type=jnp.float32)
            acc = d if acc is None else acc + d
            if has_sc and kh == 1 and kw == 1:
                sc = jnp.dot(a, scw[...], preferred_element_type=jnp.float32)
                osc[...] = sc.astype(osc.dtype)

    if has_res:
        acc = acc + res[...].astype(jnp.float32)
    if has_aff1:
        acc = jnp.maximum(acc * s1[...] + t1[...], 0.0)
    if write_y1:
        oy1[...] = acc.astype(oy1.dtype)
    if has_aff2:
        acc = jnp.maximum(acc * s2[...] + t2[...], 0.0)
    o_ref[...] = acc.astype(o_ref.dtype)


def _stem_kernel(a_ref, b_ref, s1_ref, t1_ref, s2_ref, t2_ref, *out_refs, write_y1):
    """Stem: (im2col cols) @ W -> relu(bn_stem) [-> write] -> relu(bn1_block0)."""
    acc = jnp.dot(a_ref[...], b_ref[...], preferred_element_type=jnp.float32)
    y1 = jnp.maximum(acc * s1_ref[...] + t1_ref[...], 0.0)
    if write_y1:
        o_ref, y1_ref = out_refs
        y1_ref[...] = y1.astype(y1_ref.dtype)
    else:
        (o_ref,) = out_refs
    y2 = jnp.maximum(y1 * s2_ref[...] + t2_ref[...], 0.0)
    o_ref[...] = y2.astype(o_ref.dtype)


def _tail_kernel(x_ref, w_ref, b_ref, o_ref):
    # x: (tb, HW, C) already BN+ReLU'd (bf16); mean over HW, then linear (+bias).
    feat = jnp.mean(x_ref[...].astype(jnp.float32), axis=1)       # (tb, C)
    acc = jnp.dot(feat, w_ref[...], preferred_element_type=jnp.float32)
    o_ref[...] = acc + b_ref[...]


# ----------------------------------------------------------------------------
# Pallas wrappers
# ----------------------------------------------------------------------------
def conv3x3_fused(x_nhwc, w2, *, stride, aff1=None, aff2=None,
                  sc_w=None, residual=None, write_y1=False):
    """3x3 conv (pad=1, no bias) with fused epilogue.

    Returns a tuple: (main activated output as NHWC bf16, [shortcut (N*M,Cout) bf16]
    if sc_w, [raw pre-activation (N*M,Cout) bf16] if write_y1)."""
    N, H, W, Cin = x_nhwc.shape
    Cout = w2.shape[1]
    xb = x_nhwc.astype(jnp.bfloat16)
    xp = jnp.pad(xb, ((0, 0), (1, 1), (1, 1), (0, 0)))

    if stride == 1:
        Ho, Wo = H, W
        slab = xp                                           # (N, H+2, W+2, Cin)
        slab_spec = pl.BlockSpec((None, H + 2, W + 2, Cin),
                                 lambda j, n: (n, 0, 0, 0))
    else:
        assert stride == 2 and H % 2 == 0 and W % 2 == 0
        Ho, Wo = H // 2, W // 2
        # phase split so every in-kernel tap becomes a stride-1 window
        slab = jnp.stack([xp[:, 0::2, 0::2, :], xp[:, 0::2, 1::2, :],
                          xp[:, 1::2, 0::2, :], xp[:, 1::2, 1::2, :]], axis=1)
        slab_spec = pl.BlockSpec((None, 4, Ho + 1, Wo + 1, Cin),
                                 lambda j, n: (n, 0, 0, 0, 0))

    M = Ho * Wo
    tn = Cout if Cout <= 256 else 256
    assert Cout % tn == 0
    grid = (Cout // tn, N)          # weight block stays resident across inner batch axis

    vec_spec = pl.BlockSpec((1, tn), lambda j, n: (0, j))
    mat_spec = pl.BlockSpec((M, tn), lambda j, n: (n, j))

    inputs = [slab, w2]
    in_specs = [slab_spec, pl.BlockSpec((9 * Cin, tn), lambda j, n: (0, j))]
    if aff1 is not None:
        inputs += [aff1[0], aff1[1]]
        in_specs += [vec_spec, vec_spec]
    if aff2 is not None:
        inputs += [aff2[0], aff2[1]]
        in_specs += [vec_spec, vec_spec]
    if sc_w is not None:
        inputs.append(sc_w)
        in_specs.append(pl.BlockSpec((Cin, tn), lambda j, n: (0, j)))
    if residual is not None:
        inputs.append(residual)
        in_specs.append(mat_spec)

    out_shapes = [jax.ShapeDtypeStruct((N * M, Cout), jnp.bfloat16)]
    out_specs = [mat_spec]
    if sc_w is not None:
        out_shapes.append(jax.ShapeDtypeStruct((N * M, Cout), jnp.bfloat16))
        out_specs.append(mat_spec)
    if write_y1:
        out_shapes.append(jax.ShapeDtypeStruct((N * M, Cout), jnp.bfloat16))
        out_specs.append(mat_spec)

    kernel = functools.partial(
        _conv9_kernel, Ho=Ho, Wo=Wo, Cin=Cin, stride=stride,
        has_aff1=aff1 is not None, has_aff2=aff2 is not None,
        has_sc=sc_w is not None, has_res=residual is not None,
        write_y1=write_y1)

    res = pl.pallas_call(
        kernel,
        out_shape=tuple(out_shapes),
        grid_spec=pltpu.PrefetchScalarGridSpec(
            num_scalar_prefetch=0,
            grid=grid,
            in_specs=in_specs,
            out_specs=out_specs),
        compiler_params=pltpu.CompilerParams(
            dimension_semantics=("parallel", "parallel")),
    )(*inputs)
    if not isinstance(res, (tuple, list)):
        res = (res,)
    main = res[0].reshape(N, Ho, Wo, Cout)
    return (main,) + tuple(res[1:])


def stem_conv(x_nhwc, w_cols, stride, *, aff1, aff2, write_y1):
    """Stem 3x3 conv (Cin=3) via tiny bf16 im2col + fused dual BN/ReLU epilogue."""
    N, H, W, Cin = x_nhwc.shape
    Cout = w_cols.shape[1]
    Ho = (H + 2 - 3) // stride + 1
    Wo = (W + 2 - 3) // stride + 1
    xp = jnp.pad(x_nhwc.astype(jnp.bfloat16), ((0, 0), (1, 1), (1, 1), (0, 0)))
    cols = []
    for kh in range(3):
        for kw in range(3):
            cols.append(xp[:, kh:kh + stride * (Ho - 1) + 1:stride,
                           kw:kw + stride * (Wo - 1) + 1:stride, :])
    cols = jnp.concatenate(cols, axis=-1).reshape(N * Ho * Wo, 9 * Cin)
    M = Ho * Wo

    inputs = [cols, w_cols, aff1[0], aff1[1], aff2[0], aff2[1]]
    vec = pl.BlockSpec((1, Cout), lambda n: (0, 0))
    in_specs = [pl.BlockSpec((M, 9 * Cin), lambda n: (n, 0)),
                pl.BlockSpec((9 * Cin, Cout), lambda n: (0, 0)),
                vec, vec, vec, vec]
    out_shapes = [jax.ShapeDtypeStruct((N * M, Cout), jnp.bfloat16)]
    out_specs = [pl.BlockSpec((M, Cout), lambda n: (n, 0))]
    if write_y1:
        out_shapes.append(jax.ShapeDtypeStruct((N * M, Cout), jnp.bfloat16))
        out_specs.append(pl.BlockSpec((M, Cout), lambda n: (n, 0)))

    res = pl.pallas_call(
        functools.partial(_stem_kernel, write_y1=write_y1),
        out_shape=tuple(out_shapes),
        grid_spec=pltpu.PrefetchScalarGridSpec(
            num_scalar_prefetch=0,
            grid=(N,),
            in_specs=in_specs,
            out_specs=out_specs),
        compiler_params=pltpu.CompilerParams(
            dimension_semantics=("parallel",)),
    )(*inputs)
    if not isinstance(res, (tuple, list)):
        res = (res,)
    main = res[0].reshape(N, Ho, Wo, Cout)
    return (main,) + tuple(res[1:])


def tail_pool_linear(x3d, w, b2d):
    """Fused tail: x3d:(N,HW,C) bf16 (already BN+ReLU'd) -> mean over HW -> Linear."""
    N, HW, C = x3d.shape
    tb = 8
    Np = _round_up(max(N, tb), tb)
    if Np != N:
        x3d = jnp.pad(x3d, ((0, Np - N), (0, 0), (0, 0)))
    nc = w.shape[1]
    out = pl.pallas_call(
        _tail_kernel,
        out_shape=jax.ShapeDtypeStruct((Np, nc), jnp.float32),
        grid_spec=pltpu.PrefetchScalarGridSpec(
            num_scalar_prefetch=0,
            grid=(Np // tb,),
            in_specs=[pl.BlockSpec((tb, HW, C), lambda i: (i, 0, 0)),
                      pl.BlockSpec((C, nc), lambda i: (0, 0)),
                      pl.BlockSpec((1, nc), lambda i: (0, 0))],
            out_specs=pl.BlockSpec((tb, nc), lambda i: (i, 0)),
        ),
        compiler_params=pltpu.CompilerParams(
            dimension_semantics=("parallel",)),
    )(x3d, w, b2d)
    return out[:N]


# ----------------------------------------------------------------------------
# One-time parameter preparation (hoists BN folding / weight reshapes / casts)
# ----------------------------------------------------------------------------
def prepare_params(params):
    def fold(bn):
        s = bn['gamma'] / jnp.sqrt(bn['var'] + BN_EPS)
        t = bn['beta'] - bn['mean'] * s
        c = s.shape[0]
        return (s.reshape(1, c).astype(jnp.float32),
                t.reshape(1, c).astype(jnp.float32))

    def w3x3(w):  # (Cout,Cin,3,3) -> (9*Cin, Cout) bf16, tap-major rows
        cout, cin = w.shape[0], w.shape[1]
        return jnp.transpose(w, (2, 3, 1, 0)).reshape(9 * cin, cout).astype(jnp.bfloat16)

    nc = params['linear']['b'].shape[0]
    prep = {
        'stem_stride': params['stem_stride'],
        'stem_w': w3x3(params['stem']['w']),          # (27, 64)
        'stem_aff': fold(params['stem']['bn']),
        'final_aff': fold(params['bn']),
        'lin_w': params['linear']['w'].T.astype(jnp.float32),      # (512, nc)
        'lin_b': params['linear']['b'].reshape(1, nc).astype(jnp.float32),
        'blocks': [],
    }
    for layer in params['layers']:
        for blk in layer:
            b = {'stride': blk['stride'],
                 'has_sc': 'sc_w' in blk,
                 'bn1': fold(blk['bn1']),
                 'bn2': fold(blk['bn2']),
                 'w1': w3x3(blk['conv1_w']),
                 'w2': w3x3(blk['conv2_w'])}
            if b['has_sc']:
                cout, cin = blk['sc_w'].shape[0], blk['sc_w'].shape[1]
                b['sc_w'] = blk['sc_w'].reshape(cout, cin).T.astype(jnp.bfloat16)
            prep['blocks'].append(b)
    return prep


# ----------------------------------------------------------------------------
# PreActResNet forward (Pallas)
# ----------------------------------------------------------------------------
def pallas_forward(x_nchw, prep):
    x = jnp.transpose(x_nchw, (0, 2, 3, 1))               # NCHW -> NHWC
    blocks = prep['blocks']
    n_blk = len(blocks)

    # stem: Conv3x3 -> BN -> ReLU, with block0's bn1+ReLU fused in; also emits the
    # raw (post stem BN/ReLU) tensor when block0 has no shortcut (residual source).
    need_raw0 = not blocks[0]['has_sc']
    outs = stem_conv(x, prep['stem_w'], prep['stem_stride'],
                     aff1=prep['stem_aff'], aff2=blocks[0]['bn1'],
                     write_y1=need_raw0)
    act = outs[0]
    raw = outs[1] if need_raw0 else None

    for i, blk in enumerate(blocks):
        # conv1 with bn2+ReLU fused; shortcut 1x1 fused as a second output
        if blk['has_sc']:
            o1, resid = conv3x3_fused(act, blk['w1'], stride=blk['stride'],
                                      aff1=blk['bn2'], sc_w=blk['sc_w'])
        else:
            (o1,) = conv3x3_fused(act, blk['w1'], stride=blk['stride'],
                                  aff1=blk['bn2'])
            resid = raw

        # conv2: residual add + next bn1 (or final bn) + ReLU fused; when the next
        # block has no shortcut, also emit the raw pre-activation for its residual.
        if i + 1 < n_blk:
            aff2 = blocks[i + 1]['bn1']
            write_raw = not blocks[i + 1]['has_sc']
        else:
            aff2 = prep['final_aff']
            write_raw = False
        outs = conv3x3_fused(o1, blk['w2'], stride=1, aff2=aff2,
                             residual=resid, write_y1=write_raw)
        act = outs[0]
        raw = outs[1] if write_raw else None

    # final BN+ReLU fused into the last conv2; AvgPool2d(4) + Linear fused tail.
    N, Hf, Wf, Cf = act.shape
    logits = tail_pool_linear(act.reshape(N, Hf * Wf, Cf),
                              prep['lin_w'], prep['lin_b'])
    return logits


# ----------------------------------------------------------------------------
# Pure-JAX reference (for correctness check)
# ----------------------------------------------------------------------------
def ref_forward(x_nchw, params):
    x = jnp.transpose(x_nchw, (0, 2, 3, 1)).astype(jnp.float32)

    def conv(x, w, stride, pad):
        return lax.conv_general_dilated(
            x, w, (stride, stride), [(pad, pad), (pad, pad)],
            dimension_numbers=('NHWC', 'OIHW', 'NHWC'))

    def bn_fold(p):
        s = p['gamma'] / jnp.sqrt(p['var'] + BN_EPS)
        t = p['beta'] - p['mean'] * s
        return s, t

    def bn_relu(x, p):
        s, t = bn_fold(p)
        return jnp.maximum(x * s + t, 0.0)

    out = conv(x, params['stem']['w'], params['stem_stride'], 1)
    out = bn_relu(out, params['stem']['bn'])
    for layer in params['layers']:
        for blk in layer:
            act = bn_relu(out, blk['bn1'])
            sc = conv(act, blk['sc_w'], blk['stride'], 0) if 'sc_w' in blk else out
            o = conv(act, blk['conv1_w'], blk['stride'], 1)
            o = bn_relu(o, blk['bn2'])
            o = conv(o, blk['conv2_w'], 1, 1)
            out = o + sc
    out = bn_relu(out, params['bn'])
    feat = jnp.mean(out.reshape(out.shape[0], -1, out.shape[-1]), axis=1)
    return feat @ params['linear']['w'].T + params['linear']['b']


# ----------------------------------------------------------------------------
# Deterministic parameter construction (PreActBlock, expansion = 1)
# ----------------------------------------------------------------------------
def init_params(key, num_blocks=(2, 1, 1, 1), num_classes=10, stride=1):
    keys = iter(jax.random.split(key, 256))

    def nk():
        return next(keys)

    def conv_w(cout, cin, k):
        fan_in = cin * k * k
        return jax.random.normal(nk(), (cout, cin, k, k), jnp.float32) / math.sqrt(fan_in)

    def bn_p(c):
        return {'gamma': 1.0 + 0.1 * jax.random.normal(nk(), (c,), jnp.float32),
                'beta': 0.1 * jax.random.normal(nk(), (c,), jnp.float32),
                'mean': 0.1 * jax.random.normal(nk(), (c,), jnp.float32),
                'var': jax.random.uniform(nk(), (c,), jnp.float32, 0.5, 1.5)}

    params = {'stem_stride': stride,
              'stem': {'w': conv_w(64, 3, 3), 'bn': bn_p(64)}}
    in_planes = 64
    layers = []
    plan = [(64, num_blocks[0], 1), (128, num_blocks[1], 2),
            (256, num_blocks[2], 2), (512, num_blocks[3], 2)]
    for planes, nb, first_stride in plan:
        strides = [first_stride] + [1] * (nb - 1)
        layer = []
        for st in strides:
            blk = {'stride': st,
                   'bn1': bn_p(in_planes),
                   'conv1_w': conv_w(planes, in_planes, 3),
                   'bn2': bn_p(planes),
                   'conv2_w': conv_w(planes, planes, 3)}
            if st != 1 or in_planes != planes:
                blk['sc_w'] = conv_w(planes, in_planes, 1)
            layer.append(blk)
            in_planes = planes
        layers.append(layer)
    params['layers'] = layers
    params['bn'] = bn_p(512)
    params['linear'] = {
        'w': jax.random.normal(nk(), (num_classes, 512), jnp.float32) / math.sqrt(512.0),
        'b': 0.1 * jax.random.normal(nk(), (num_classes,), jnp.float32)}
    return params


if __name__ == "__main__":
    key = jax.random.PRNGKey(0)
    pkey, xkey = jax.random.split(key)
    # (2,1,1,1) exercises both the shortcut-fused path and the dual-output
    # (raw + activated) conv2 path used by consecutive same-width blocks.
    params = init_params(pkey, num_blocks=(2, 1, 1, 1), num_classes=10, stride=1)
    # NCHW input like PyTorch; 32x32 so the 4x4 AvgPool at the end is valid.
    x = jax.random.normal(xkey, (2, 3, 32, 32), jnp.float32)

    prep = prepare_params(params)
    out = jax.block_until_ready(pallas_forward(x, prep))
    assert out.shape == (2, 10), out.shape

    ref = jax.block_until_ready(ref_forward(x, params))
    rel_err = float(jnp.max(jnp.abs(out - ref)) / (jnp.max(jnp.abs(ref)) + 1e-6))
    assert rel_err < 5e-2, f"mismatch vs pure-JAX reference: rel_err={rel_err}"

    print("KERNEL_OK")
</pallas_src>

<mosaic_0001>
module attributes {stable_mosaic.version = 11 : i64} {
  func.func @_stem_kernel(%arg0: i32, %arg1: memref<1024x27xbf16, #tpu.memory_space<vmem>>, %arg2: memref<27x64xbf16, #tpu.memory_space<vmem>>, %arg3: memref<1x64xf32, #tpu.memory_space<vmem>>, %arg4: memref<1x64xf32, #tpu.memory_space<vmem>>, %arg5: memref<1x64xf32, #tpu.memory_space<vmem>>, %arg6: memref<1x64xf32, #tpu.memory_space<vmem>>, %arg7: memref<1024x64xbf16, #tpu.memory_space<vmem>>, %arg8: memref<1024x64xbf16, #tpu.memory_space<vmem>>) attributes {dimension_semantics = [#tpu.dimension_semantics<parallel>], iteration_bounds = array<i64: 2>, scalar_prefetch = 0 : i64, scratch_operands = 0 : i64, tpu.core_type = #tpu.core_type<tc>, window_params = [{transform_indices = @transform_0, window_bounds = array<i64: 1024, 27>}, {pipeline_mode = #tpu.pipeline_mode<synchronous>, transform_indices = @transform_1, window_bounds = array<i64: 27, 64>}, {pipeline_mode = #tpu.pipeline_mode<synchronous>, transform_indices = @transform_2, window_bounds = array<i64: 1, 64>}, {pipeline_mode = #tpu.pipeline_mode<synchronous>, transform_indices = @transform_3, window_bounds = array<i64: 1, 64>}, {pipeline_mode = #tpu.pipeline_mode<synchronous>, transform_indices = @transform_4, window_bounds = array<i64: 1, 64>}, {pipeline_mode = #tpu.pipeline_mode<synchronous>, transform_indices = @transform_5, window_bounds = array<i64: 1, 64>}, {transform_indices = @transform_6, window_bounds = array<i64: 1024, 64>}, {transform_indices = @transform_7, window_bounds = array<i64: 1024, 64>}]} {
    %c0 = arith.constant 0 : index
    %c0_0 = arith.constant 0 : index
    %0 = vector.load %arg1[%c0, %c0_0] : memref<1024x27xbf16, #tpu.memory_space<vmem>>, vector<1024x27xbf16>
    %c0_1 = arith.constant 0 : index
    %c0_2 = arith.constant 0 : index
    %1 = vector.load %arg2[%c0_1, %c0_2] : memref<27x64xbf16, #tpu.memory_space<vmem>>, vector<27x64xbf16>
    %cst = arith.constant dense<0.000000e+00> : vector<1024x64xf32>
    %2 = tpu.matmul %0, %1, %cst {dimension_numbers = #tpu.dot_dimension_numbers<[1], [0], [0], [1], [0, 0, 1, 1], [], []>} : vector<1024x27xbf16>, vector<27x64xbf16>, vector<1024x64xf32> -> vector<1024x64xf32>
    %c0_3 = arith.constant 0 : index
    %c0_4 = arith.constant 0 : index
    %3 = vector.load %arg3[%c0_3, %c0_4] : memref<1x64xf32, #tpu.memory_space<vmem>>, vector<1x64xf32>
    %4 = vector.broadcast %3 : vector<1x64xf32> to vector<1024x64xf32>
    %5 = arith.mulf %2, %4 : vector<1024x64xf32>
    %c0_5 = arith.constant 0 : index
    %c0_6 = arith.constant 0 : index
    %6 = vector.load %arg4[%c0_5, %c0_6] : memref<1x64xf32, #tpu.memory_space<vmem>>, vector<1x64xf32>
    %7 = vector.broadcast %6 : vector<1x64xf32> to vector<1024x64xf32>
    %8 = arith.addf %5, %7 : vector<1024x64xf32>
    %cst_7 = arith.constant 0.000000e+00 : f32
    %9 = vector.broadcast %cst_7 : f32 to vector<1024x64xf32>
    %10 = arith.maximumf %8, %9 : vector<1024x64xf32>
    %11 = arith.truncf %10 : vector<1024x64xf32> to vector<1024x64xbf16>
    %c0_8 = arith.constant 0 : index
    %c0_9 = arith.constant 0 : index
    %12 = vector.load %arg8[%c0_8, %c0_9] : memref<1024x64xbf16, #tpu.memory_space<vmem>>, vector<1024x64xbf16>
    tpu.vector_store %arg8[%c0_8, %c0_9], %11 {strides = array<i32>} : memref<1024x64xbf16, #tpu.memory_space<vmem>>, vector<1024x64xbf16>,
    %c0_10 = arith.constant 0 : index
    %c0_11 = arith.constant 0 : index
    %13 = vector.load %arg5[%c0_10, %c0_11] : memref<1x64xf32, #tpu.memory_space<vmem>>, vector<1x64xf32>
    %14 = vector.broadcast %13 : vector<1x64xf32> to vector<1024x64xf32>
    %15 = arith.mulf %10, %14 : vector<1024x64xf32>
    %c0_12 = arith.constant 0 : index
    %c0_13 = arith.constant 0 : index
    %16 = vector.load %arg6[%c0_12, %c0_13] : memref<1x64xf32, #tpu.memory_space<vmem>>, vector<1x64xf32>
    %17 = vector.broadcast %16 : vector<1x64xf32> to vector<1024x64xf32>
    %18 = arith.addf %15, %17 : vector<1024x64xf32>
    %cst_14 = arith.constant 0.000000e+00 : f32
    %19 = vector.broadcast %cst_14 : f32 to vector<1024x64xf32>
    %20 = arith.maximumf %18, %19 : vector<1024x64xf32>
    %21 = arith.truncf %20 : vector<1024x64xf32> to vector<1024x64xbf16>
    %c0_15 = arith.constant 0 : index
    %c0_16 = arith.constant 0 : index
    %22 = vector.load %arg7[%c0_15, %c0_16] : memref<1024x64xbf16, #tpu.memory_space<vmem>>, vector<1024x64xbf16>
    tpu.vector_store %arg7[%c0_15, %c0_16], %21 {strides = array<i32>} : memref<1024x64xbf16, #tpu.memory_space<vmem>>, vector<1024x64xbf16>,
    return
  }
  func.func @transform_0(%arg0: i32) -> (i32, i32) {
    %c0_i32 = arith.constant 0 : i32
    %c0_i32_0 = arith.constant 0 : i32
    return %arg0, %c0_i32 : i32, i32
  }
  func.func @transform_1(%arg0: i32) -> (i32, i32) {
    %c0_i32 = arith.constant 0 : i32
    %c0_i32_0 = arith.constant 0 : i32
    %c0_i32_1 = arith.constant 0 : i32
    return %c0_i32, %c0_i32_0 : i32, i32
  }
  func.func @transform_2(%arg0: i32) -> (i32, i32) {
    %c0_i32 = arith.constant 0 : i32
    %c0_i32_0 = arith.constant 0 : i32
    %c0_i32_1 = arith.constant 0 : i32
    return %c0_i32, %c0_i32_0 : i32, i32
  }
  func.func @transform_3(%arg0: i32) -> (i32, i32) {
    %c0_i32 = arith.constant 0 : i32
    %c0_i32_0 = arith.constant 0 : i32
    %c0_i32_1 = arith.constant 0 : i32
    return %c0_i32, %c0_i32_0 : i32, i32
  }
  func.func @transform_4(%arg0: i32) -> (i32, i32) {
    %c0_i32 = arith.constant 0 : i32
    %c0_i32_0 = arith.constant 0 : i32
    %c0_i32_1 = arith.constant 0 : i32
    return %c0_i32, %c0_i32_0 : i32, i32
  }
  func.func @transform_5(%arg0: i32) -> (i32, i32) {
    %c0_i32 = arith.constant 0 : i32
    %c0_i32_0 = arith.constant 0 : i32
    %c0_i32_1 = arith.constant 0 : i32
    return %c0_i32, %c0_i32_0 : i32, i32
  }
  func.func @transform_6(%arg0: i32) -> (i32, i32) {
    %c0_i32 = arith.constant 0 : i32
    %c0_i32_0 = arith.constant 0 : i32
    return %arg0, %c0_i32 : i32, i32
  }
  func.func @transform_7(%arg0: i32) -> (i32, i32) {
    %c0_i32 = arith.constant 0 : i32
    %c0_i32_0 = arith.constant 0 : i32
    return %arg0, %c0_i32 : i32, i32
  }
}

</mosaic_0001>

<llo_original>
// kernel: tpu_custom_call.1
$region0: #{tpu_custom_call.1}
  #allocation0 [shape = 'u32[]', space=smem, size = 0x4, offset = 0x4, fixed_abs, tag = 'smem constant byte address 0x4 - core index']
  #allocation1 [shape = 'u32[144,128]{1,0:T(1,128)}', space=vmem, size = 0x12000, scoped, tag = 'internal scratch']
  %s0 = inlined_call_operand.vmem [shape: bf16[2048,27], index: 0, kind: input, shape index: {}]
  %s1 = inlined_call_operand.vmem [shape: bf16[27,64], index: 1, kind: input, shape index: {}]
  %s2 = inlined_call_operand.vmem [shape: f32[1,64], index: 2, kind: input, shape index: {}]
  %s3 = inlined_call_operand.vmem [shape: f32[1,64], index: 3, kind: input, shape index: {}]
  %s4 = inlined_call_operand.vmem [shape: f32[1,64], index: 4, kind: input, shape index: {}]
  %s5 = inlined_call_operand.vmem [shape: f32[1,64], index: 5, kind: input, shape index: {}]
  %s6 = inlined_call_operand.vmem [shape: bf16[2048,64], index: 6, kind: output, shape index: {0}]
  %s7 = inlined_call_operand.vmem [shape: bf16[2048,64], index: 7, kind: output, shape index: {1}]
  %8 = xla_tuple %s6, %s7
  %s9 = sld [smem:[#allocation0]]
  $region65: #{tpu_custom_call.1} parent=0
    _
  %s11 = ssub.s32 1, %s9
  %s12 = scalar_select 0, %s11, %s9
  loop: start=0, step=1, limit=4
  $region2: #{tpu_custom_call.1} parent=0 // loop_pre_header
    _
  $region3: #{tpu_custom_call.1} parent=0 // loop_header
    %s14 = sphi 0, %s18
    %p15 = scmp.ge.s32.totalorder %s14, 4
    %s24 = sphi 0, %s26
    %s27 = sphi 0, %s24
    %s28 = sphi 0, %s27
    %s44 = sphi 0, %s28
    %s48 = sphi 0, %s48
    %s50 = sphi 0, %s48
    %s51 = sphi 0, %s50
    %s65 = sphi 0, %s51
    %s69 = sphi 0, %s69
    %s71 = sphi 0, %s69
    %s72 = sphi 0, %s71
    %s86 = sphi 0, %s72
    %s90 = sphi 0, %s90
    %s92 = sphi 0, %s90
    %s93 = sphi 0, %s92
    %s107 = sphi 0, %s93
    %s111 = sphi 0, %s111
    %s113 = sphi 0, %s111
    %s114 = sphi 0, %s113
    %s128 = sphi 0, %s114
    %s132 = sphi 0, %s132
    %s134 = sphi 0, %s132
    %s135 = sphi 0, %s134
    %s149 = sphi 0, %s135
    %s155 = sphi 0, %s157
    %s158 = sphi 0, %s155
    %s159 = sphi 0, %s158
    %s175 = sphi 0, %s159
    %s181 = sphi 0, %s183
    %s184 = sphi 0, %s181
    %s185 = sphi 0, %s184
    %s201 = sphi 0, %s185
  $region4: #{tpu_custom_call.1} parent=0 // loop_header_branch
    %17 = sbr.rel (%p15) target = $region8
  $region5: #{tpu_custom_call.1} parent=0 // loop_body
    %s19 = ssub.s32 %s14, 1
    %s20 = ssub.s32 %s14, 2
    %s21 = sadd.s32 %s14, 1
    %s22 = ssub.s32 %s14, %s21
    %p23 = scmp.eq.s32.totalorder %s22, 0
    %s25 = sadd.s32 %s24, 1
    %s26 = scalar_select %p23, %s24, %s25
    %p29 = pneg %p23
    %p30 = scmp.eq.s32.totalorder %s14, 1
    %p31 = por %p29, %p30
    %p32 = scmp.ne.s32.totalorder %s24, %s27
    %p33 = scmp.eq.s32.totalorder %s14, 0
    %p34 = por %p32, %p33
    %p35 = scmp.ne.s32.totalorder %s24, %s27
    %p36 = scmp.eq.s32.totalorder %s19, 1
    %p37 = por %p35, %p36
    %p38 = scmp.ne.s32.totalorder %s27, %s28
    %p39 = scmp.eq.s32.totalorder %s19, 0
    %p40 = por %p38, %p39
    %p41 = scmp.ne.s32.totalorder %s27, %s28
    %p42 = scmp.eq.s32.totalorder %s20, 1
    %p43 = por %p41, %p42
    %p45 = scmp.ne.s32.totalorder %s28, %s44
    %p46 = scmp.eq.s32.totalorder %s20, 0
    %p47 = por %p45, %p46
    %s49 = sadd.s32 %s48, 1
    %p52 = scmp.eq.s32.totalorder %s14, 1
    %p53 = scmp.ne.s32.totalorder %s48, %s50
    %p54 = scmp.eq.s32.totalorder %s14, 0
    %p55 = por %p53, %p54
    %p56 = scmp.ne.s32.totalorder %s48, %s50
    %p57 = scmp.eq.s32.totalorder %s19, 1
    %p58 = por %p56, %p57
    %p59 = scmp.ne.s32.totalorder %s50, %s51
    %p60 = scmp.eq.s32.totalorder %s19, 0
    %p61 = por %p59, %p60
    %p62 = scmp.ne.s32.totalorder %s50, %s51
    %p63 = scmp.eq.s32.totalorder %s20, 1
    %p64 = por %p62, %p63
    %p66 = scmp.ne.s32.totalorder %s51, %s65
    %p67 = scmp.eq.s32.totalorder %s20, 0
    %p68 = por %p66, %p67
    %s70 = sadd.s32 %s69, 1
    %p73 = scmp.eq.s32.totalorder %s14, 1
    %p74 = scmp.ne.s32.totalorder %s69, %s71
    %p75 = scmp.eq.s32.totalorder %s14, 0
    %p76 = por %p74, %p75
    %p77 = scmp.ne.s32.totalorder %s69, %s71
    %p78 = scmp.eq.s32.totalorder %s19, 1
    %p79 = por %p77, %p78
    %p80 = scmp.ne.s32.totalorder %s71, %s72
    %p81 = scmp.eq.s32.totalorder %s19, 0
    %p82 = por %p80, %p81
    %p83 = scmp.ne.s32.totalorder %s71, %s72
    %p84 = scmp.eq.s32.totalorder %s20, 1
    %p85 = por %p83, %p84
    %p87 = scmp.ne.s32.totalorder %s72, %s86
    %p88 = scmp.eq.s32.totalorder %s20, 0
    %p89 = por %p87, %p88
    %s91 = sadd.s32 %s90, 1
    %p94 = scmp.eq.s32.totalorder %s14, 1
    %p95 = scmp.ne.s32.totalorder %s90, %s92
    %p96 = scmp.eq.s32.totalorder %s14, 0
    %p97 = por %p95, %p96
    %p98 = scmp.ne.s32.totalorder %s90, %s92
    %p99 = scmp.eq.s32.totalorder %s19, 1
    %p100 = por %p98, %p99
    %p101 = scmp.ne.s32.totalorder %s92, %s93
    %p102 = scmp.eq.s32.totalorder %s19, 0
    %p103 = por %p101, %p102
    %p104 = scmp.ne.s32.totalorder %s92, %s93
    %p105 = scmp.eq.s32.totalorder %s20, 1
    %p106 = por %p104, %p105
    %p108 = scmp.ne.s32.totalorder %s93, %s107
    %p109 = scmp.eq.s32.totalorder %s20, 0
    %p110 = por %p108, %p109
    %s112 = sadd.s32 %s111, 1
    %p115 = scmp.eq.s32.totalorder %s14, 1
    %p116 = scmp.ne.s32.totalorder %s111, %s113
    %p117 = scmp.eq.s32.totalorder %s14, 0
    %p118 = por %p116, %p117
    %p119 = scmp.ne.s32.totalorder %s111, %s113
    %p120 = scmp.eq.s32.totalorder %s19, 1
    %p121 = por %p119, %p120
    %p122 = scmp.ne.s32.totalorder %s113, %s114
    %p123 = scmp.eq.s32.totalorder %s19, 0
    %p124 = por %p122, %p123
    %p125 = scmp.ne.s32.totalorder %s113, %s114
    %p126 = scmp.eq.s32.totalorder %s20, 1
    %p127 = por %p125, %p126
    %p129 = scmp.ne.s32.totalorder %s114, %s128
    %p130 = scmp.eq.s32.totalorder %s20, 0
    %p131 = por %p129, %p130
    %s133 = sadd.s32 %s132, 1
    %p136 = scmp.eq.s32.totalorder %s14, 1
    %p137 = scmp.ne.s32.totalorder %s132, %s134
    %p138 = scmp.eq.s32.totalorder %s14, 0
    %p139 = por %p137, %p138
    %p140 = scmp.ne.s32.totalorder %s132, %s134
    %p141 = scmp.eq.s32.totalorder %s19, 1
    %p142 = por %p140, %p141
    %p143 = scmp.ne.s32.totalorder %s134, %s135
    %p144 = scmp.eq.s32.totalorder %s19, 0
    %p145 = por %p143, %p144
    %p146 = scmp.ne.s32.totalorder %s134, %s135
    %p147 = scmp.eq.s32.totalorder %s20, 1
    %p148 = por %p146, %p147
    %p150 = scmp.ne.s32.totalorder %s135, %s149
    %p151 = scmp.eq.s32.totalorder %s20, 0
    %p152 = por %p150, %p151
    %s153 = ssub.s32 %s14, %s21
    %p154 = scmp.eq.s32.totalorder %s153, 0
    %s156 = sadd.s32 %s155, 1
    %s157 = scalar_select %p154, %s155, %s156
    %p160 = pneg %p154
    %p161 = scmp.eq.s32.totalorder %s14, 1
    %p162 = por %p160, %p161
    %p163 = scmp.ne.s32.totalorder %s155, %s158
    %p164 = scmp.eq.s32.totalorder %s14, 0
    %p165 = por %p163, %p164
    %p166 = scmp.ne.s32.totalorder %s155, %s158
    %p167 = scmp.eq.s32.totalorder %s19, 1
    %p168 = por %p166, %p167
    %p169 = scmp.ne.s32.totalorder %s158, %s159
    %p170 = scmp.eq.s32.totalorder %s19, 0
    %p171 = por %p169, %p170
    %p172 = scmp.ne.s32.totalorder %s158, %s159
    %p173 = scmp.eq.s32.totalorder %s20, 1
    %p174 = por %p172, %p173
    %p176 = scmp.ne.s32.totalorder %s159, %s175
    %p177 = scmp.eq.s32.totalorder %s20, 0
    %p178 = por %p176, %p177
    %s179 = ssub.s32 %s14, %s21
    %p180 = scmp.eq.s32.totalorder %s179, 0
    %s182 = sadd.s32 %s181, 1
    %s183 = scalar_select %p180, %s181, %s182
    %p186 = pneg %p180
    %p187 = scmp.eq.s32.totalorder %s14, 1
    %p188 = por %p186, %p187
    %p189 = scmp.ne.s32.totalorder %s181, %s184
    %p190 = scmp.eq.s32.totalorder %s14, 0
    %p191 = por %p189, %p190
    %p192 = scmp.ne.s32.totalorder %s181, %s184
    %p193 = scmp.eq.s32.totalorder %s19, 1
    %p194 = por %p192, %p193
    %p195 = scmp.ne.s32.totalorder %s184, %s185
    %p196 = scmp.eq.s32.totalorder %s19, 0
    %p197 = por %p195, %p196
    %p198 = scmp.ne.s32.totalorder %s184, %s185
    %p199 = scmp.eq.s32.totalorder %s20, 1
    %p200 = por %p198, %p199
    %p202 = scmp.ne.s32.totalorder %s185, %s201
    %p203 = scmp.eq.s32.totalorder %s20, 0
    %p204 = por %p202, %p203
    %p205 = scmp.le.s32.totalorder 1, %s14
    %p206 = scmp.lt.s32.totalorder %s14, 3
    %p207 = pnand %p205, %p206
    %p208 = pneg %p207
    // Predicated region
    $region9: #{tpu_custom_call.1} parent=5 // pred_check
      _
    $region10: #{tpu_custom_call.1} parent=5 // pred_check_branch
      %210 = sbr.rel (%p207) target = $region12
    $region11: #{tpu_custom_call.1} parent=5 // pred_region
      %s211 = ssub.s32 %s14, 1
      // Predicated region
      $region13: #{tpu_custom_call.1} parent=11 // pred_check
        %p212 = pneg %p61
      $region14: #{tpu_custom_call.1} parent=11 // pred_check_branch
        %214 = sbr.rel (%p212) target = $region16
      $region15: #{tpu_custom_call.1} parent=11 // pred_region
        _
      $region16: #{tpu_custom_call.1} parent=11 // pred_fallthru
        _
      // Predicated region
      $region17: #{tpu_custom_call.1} parent=11 // pred_check
        %p215 = pneg %p82
      $region18: #{tpu_custom_call.1} parent=11 // pred_check_branch
        %217 = sbr.rel (%p215) target = $region20
      $region19: #{tpu_custom_call.1} parent=11 // pred_region
        _
      $region20: #{tpu_custom_call.1} parent=11 // pred_fallthru
        _
      // Predicated region
      $region21: #{tpu_custom_call.1} parent=11 // pred_check
        %p218 = pneg %p103
      $region22: #{tpu_custom_call.1} parent=11 // pred_check_branch
        %220 = sbr.rel (%p218) target = $region24
      $region23: #{tpu_custom_call.1} parent=11 // pred_region
        _
      $region24: #{tpu_custom_call.1} parent=11 // pred_fallthru
        _
      // Predicated region
      $region25: #{tpu_custom_call.1} parent=11 // pred_check
        %p221 = pneg %p124
      $region26: #{tpu_custom_call.1} parent=11 // pred_check_branch
        %223 = sbr.rel (%p221) target = $region28
      $region27: #{tpu_custom_call.1} parent=11 // pred_region
        _
      $region28: #{tpu_custom_call.1} parent=11 // pred_fallthru
        _
      // Predicated region
      $region29: #{tpu_custom_call.1} parent=11 // pred_check
        %p224 = pneg %p145
      $region30: #{tpu_custom_call.1} parent=11 // pred_check_branch
        %226 = sbr.rel (%p224) target = $region32
      $region31: #{tpu_custom_call.1} parent=11 // pred_region
        _
      $region32: #{tpu_custom_call.1} parent=11 // pred_fallthru
        _
    $region12: #{tpu_custom_call.1} parent=5 // pred_fallthru
      _
    %p227 = scmp.lt.s32.totalorder %s14, 2
    // Predicated region
    $region33: #{tpu_custom_call.1} parent=5 // pred_check
      %p228 = pneg %p227
    $region34: #{tpu_custom_call.1} parent=5 // pred_check_branch
      %230 = sbr.rel (%p228) target = $region36
    $region35: #{tpu_custom_call.1} parent=5 // pred_region
      // Predicated region
      $region37: #{tpu_custom_call.1} parent=35 // pred_check
        %p231 = pneg %p34
      $region38: #{tpu_custom_call.1} parent=35 // pred_check_branch
        %233 = sbr.rel (%p231) target = $region40
      $region39: #{tpu_custom_call.1} parent=35 // pred_region
        %s234 = smul.u32 128, %s14
        %p235 = scmp.lt.s32.totalorder %s234, 255
        %s236 = scalar_select %p235, %s234, 255
        %s237 = smul.addr %s236, 4
        %s238 = scalar_lea.vmem %s0, %s237
        %s239 = smul.u32 128, %s14
      $region40: #{tpu_custom_call.1} parent=35 // pred_fallthru
        _
    $region36: #{tpu_custom_call.1} parent=5 // pred_fallthru
      _
    %p240 = scmp.le.s32.totalorder 1, %s14
    %p241 = scmp.lt.s32.totalorder %s14, 3
    %p242 = pnand %p240, %p241
    %p243 = pneg %p242
    // Predicated region
    $region41: #{tpu_custom_call.1} parent=5 // pred_check
      _
    $region42: #{tpu_custom_call.1} parent=5 // pred_check_branch
      %245 = sbr.rel (%p242) target = $region44
    $region43: #{tpu_custom_call.1} parent=5 // pred_region
      %s246 = ssub.s32 %s14, 1
      %s247 = smul.u32 128, %s19
      %p248 = scmp.lt.s32.totalorder %s247, 255
      %s249 = scalar_select %p248, %s247, 255
      %s250 = smul.addr %s249, 4
      %s251 = scalar_lea.vmem %s0, %s250
      %p252 = pneg %p40
      %p253 = pneg %p37
      %p254 = pneg %p61
      %p255 = pneg %p58
      %p256 = pneg %p82
      %p257 = pneg %p79
      %p258 = pneg %p103
      %p259 = pneg %p100
      %p260 = pneg %p124
      %p261 = pneg %p121
      %p262 = pneg %p145
      %p263 = pneg %p142
      %p264 = pneg %p171
      %p265 = pneg %p168
      %s266 = smul.u32 128, %s19
      %p267 = scmp.lt.s32.totalorder %s266, 255
      %s268 = scalar_select %p267, %s266, 255
      %s269 = smul.addr %s268, 4
      %s270 = scalar_lea.vmem %s6, %s269
      %p271 = pneg %p197
      %p272 = pneg %p194
      %s273 = smul.u32 128, %s19
      %p274 = scmp.lt.s32.totalorder %s273, 255
      %s275 = scalar_select %p274, %s273, 255
      %s276 = smul.addr %s275, 4
      %s277 = scalar_lea.vmem %s7, %s276
      %s278 = smul.u32 128, %s19
      %p279 = scmp.lt.s32.totalorder %s278, 255
      %s280 = scalar_select %p279, %s278, 255
      %s281 = smul.addr %s280, 4
      %s282 = scalar_lea.vmem %s0, %s281
      %s283 = smul.u32 128, %s19
      %s284 = smul.u32 128, %s19
      %p285 = scmp.lt.s32.totalorder %s284, 255
      %s286 = scalar_select %p285, %s284, 255
      %s287 = smul.addr %s286, 4
      %s288 = scalar_lea.vmem %s6, %s287
      %s289 = smul.u32 128, %s19
      %s290 = smul.u32 128, %s19
      %p291 = scmp.lt.s32.totalorder %s290, 255
      %s292 = scalar_select %p291, %s290, 255
      %s293 = smul.addr %s292, 4
      %s294 = scalar_lea.vmem %s7, %s293
      %s295 = smul.u32 128, %s19
      %v297 = vld [vmem:[%s282] sm:$0xf]
      %v298 = vld [vmem:[%s282 + $0x4] sm:$0xf]
      %v299 = vld [vmem:[%s282 + $0x8] sm:$0xf]
      %v300 = vld [vmem:[%s282 + $0xc] sm:$0xf]
      %v301 = vld [vmem:[%s282 + $0x10] sm:$0xf]
      %v302 = vld [vmem:[%s282 + $0x14] sm:$0xf]
      %v303 = vld [vmem:[%s282 + $0x18] sm:$0xf]
      %v304 = vld [vmem:[%s282 + $0x1c] sm:$0xf]
      %v305 = vld [vmem:[%s282 + $0x20] sm:$0xf]
      %v306 = vld [vmem:[%s282 + $0x24] sm:$0xf]
      %v307 = vld [vmem:[%s282 + $0x28] sm:$0xf]
      %v308 = vld [vmem:[%s282 + $0x2c] sm:$0xf]
      %v309 = vld [vmem:[%s282 + $0x30] sm:$0xf]
      %v310 = vld [vmem:[%s282 + $0x34] sm:$0xf]
      %v311 = vld [vmem:[%s282 + $0x38] sm:$0xf]
      %v312 = vld [vmem:[%s282 + $0x3c] sm:$0xf]
      %v313 = vld [vmem:[%s282 + $0x40] sm:$0xf]
      %v314 = vld [vmem:[%s282 + $0x44] sm:$0xf]
      %v315 = vld [vmem:[%s282 + $0x48] sm:$0xf]
      %v316 = vld [vmem:[%s282 + $0x4c] sm:$0xf]
      %v317 = vld [vmem:[%s282 + $0x50] sm:$0xf]
      %v318 = vld [vmem:[%s282 + $0x54] sm:$0xf]
      %v319 = vld [vmem:[%s282 + $0x58] sm:$0xf]
      %v320 = vld [vmem:[%s282 + $0x5c] sm:$0xf]
      %v321 = vld [vmem:[%s282 + $0x60] sm:$0xf]
      %v322 = vld [vmem:[%s282 + $0x64] sm:$0xf]
      %v323 = vld [vmem:[%s282 + $0x68] sm:$0xf]
      %v324 = vld [vmem:[%s282 + $0x6c] sm:$0xf]
      %v325 = vld [vmem:[%s282 + $0x70] sm:$0xf]
      %v326 = vld [vmem:[%s282 + $0x74] sm:$0xf]
      %v327 = vld [vmem:[%s282 + $0x78] sm:$0xf]
      %v328 = vld [vmem:[%s282 + $0x7c] sm:$0xf]
      %v329 = vld [vmem:[%s282 + $0x80] sm:$0xf]
      %v330 = vld [vmem:[%s282 + $0x84] sm:$0xf]
      %v331 = vld [vmem:[%s282 + $0x88] sm:$0xf]
      %v332 = vld [vmem:[%s282 + $0x8c] sm:$0xf]
      %v333 = vld [vmem:[%s282 + $0x90] sm:$0xf]
      %v334 = vld [vmem:[%s282 + $0x94] sm:$0xf]
      %v335 = vld [vmem:[%s282 + $0x98] sm:$0xf]
      %v336 = vld [vmem:[%s282 + $0x9c] sm:$0xf]
      %v337 = vld [vmem:[%s282 + $0xa0] sm:$0xf]
      %v338 = vld [vmem:[%s282 + $0xa4] sm:$0xf]
      %v339 = vld [vmem:[%s282 + $0xa8] sm:$0xf]
      %v340 = vld [vmem:[%s282 + $0xac] sm:$0xf]
      %v341 = vld [vmem:[%s282 + $0xb0] sm:$0xf]
      %v342 = vld [vmem:[%s282 + $0xb4] sm:$0xf]
      %v343 = vld [vmem:[%s282 + $0xb8] sm:$0xf]
      %v344 = vld [vmem:[%s282 + $0xbc] sm:$0xf]
      %v345 = vld [vmem:[%s282 + $0xc0] sm:$0xf]
      %v346 = vld [vmem:[%s282 + $0xc4] sm:$0xf]
      %v347 = vld [vmem:[%s282 + $0xc8] sm:$0xf]
      %v348 = vld [vmem:[%s282 + $0xcc] sm:$0xf]
      %v349 = vld [vmem:[%s282 + $0xd0] sm:$0xf]
      %v350 = vld [vmem:[%s282 + $0xd4] sm:$0xf]
      %v351 = vld [vmem:[%s282 + $0xd8] sm:$0xf]
      %v352 = vld [vmem:[%s282 + $0xdc] sm:$0xf]
      %v353 = vld [vmem:[%s282 + $0xe0] sm:$0xf]
      %v354 = vld [vmem:[%s282 + $0xe4] sm:$0xf]
      %v355 = vld [vmem:[%s282 + $0xe8] sm:$0xf]
      %v356 = vld [vmem:[%s282 + $0xec] sm:$0xf]
      %v357 = vld [vmem:[%s282 + $0xf0] sm:$0xf]
      %v358 = vld [vmem:[%s282 + $0xf4] sm:$0xf]
      %v359 = vld [vmem:[%s282 + $0xf8] sm:$0xf]
      %v360 = vld [vmem:[%s282 + $0xfc] sm:$0xf]
      %v361 = vld [vmem:[%s282 + $0x100] sm:$0xf]
      %v362 = vld [vmem:[%s282 + $0x104] sm:$0xf]
      %v363 = vld [vmem:[%s282 + $0x108] sm:$0xf]
      %v364 = vld [vmem:[%s282 + $0x10c] sm:$0xf]
      %v365 = vld [vmem:[%s282 + $0x110] sm:$0xf]
      %v366 = vld [vmem:[%s282 + $0x114] sm:$0xf]
      %v367 = vld [vmem:[%s282 + $0x118] sm:$0xf]
      %v368 = vld [vmem:[%s282 + $0x11c] sm:$0xf]
      %v369 = vld [vmem:[%s282 + $0x120] sm:$0xf]
      %v370 = vld [vmem:[%s282 + $0x124] sm:$0xf]
      %v371 = vld [vmem:[%s282 + $0x128] sm:$0xf]
      %v372 = vld [vmem:[%s282 + $0x12c] sm:$0xf]
      %v373 = vld [vmem:[%s282 + $0x130] sm:$0xf]
      %v374 = vld [vmem:[%s282 + $0x134] sm:$0xf]
      %v375 = vld [vmem:[%s282 + $0x138] sm:$0xf]
      %v376 = vld [vmem:[%s282 + $0x13c] sm:$0xf]
      %v377 = vld [vmem:[%s282 + $0x140] sm:$0xf]
      %v378 = vld [vmem:[%s282 + $0x144] sm:$0xf]
      %v379 = vld [vmem:[%s282 + $0x148] sm:$0xf]
      %v380 = vld [vmem:[%s282 + $0x14c] sm:$0xf]
      %v381 = vld [vmem:[%s282 + $0x150] sm:$0xf]
      %v382 = vld [vmem:[%s282 + $0x154] sm:$0xf]
      %v383 = vld [vmem:[%s282 + $0x158] sm:$0xf]
      %v384 = vld [vmem:[%s282 + $0x15c] sm:$0xf]
      %v385 = vld [vmem:[%s282 + $0x160] sm:$0xf]
      %v386 = vld [vmem:[%s282 + $0x164] sm:$0xf]
      %v387 = vld [vmem:[%s282 + $0x168] sm:$0xf]
      %v388 = vld [vmem:[%s282 + $0x16c] sm:$0xf]
      %v389 = vld [vmem:[%s282 + $0x170] sm:$0xf]
      %v390 = vld [vmem:[%s282 + $0x174] sm:$0xf]
      %v391 = vld [vmem:[%s282 + $0x178] sm:$0xf]
      %v392 = vld [vmem:[%s282 + $0x17c] sm:$0xf]
      %v393 = vld [vmem:[%s282 + $0x180] sm:$0xf]
      %v394 = vld [vmem:[%s282 + $0x184] sm:$0xf]
      %v395 = vld [vmem:[%s282 + $0x188] sm:$0xf]
      %v396 = vld [vmem:[%s282 + $0x18c] sm:$0xf]
      %v397 = vld [vmem:[%s282 + $0x190] sm:$0xf]
      %v398 = vld [vmem:[%s282 + $0x194] sm:$0xf]
      %v399 = vld [vmem:[%s282 + $0x198] sm:$0xf]
      %v400 = vld [vmem:[%s282 + $0x19c] sm:$0xf]
      %v401 = vld [vmem:[%s282 + $0x1a0] sm:$0xf]
      %v402 = vld [vmem:[%s282 + $0x1a4] sm:$0xf]
      %v403 = vld [vmem:[%s282 + $0x1a8] sm:$0xf]
      %v404 = vld [vmem:[%s282 + $0x1ac] sm:$0xf]
      %v405 = vld [vmem:[%s282 + $0x1b0] sm:$0xf]
      %v406 = vld [vmem:[%s282 + $0x1b4] sm:$0xf]
      %v407 = vld [vmem:[%s282 + $0x1b8] sm:$0xf]
      %v408 = vld [vmem:[%s282 + $0x1bc] sm:$0xf]
      %v409 = vld [vmem:[%s282 + $0x1c0] sm:$0xf]
      %v410 = vld [vmem:[%s282 + $0x1c4] sm:$0xf]
      %v411 = vld [vmem:[%s282 + $0x1c8] sm:$0xf]
      %v412 = vld [vmem:[%s282 + $0x1cc] sm:$0xf]
      %v413 = vld [vmem:[%s282 + $0x1d0] sm:$0xf]
      %v414 = vld [vmem:[%s282 + $0x1d4] sm:$0xf]
      %v415 = vld [vmem:[%s282 + $0x1d8] sm:$0xf]
      %v416 = vld [vmem:[%s282 + $0x1dc] sm:$0xf]
      %v417 = vld [vmem:[%s282 + $0x1e0] sm:$0xf]
      %v418 = vld [vmem:[%s282 + $0x1e4] sm:$0xf]
      %v419 = vld [vmem:[%s282 + $0x1e8] sm:$0xf]
      %v420 = vld [vmem:[%s282 + $0x1ec] sm:$0xf]
      %v421 = vld [vmem:[%s282 + $0x1f0] sm:$0xf]
      %v422 = vld [vmem:[%s282 + $0x1f4] sm:$0xf]
      %v423 = vld [vmem:[%s282 + $0x1f8] sm:$0xf]
      %v424 = vld [vmem:[%s282 + $0x1fc] sm:$0xf]
      %v425 = vld [vmem:[%s1] sm:$0xf]
      %v426 = vld [vmem:[%s1 + $0x4] sm:$0xf]
      %v427 = vld [vmem:[%s1 + $0x8] sm:$0xf]
      %v428 = vld [vmem:[%s1 + $0xc] sm:$0x3]
      %v557 = vunpack.c.l.b16 %v297
      %v558 = vunpack.c.l.b16 %v298
      %v559 = vunpack.c.l.b16 %v299
      %v560 = vunpack.c.l.b16 %v300
      %v561 = vunpack.c.l.b16 %v301
      %v562 = vunpack.c.l.b16 %v302
      %v563 = vunpack.c.l.b16 %v303
      %v564 = vunpack.c.l.b16 %v304
      %v565 = vunpack.c.l.b16 %v305
      %v566 = vunpack.c.l.b16 %v306
      %v567 = vunpack.c.l.b16 %v307
      %v568 = vunpack.c.l.b16 %v308
      %v569 = vunpack.c.l.b16 %v309
      %v570 = vunpack.c.l.b16 %v310
      %v571 = vunpack.c.l.b16 %v311
      %v572 = vunpack.c.l.b16 %v312
      %v573 = vunpack.c.l.b16 %v313
      %v574 = vunpack.c.l.b16 %v314
      %v575 = vunpack.c.l.b16 %v315
      %v576 = vunpack.c.l.b16 %v316
      %v577 = vunpack.c.l.b16 %v317
      %v578 = vunpack.c.l.b16 %v318
      %v579 = vunpack.c.l.b16 %v319
      %v580 = vunpack.c.l.b16 %v320
      %v581 = vunpack.c.l.b16 %v321
      %v582 = vunpack.c.l.b16 %v322
      %v583 = vunpack.c.l.b16 %v323
      %v584 = vunpack.c.l.b16 %v324
      %v585 = vunpack.c.l.b16 %v325
      %v586 = vunpack.c.l.b16 %v326
      %v587 = vunpack.c.l.b16 %v327
      %v588 = vunpack.c.l.b16 %v328
      %v589 = vunpack.c.l.b16 %v329
      %v590 = vunpack.c.l.b16 %v330
      %v591 = vunpack.c.l.b16 %v331
      %v592 = vunpack.c.l.b16 %v332
      %v593 = vunpack.c.l.b16 %v333
      %v594 = vunpack.c.l.b16 %v334
      %v595 = vunpack.c.l.b16 %v335
      %v596 = vunpack.c.l.b16 %v336
      %v597 = vunpack.c.l.b16 %v337
      %v598 = vunpack.c.l.b16 %v338
      %v599 = vunpack.c.l.b16 %v339
      %v600 = vunpack.c.l.b16 %v340
      %v601 = vunpack.c.l.b16 %v341
      %v602 = vunpack.c.l.b16 %v342
      %v603 = vunpack.c.l.b16 %v343
      %v604 = vunpack.c.l.b16 %v344
      %v605 = vunpack.c.l.b16 %v345
      %v606 = vunpack.c.l.b16 %v346
      %v607 = vunpack.c.l.b16 %v347
      %v608 = vunpack.c.l.b16 %v348
      %v609 = vunpack.c.l.b16 %v349
      %v610 = vunpack.c.l.b16 %v350
      %v611 = vunpack.c.l.b16 %v351
      %v612 = vunpack.c.l.b16 %v352
      %v613 = vunpack.c.l.b16 %v353
      %v614 = vunpack.c.l.b16 %v354
      %v615 = vunpack.c.l.b16 %v355
      %v616 = vunpack.c.l.b16 %v356
      %v617 = vunpack.c.l.b16 %v357
      %v618 = vunpack.c.l.b16 %v358
      %v619 = vunpack.c.l.b16 %v359
      %v620 = vunpack.c.l.b16 %v360
      %v621 = vunpack.c.l.b16 %v361
      %v622 = vunpack.c.l.b16 %v362
      %v623 = vunpack.c.l.b16 %v363
      %v624 = vunpack.c.l.b16 %v364
      %v625 = vunpack.c.l.b16 %v365
      %v626 = vunpack.c.l.b16 %v366
      %v627 = vunpack.c.l.b16 %v367
      %v628 = vunpack.c.l.b16 %v368
      %v629 = vunpack.c.l.b16 %v369
      %v630 = vunpack.c.l.b16 %v370
      %v631 = vunpack.c.l.b16 %v371
      %v632 = vunpack.c.l.b16 %v372
      %v633 = vunpack.c.l.b16 %v373
      %v634 = vunpack.c.l.b16 %v374
      %v635 = vunpack.c.l.b16 %v375
      %v636 = vunpack.c.l.b16 %v376
      %v637 = vunpack.c.l.b16 %v377
      %v638 = vunpack.c.l.b16 %v378
      %v639 = vunpack.c.l.b16 %v379
      %v640 = vunpack.c.l.b16 %v380
      %v641 = vunpack.c.l.b16 %v381
      %v642 = vunpack.c.l.b16 %v382
      %v643 = vunpack.c.l.b16 %v383
      %v644 = vunpack.c.l.b16 %v384
      %v645 = vunpack.c.l.b16 %v385
      %v646 = vunpack.c.l.b16 %v386
      %v647 = vunpack.c.l.b16 %v387
      %v648 = vunpack.c.l.b16 %v388
      %v649 = vunpack.c.l.b16 %v389
      %v650 = vunpack.c.l.b16 %v390
      %v651 = vunpack.c.l.b16 %v391
      %v652 = vunpack.c.l.b16 %v392
      %v653 = vunpack.c.l.b16 %v393
      %v654 = vunpack.c.l.b16 %v394
      %v655 = vunpack.c.l.b16 %v395
      %v656 = vunpack.c.l.b16 %v396
      %v657 = vunpack.c.l.b16 %v397
      %v658 = vunpack.c.l.b16 %v398
      %v659 = vunpack.c.l.b16 %v399
      %v660 = vunpack.c.l.b16 %v400
      %v661 = vunpack.c.l.b16 %v401
      %v662 = vunpack.c.l.b16 %v402
      %v663 = vunpack.c.l.b16 %v403
      %v664 = vunpack.c.l.b16 %v404
      %v665 = vunpack.c.l.b16 %v405
      %v666 = vunpack.c.l.b16 %v406
      %v667 = vunpack.c.l.b16 %v407
      %v668 = vunpack.c.l.b16 %v408
      %v669 = vunpack.c.l.b16 %v409
      %v670 = vunpack.c.l.b16 %v410
      %v671 = vunpack.c.l.b16 %v411
      %v672 = vunpack.c.l.b16 %v412
      %v673 = vunpack.c.l.b16 %v413
      %v674 = vunpack.c.l.b16 %v414
      %v675 = vunpack.c.l.b16 %v415
      %v676 = vunpack.c.l.b16 %v416
      %v677 = vunpack.c.l.b16 %v417
      %v678 = vunpack.c.l.b16 %v418
      %v679 = vunpack.c.l.b16 %v419
      %v680 = vunpack.c.l.b16 %v420
      %v681 = vunpack.c.l.b16 %v421
      %v682 = vunpack.c.l.b16 %v422
      %v683 = vunpack.c.l.b16 %v423
      %v684 = vunpack.c.l.b16 %v424
      %v685 = vpack.c.b16 %v558, %v557
      %v686 = vpack.c.b16 %v560, %v559
      %v687 = vpack.c.b16 %v562, %v561
      %v688 = vpack.c.b16 %v564, %v563
      %v689 = vpack.c.b16 %v566, %v565
      %v690 = vpack.c.b16 %v568, %v567
      %v691 = vpack.c.b16 %v570, %v569
      %v692 = vpack.c.b16 %v572, %v571
      %v693 = vpack.c.b16 %v574, %v573
      %v694 = vpack.c.b16 %v576, %v575
      %v695 = vpack.c.b16 %v578, %v577
      %v696 = vpack.c.b16 %v580, %v579
      %v697 = vpack.c.b16 %v582, %v581
      %v698 = vpack.c.b16 %v584, %v583
      %v699 = vpack.c.b16 %v586, %v585
      %v700 = vpack.c.b16 %v588, %v587
      %v701 = vpack.c.b16 %v590, %v589
      %v702 = vpack.c.b16 %v592, %v591
      %v703 = vpack.c.b16 %v594, %v593
      %v704 = vpack.c.b16 %v596, %v595
      %v705 = vpack.c.b16 %v598, %v597
      %v706 = vpack.c.b16 %v600, %v599
      %v707 = vpack.c.b16 %v602, %v601
      %v708 = vpack.c.b16 %v604, %v603
      %v709 = vpack.c.b16 %v606, %v605
      %v710 = vpack.c.b16 %v608, %v607
      %v711 = vpack.c.b16 %v610, %v609
      %v712 = vpack.c.b16 %v612, %v611
      %v713 = vpack.c.b16 %v614, %v613
      %v714 = vpack.c.b16 %v616, %v615
      %v715 = vpack.c.b16 %v618, %v617
      %v716 = vpack.c.b16 %v620, %v619
      %v717 = vpack.c.b16 %v622, %v621
      %v718 = vpack.c.b16 %v624, %v623
      %v719 = vpack.c.b16 %v626, %v625
      %v720 = vpack.c.b16 %v628, %v627
      %v721 = vpack.c.b16 %v630, %v629
      %v722 = vpack.c.b16 %v632, %v631
      %v723 = vpack.c.b16 %v634, %v633
      %v724 = vpack.c.b16 %v636, %v635
      %v725 = vpack.c.b16 %v638, %v637
      %v726 = vpack.c.b16 %v640, %v639
      %v727 = vpack.c.b16 %v642, %v641
      %v728 = vpack.c.b16 %v644, %v643
      %v729 = vpack.c.b16 %v646, %v645
      %v730 = vpack.c.b16 %v648, %v647
      %v731 = vpack.c.b16 %v650, %v649
      %v732 = vpack.c.b16 %v652, %v651
      %v733 = vpack.c.b16 %v654, %v653
      %v734 = vpack.c.b16 %v656, %v655
      %v735 = vpack.c.b16 %v658, %v657
      %v736 = vpack.c.b16 %v660, %v659
      %v737 = vpack.c.b16 %v662, %v661
      %v738 = vpack.c.b16 %v664, %v663
      %v739 = vpack.c.b16 %v666, %v665
      %v740 = vpack.c.b16 %v668, %v667
      %v741 = vpack.c.b16 %v670, %v669
      %v742 = vpack.c.b16 %v672, %v671
      %v743 = vpack.c.b16 %v674, %v673
      %v744 = vpack.c.b16 %v676, %v675
      %v745 = vpack.c.b16 %v678, %v677
      %v746 = vpack.c.b16 %v680, %v679
      %v747 = vpack.c.b16 %v682, %v681
      %v748 = vpack.c.b16 %v684, %v683
      %v753 = vunpack.c.l.b16 %v425
      %v754 = vunpack.c.l.b16 %v426
      %v755 = vunpack.c.l.b16 %v427
      %v756 = vunpack.c.l.b16 %v428
      %v757 = vpack.c.b16 %v754, %v753
      %v758 = vpack.c.b16 %v756, %v755
      %vm760 = vcmask 220160
      %v762 = vsel %vm760, %v685, 0
      %v765 = vsel %vm760, %v686, 0
      %v768 = vsel %vm760, %v687, 0
      %v771 = vsel %vm760, %v688, 0
      %v774 = vsel %vm760, %v689, 0
      %v777 = vsel %vm760, %v690, 0
      %v780 = vsel %vm760, %v691, 0
      %v783 = vsel %vm760, %v692, 0
      %v786 = vsel %vm760, %v693, 0
      %v789 = vsel %vm760, %v694, 0
      %v792 = vsel %vm760, %v695, 0
      %v795 = vsel %vm760, %v696, 0
      %v798 = vsel %vm760, %v697, 0
      %v801 = vsel %vm760, %v698, 0
      %v804 = vsel %vm760, %v699, 0
      %v807 = vsel %vm760, %v700, 0
      %v810 = vsel %vm760, %v701, 0
      %v813 = vsel %vm760, %v702, 0
      %v816 = vsel %vm760, %v703, 0
      %v819 = vsel %vm760, %v704, 0
      %v822 = vsel %vm760, %v705, 0
      %v825 = vsel %vm760, %v706, 0
      %v828 = vsel %vm760, %v707, 0
      %v831 = vsel %vm760, %v708, 0
      %v834 = vsel %vm760, %v709, 0
      %v837 = vsel %vm760, %v710, 0
      %v840 = vsel %vm760, %v711, 0
      %v843 = vsel %vm760, %v712, 0
      %v846 = vsel %vm760, %v713, 0
      %v849 = vsel %vm760, %v714, 0
      %v852 = vsel %vm760, %v715, 0
      %v855 = vsel %vm760, %v716, 0
      %v858 = vsel %vm760, %v717, 0
      %v861 = vsel %vm760, %v718, 0
      %v864 = vsel %vm760, %v719, 0
      %v867 = vsel %vm760, %v720, 0
      %v870 = vsel %vm760, %v721, 0
      %v873 = vsel %vm760, %v722, 0
      %v876 = vsel %vm760, %v723, 0
      %v879 = vsel %vm760, %v724, 0
      %v882 = vsel %vm760, %v725, 0
      %v885 = vsel %vm760, %v726, 0
      %v888 = vsel %vm760, %v727, 0
      %v891 = vsel %vm760, %v728, 0
      %v894 = vsel %vm760, %v729, 0
      %v897 = vsel %vm760, %v730, 0
      %v900 = vsel %vm760, %v731, 0
      %v903 = vsel %vm760, %v732, 0
      %v906 = vsel %vm760, %v733, 0
      %v909 = vsel %vm760, %v734, 0
      %v912 = vsel %vm760, %v735, 0
      %v915 = vsel %vm760, %v736, 0
      %v918 = vsel %vm760, %v737, 0
      %v921 = vsel %vm760, %v738, 0
      %v924 = vsel %vm760, %v739, 0
      %v927 = vsel %vm760, %v740, 0
      %v930 = vsel %vm760, %v741, 0
      %v933 = vsel %vm760, %v742, 0
      %v936 = vsel %vm760, %v743, 0
      %v939 = vsel %vm760, %v744, 0
      %v942 = vsel %vm760, %v745, 0
      %v945 = vsel %vm760, %v746, 0
      %v948 = vsel %vm760, %v747, 0
      %v951 = vsel %vm760, %v748, 0
      %vm953 = vcmask 1044480
      %vm954 = vcmask 1045504
      %v955 = vsel %vm953, 4294967295, 65535
      %v956 = vsel %vm954, %v955, 0
      %v958 = vand.u32 %v758, %v956
      %960 = vmatprep.subr.bf16.mxu0 0
      %961 = vmatpush1.bf16.msra.mxu0 %v757
      %962 = vmatprep.subr.bf16.mxu0 0
      %963 = vmatpush1.bf16.msra.mxu0 %v958
      %964 = vmatprep.subr.bf16.mxu0 0
      %965 = vmatpush1.bf16.msra.mxu0 0
      %966 = vmatprep.subr.bf16.mxu0 0
      %967 = vmatpush1.bf16.msra.mxu0 0
      %968 = vmatprep.subr.bf16.mxu0 0
      %969 = vmatpush1.bf16.msra.mxu0 0
      %970 = vmatprep.subr.bf16.mxu0 0
      %971 = vmatpush1.bf16.msra.mxu0 0
      %972 = vmatprep.subr.bf16.mxu0 0
      %973 = vmatpush1.bf16.msra.mxu0 0
      %974 = vmatprep.subr.bf16.mxu0 0
      %975 = vmatpush1.bf16.msra.mxu0 0
      %976 = vmatprep.subr.bf16.mxu0 0
      %977 = vmatpush1.bf16.msra.mxu0 0
      %978 = vmatprep.subr.bf16.mxu0 0
      %979 = vmatpush1.bf16.msra.mxu0 0
      %980 = vmatprep.subr.bf16.mxu0 0
      %981 = vmatpush1.bf16.msra.mxu0 0
      %982 = vmatprep.subr.bf16.mxu0 0
      %983 = vmatpush1.bf16.msra.mxu0 0
      %984 = vmatprep.subr.bf16.mxu0 0
      %985 = vmatpush1.bf16.msra.mxu0 0
      %986 = vmatprep.subr.bf16.mxu0 0
      %987 = vmatpush1.bf16.msra.mxu0 0
      %988 = vmatprep.subr.bf16.mxu0 0
      %989 = vmatpush1.bf16.msra.mxu0 0
      %990 = vmatprep.subr.bf16.mxu0 0
      %991 = vmatpush1.bf16.msra.mxu0 0
      %992 = vmatprep.mubr.bf16.mxu0 0
      %993 = vmatmul.mubr.bf16.gmra.mrb[0].mxu0 %v762
      %v994 = vpop.f32.mrb[0].mxu0
      %v995 = vadd.f32 0.0, %v994
      %v996 = vpop.f32.mrb[0].mxu0
      %v997 = vpop.f32.mrb[0].mxu0
      %v998 = vadd.f32 0.0, %v997
      %v999 = vpop.f32.mrb[0].mxu0
      %1000 = vmatprep.mubr.bf16.mxu0 0
      %1001 = vmatmul.mubr.bf16.gmra.mrb[0].mxu0 %v765
      %v1002 = vpop.f32.mrb[0].mxu0
      %v1003 = vadd.f32 0.0, %v1002
      %v1004 = vpop.f32.mrb[0].mxu0
      %v1005 = vpop.f32.mrb[0].mxu0
      %v1006 = vadd.f32 0.0, %v1005
      %v1007 = vpop.f32.mrb[0].mxu0
      %1008 = vmatprep.mubr.bf16.mxu0 0
      %1009 = vmatmul.mubr.bf16.gmra.mrb[0].mxu0 %v768
      %v1010 = vpop.f32.mrb[0].mxu0
      %v1011 = vadd.f32 0.0, %v1010
      %v1012 = vpop.f32.mrb[0].mxu0
      %v1013 = vpop.f32.mrb[0].mxu0
      %v1014 = vadd.f32 0.0, %v1013
      %v1015 = vpop.f32.mrb[0].mxu0
      %1016 = vmatprep.mubr.bf16.mxu0 0
      %1017 = vmatmul.mubr.bf16.gmra.mrb[0].mxu0 %v771
      %v1018 = vpop.f32.mrb[0].mxu0
      %v1019 = vadd.f32 0.0, %v1018
      %v1020 = vpop.f32.mrb[0].mxu0
      %v1021 = vpop.f32.mrb[0].mxu0
      %v1022 = vadd.f32 0.0, %v1021
      %v1023 = vpop.f32.mrb[0].mxu0
      %1024 = vmatprep.mubr.bf16.mxu0 0
      %1025 = vmatmul.mubr.bf16.gmra.mrb[0].mxu0 %v774
      %v1026 = vpop.f32.mrb[0].mxu0
      %v1027 = vadd.f32 0.0, %v1026
      %v1028 = vpop.f32.mrb[0].mxu0
      %v1029 = vpop.f32.mrb[0].mxu0
      %v1030 = vadd.f32 0.0, %v1029
      %v1031 = vpop.f32.mrb[0].mxu0
      %1032 = vmatprep.mubr.bf16.mxu0 0
      %1033 = vmatmul.mubr.bf16.gmra.mrb[0].mxu0 %v777
      %v1034 = vpop.f32.mrb[0].mxu0
      %v1035 = vadd.f32 0.0, %v1034
      %v1036 = vpop.f32.mrb[0].mxu0
      %v1037 = vpop.f32.mrb[0].mxu0
      %v1038 = vadd.f32 0.0, %v1037
      %v1039 = vpop.f32.mrb[0].mxu0
      %1040 = vmatprep.mubr.bf16.mxu0 0
      %1041 = vmatmul.mubr.bf16.gmra.mrb[0].mxu0 %v780
      %v1042 = vpop.f32.mrb[0].mxu0
      %v1043 = vadd.f32 0.0, %v1042
      %v1044 = vpop.f32.mrb[0].mxu0
      %v1045 = vpop.f32.mrb[0].mxu0
      %v1046 = vadd.f32 0.0, %v1045
      %v1047 = vpop.f32.mrb[0].mxu0
      %1048 = vmatprep.mubr.bf16.mxu0 0
      %1049 = vmatmul.mubr.bf16.gmra.mrb[0].mxu0 %v783
      %v1050 = vpop.f32.mrb[0].mxu0
      %v1051 = vadd.f32 0.0, %v1050
      %v1052 = vpop.f32.mrb[0].mxu0
      %v1053 = vpop.f32.mrb[0].mxu0
      %v1054 = vadd.f32 0.0, %v1053
      %v1055 = vpop.f32.mrb[0].mxu0
      %1056 = vmatprep.mubr.bf16.mxu0 0
      %1057 = vmatmul.mubr.bf16.gmra.mrb[0].mxu0 %v786
      %v1058 = vpop.f32.mrb[0].mxu0
      %v1059 = vadd.f32 0.0, %v1058
      %v1060 = vpop.f32.mrb[0].mxu0
      %v1061 = vpop.f32.mrb[0].mxu0
      %v1062 = vadd.f32 0.0, %v1061
      %v1063 = vpop.f32.mrb[0].mxu0
      %1064 = vmatprep.mubr.bf16.mxu0 0
      %1065 = vmatmul.mubr.bf16.gmra.mrb[0].mxu0 %v789
      %v1066 = vpop.f32.mrb[0].mxu0
      %v1067 = vadd.f32 0.0, %v1066
      %v1068 = vpop.f32.mrb[0].mxu0
      %v1069 = vpop.f32.mrb[0].mxu0
      %v1070 = vadd.f32 0.0, %v1069
      %v1071 = vpop.f32.mrb[0].mxu0
      %1072 = vmatprep.mubr.bf16.mxu0 0
      %1073 = vmatmul.mubr.bf16.gmra.mrb[0].mxu0 %v792
      %v1074 = vpop.f32.mrb[0].mxu0
      %v1075 = vadd.f32 0.0, %v1074
      %v1076 = vpop.f32.mrb[0].mxu0
      %v1077 = vpop.f32.mrb[0].mxu0
      %v1078 = vadd.f32 0.0, %v1077
      %v1079 = vpop.f32.mrb[0].mxu0
      %1080 = vmatprep.mubr.bf16.mxu0 0
      %1081 = vmatmul.mubr.bf16.gmra.mrb[0].mxu0 %v795
      %v1082 = vpop.f32.mrb[0].mxu0
      %v1083 = vadd.f32 0.0, %v1082
      %v1084 = vpop.f32.mrb[0].mxu0
      %v1085 = vpop.f32.mrb[0].mxu0
      %v1086 = vadd.f32 0.0, %v1085
      %v1087 = vpop.f32.mrb[0].mxu0
      %1088 = vmatprep.mubr.bf16.mxu0 0
      %1089 = vmatmul.mubr.bf16.gmra.mrb[0].mxu0 %v798
      %v1090 = vpop.f32.mrb[0].mxu0
      %v1091 = vadd.f32 0.0, %v1090
      %v1092 = vpop.f32.mrb[0].mxu0
      %v1093 = vpop.f32.mrb[0].mxu0
      %v1094 = vadd.f32 0.0, %v1093
      %v1095 = vpop.f32.mrb[0].mxu0
      %1096 = vmatprep.mubr.bf16.mxu0 0
      %1097 = vmatmul.mubr.bf16.gmra.mrb[0].mxu0 %v801
      %v1098 = vpop.f32.mrb[0].mxu0
      %v1099 = vadd.f32 0.0, %v1098
      %v1100 = vpop.f32.mrb[0].mxu0
      %v1101 = vpop.f32.mrb[0].mxu0
      %v1102 = vadd.f32 0.0, %v1101
      %v1103 = vpop.f32.mrb[0].mxu0
      %1104 = vmatprep.mubr.bf16.mxu0 0
      %1105 = vmatmul.mubr.bf16.gmra.mrb[0].mxu0 %v804
      %v1106 = vpop.f32.mrb[0].mxu0
      %v1107 = vadd.f32 0.0, %v1106
      %v1108 = vpop.f32.mrb[0].mxu0
      %v1109 = vpop.f32.mrb[0].mxu0
      %v1110 = vadd.f32 0.0, %v1109
      %v1111 = vpop.f32.mrb[0].mxu0
      %1112 = vmatprep.mubr.bf16.mxu0 0
      %1113 = vmatmul.mubr.bf16.gmra.mrb[0].mxu0 %v807
      %v1114 = vpop.f32.mrb[0].mxu0
      %v1115 = vadd.f32 0.0, %v1114
      %v1116 = vpop.f32.mrb[0].mxu0
      %v1117 = vpop.f32.mrb[0].mxu0
      %v1118 = vadd.f32 0.0, %v1117
      %v1119 = vpop.f32.mrb[0].mxu0
      %1120 = vmatprep.mubr.bf16.mxu0 0
      %1121 = vmatmul.mubr.bf16.gmra.mrb[0].mxu0 %v810
      %v1122 = vpop.f32.mrb[0].mxu0
      %v1123 = vadd.f32 0.0, %v1122
      %v1124 = vpop.f32.mrb[0].mxu0
      %v1125 = vpop.f32.mrb[0].mxu0
      %v1126 = vadd.f32 0.0, %v1125
      %v1127 = vpop.f32.mrb[0].mxu0
      %1128 = vmatprep.mubr.bf16.mxu0 0
      %1129 = vmatmul.mubr.bf16.gmra.mrb[0].mxu0 %v813
      %v1130 = vpop.f32.mrb[0].mxu0
      %v1131 = vadd.f32 0.0, %v1130
      %v1132 = vpop.f32.mrb[0].mxu0
      %v1133 = vpop.f32.mrb[0].mxu0
      %v1134 = vadd.f32 0.0, %v1133
      %v1135 = vpop.f32.mrb[0].mxu0
      %1136 = vmatprep.mubr.bf16.mxu0 0
      %1137 = vmatmul.mubr.bf16.gmra.mrb[0].mxu0 %v816
      %v1138 = vpop.f32.mrb[0].mxu0
      %v1139 = vadd.f32 0.0, %v1138
      %v1140 = vpop.f32.mrb[0].mxu0
      %v1141 = vpop.f32.mrb[0].mxu0
      %v1142 = vadd.f32 0.0, %v1141
      %v1143 = vpop.f32.mrb[0].mxu0
      %1144 = vmatprep.mubr.bf16.mxu0 0
      %1145 = vmatmul.mubr.bf16.gmra.mrb[0].mxu0 %v819
      %v1146 = vpop.f32.mrb[0].mxu0
      %v1147 = vadd.f32 0.0, %v1146
      %v1148 = vpop.f32.mrb[0].mxu0
      %v1149 = vpop.f32.mrb[0].mxu0
      %v1150 = vadd.f32 0.0, %v1149
      %v1151 = vpop.f32.mrb[0].mxu0
      %1152 = vmatprep.mubr.bf16.mxu0 0
      %1153 = vmatmul.mubr.bf16.gmra.mrb[0].mxu0 %v822
      %v1154 = vpop.f32.mrb[0].mxu0
      %v1155 = vadd.f32 0.0, %v1154
      %v1156 = vpop.f32.mrb[0].mxu0
      %v1157 = vpop.f32.mrb[0].mxu0
      %v1158 = vadd.f32 0.0, %v1157
      %v1159 = vpop.f32.mrb[0].mxu0
      %1160 = vmatprep.mubr.bf16.mxu0 0
      %1161 = vmatmul.mubr.bf16.gmra.mrb[0].mxu0 %v825
      %v1162 = vpop.f32.mrb[0].mxu0
      %v1163 = vadd.f32 0.0, %v1162
      %v1164 = vpop.f32.mrb[0].mxu0
      %v1165 = vpop.f32.mrb[0].mxu0
      %v1166 = vadd.f32 0.0, %v1165
      %v1167 = vpop.f32.mrb[0].mxu0
      %1168 = vmatprep.mubr.bf16.mxu0 0
      %1169 = vmatmul.mubr.bf16.gmra.mrb[0].mxu0 %v828
      %v1170 = vpop.f32.mrb[0].mxu0
      %v1171 = vadd.f32 0.0, %v1170
      %v1172 = vpop.f32.mrb[0].mxu0
      %v1173 = vpop.f32.mrb[0].mxu0
      %v1174 = vadd.f32 0.0, %v1173
      %v1175 = vpop.f32.mrb[0].mxu0
      %1176 = vmatprep.mubr.bf16.mxu0 0
      %1177 = vmatmul.mubr.bf16.gmra.mrb[0].mxu0 %v831
      %v1178 = vpop.f32.mrb[0].mxu0
      %v1179 = vadd.f32 0.0, %v1178
      %v1180 = vpop.f32.mrb[0].mxu0
      %v1181 = vpop.f32.mrb[0].mxu0
      %v1182 = vadd.f32 0.0, %v1181
      %v1183 = vpop.f32.mrb[0].mxu0
      %1184 = vmatprep.mubr.bf16.mxu0 0
      %1185 = vmatmul.mubr.bf16.gmra.mrb[0].mxu0 %v834
      %v1186 = vpop.f32.mrb[0].mxu0
      %v1187 = vadd.f32 0.0, %v1186
      %v1188 = vpop.f32.mrb[0].mxu0
      %v1189 = vpop.f32.mrb[0].mxu0
      %v1190 = vadd.f32 0.0, %v1189
      %v1191 = vpop.f32.mrb[0].mxu0
      %1192 = vmatprep.mubr.bf16.mxu0 0
      %1193 = vmatmul.mubr.bf16.gmra.mrb[0].mxu0 %v837
      %v1194 = vpop.f32.mrb[0].mxu0
      %v1195 = vadd.f32 0.0, %v1194
      %v1196 = vpop.f32.mrb[0].mxu0
      %v1197 = vpop.f32.mrb[0].mxu0
      %v1198 = vadd.f32 0.0, %v1197
      %v1199 = vpop.f32.mrb[0].mxu0
      %1200 = vmatprep.mubr.bf16.mxu0 0
      %1201 = vmatmul.mubr.bf16.gmra.mrb[0].mxu0 %v840
      %v1202 = vpop.f32.mrb[0].mxu0
      %v1203 = vadd.f32 0.0, %v1202
      %v1204 = vpop.f32.mrb[0].mxu0
      %v1205 = vpop.f32.mrb[0].mxu0
      %v1206 = vadd.f32 0.0, %v1205
      %v1207 = vpop.f32.mrb[0].mxu0
      %1208 = vmatprep.mubr.bf16.mxu0 0
      %1209 = vmatmul.mubr.bf16.gmra.mrb[0].mxu0 %v843
      %v1210 = vpop.f32.mrb[0].mxu0
      %v1211 = vadd.f32 0.0, %v1210
      %v1212 = vpop.f32.mrb[0].mxu0
      %v1213 = vpop.f32.mrb[0].mxu0
      %v1214 = vadd.f32 0.0, %v1213
      %v1215 = vpop.f32.mrb[0].mxu0
      %1216 = vmatprep.mubr.bf16.mxu0 0
      %1217 = vmatmul.mubr.bf16.gmra.mrb[0].mxu0 %v846
      %v1218 = vpop.f32.mrb[0].mxu0
      %v1219 = vadd.f32 0.0, %v1218
      %v1220 = vpop.f32.mrb[0].mxu0
      %v1221 = vpop.f32.mrb[0].mxu0
      %v1222 = vadd.f32 0.0, %v1221
      %v1223 = vpop.f32.mrb[0].mxu0
      %1224 = vmatprep.mubr.bf16.mxu0 0
      %1225 = vmatmul.mubr.bf16.gmra.mrb[0].mxu0 %v849
      %v1226 = vpop.f32.mrb[0].mxu0
      %v1227 = vadd.f32 0.0, %v1226
      %v1228 = vpop.f32.mrb[0].mxu0
      %v1229 = vpop.f32.mrb[0].mxu0
      %v1230 = vadd.f32 0.0, %v1229
      %v1231 = vpop.f32.mrb[0].mxu0
      %1232 = vmatprep.mubr.bf16.mxu0 0
      %1233 = vmatmul.mubr.bf16.gmra.mrb[0].mxu0 %v852
      %v1234 = vpop.f32.mrb[0].mxu0
      %v1235 = vadd.f32 0.0, %v1234
      %v1236 = vpop.f32.mrb[0].mxu0
      %v1237 = vpop.f32.mrb[0].mxu0
      %v1238 = vadd.f32 0.0, %v1237
      %v1239 = vpop.f32.mrb[0].mxu0
      %1240 = vmatprep.mubr.bf16.mxu0 0
      %1241 = vmatmul.mubr.bf16.gmra.mrb[0].mxu0 %v855
      %v1242 = vpop.f32.mrb[0].mxu0
      %v1243 = vadd.f32 0.0, %v1242
      %v1244 = vpop.f32.mrb[0].mxu0
      %v1245 = vpop.f32.mrb[0].mxu0
      %v1246 = vadd.f32 0.0, %v1245
      %v1247 = vpop.f32.mrb[0].mxu0
      %1248 = vmatprep.mubr.bf16.mxu0 0
      %1249 = vmatmul.mubr.bf16.gmra.mrb[0].mxu0 %v858
      %v1250 = vpop.f32.mrb[0].mxu0
      %v1251 = vadd.f32 0.0, %v1250
      %v1252 = vpop.f32.mrb[0].mxu0
      %v1253 = vpop.f32.mrb[0].mxu0
      %v1254 = vadd.f32 0.0, %v1253
      %v1255 = vpop.f32.mrb[0].mxu0
      %1256 = vmatprep.mubr.bf16.mxu0 0
      %1257 = vmatmul.mubr.bf16.gmra.mrb[0].mxu0 %v861
      %v1258 = vpop.f32.mrb[0].mxu0
      %v1259 = vadd.f32 0.0, %v1258
      %v1260 = vpop.f32.mrb[0].mxu0
      %v1261 = vpop.f32.mrb[0].mxu0
      %v1262 = vadd.f32 0.0, %v1261
      %v1263 = vpop.f32.mrb[0].mxu0
      %1264 = vmatprep.mubr.bf16.mxu0 0
      %1265 = vmatmul.mubr.bf16.gmra.mrb[0].mxu0 %v864
      %v1266 = vpop.f32.mrb[0].mxu0
      %v1267 = vadd.f32 0.0, %v1266
      %v1268 = vpop.f32.mrb[0].mxu0
      %v1269 = vpop.f32.mrb[0].mxu0
      %v1270 = vadd.f32 0.0, %v1269
      %v1271 = vpop.f32.mrb[0].mxu0
      %1272 = vmatprep.mubr.bf16.mxu0 0
      %1273 = vmatmul.mubr.bf16.gmra.mrb[0].mxu0 %v867
      %v1274 = vpop.f32.mrb[0].mxu0
      %v1275 = vadd.f32 0.0, %v1274
      %v1276 = vpop.f32.mrb[0].mxu0
      %v1277 = vpop.f32.mrb[0].mxu0
      %v1278 = vadd.f32 0.0, %v1277
      %v1279 = vpop.f32.mrb[0].mxu0
      %1280 = vmatprep.mubr.bf16.mxu0 0
      %1281 = vmatmul.mubr.bf16.gmra.mrb[0].mxu0 %v870
      %v1282 = vpop.f32.mrb[0].mxu0
      %v1283 = vadd.f32 0.0, %v1282
      %v1284 = vpop.f32.mrb[0].mxu0
      %v1285 = vpop.f32.mrb[0].mxu0
      %v1286 = vadd.f32 0.0, %v1285
      %v1287 = vpop.f32.mrb[0].mxu0
      %1288 = vmatprep.mubr.bf16.mxu0 0
      %1289 = vmatmul.mubr.bf16.gmra.mrb[0].mxu0 %v873
      %v1290 = vpop.f32.mrb[0].mxu0
      %v1291 = vadd.f32 0.0, %v1290
      %v1292 = vpop.f32.mrb[0].mxu0
      %v1293 = vpop.f32.mrb[0].mxu0
      %v1294 = vadd.f32 0.0, %v1293
      %v1295 = vpop.f32.mrb[0].mxu0
      %1296 = vmatprep.mubr.bf16.mxu0 0
      %1297 = vmatmul.mubr.bf16.gmra.mrb[0].mxu0 %v876
      %v1298 = vpop.f32.mrb[0].mxu0
      %v1299 = vadd.f32 0.0, %v1298
      %v1300 = vpop.f32.mrb[0].mxu0
      %v1301 = vpop.f32.mrb[0].mxu0
      %v1302 = vadd.f32 0.0, %v1301
      %v1303 = vpop.f32.mrb[0].mxu0
      %1304 = vmatprep.mubr.bf16.mxu0 0
      %1305 = vmatmul.mubr.bf16.gmra.mrb[0].mxu0 %v879
      %v1306 = vpop.f32.mrb[0].mxu0
      %v1307 = vadd.f32 0.0, %v1306
      %v1308 = vpop.f32.mrb[0].mxu0
      %v1309 = vpop.f32.mrb[0].mxu0
      %v1310 = vadd.f32 0.0, %v1309
      %v1311 = vpop.f32.mrb[0].mxu0
      %1312 = vmatprep.mubr.bf16.mxu0 0
      %1313 = vmatmul.mubr.bf16.gmra.mrb[0].mxu0 %v882
      %v1314 = vpop.f32.mrb[0].mxu0
      %v1315 = vadd.f32 0.0, %v1314
      %v1316 = vpop.f32.mrb[0].mxu0
      %v1317 = vpop.f32.mrb[0].mxu0
      %v1318 = vadd.f32 0.0, %v1317
      %v1319 = vpop.f32.mrb[0].mxu0
      %1320 = vmatprep.mubr.bf16.mxu0 0
      %1321 = vmatmul.mubr.bf16.gmra.mrb[0].mxu0 %v885
      %v1322 = vpop.f32.mrb[0].mxu0
      %v1323 = vadd.f32 0.0, %v1322
      %v1324 = vpop.f32.mrb[0].mxu0
      %v1325 = vpop.f32.mrb[0].mxu0
      %v1326 = vadd.f32 0.0, %v1325
      %v1327 = vpop.f32.mrb[0].mxu0
      %1328 = vmatprep.mubr.bf16.mxu0 0
      %1329 = vmatmul.mubr.bf16.gmra.mrb[0].mxu0 %v888
      %v1330 = vpop.f32.mrb[0].mxu0
      %v1331 = vadd.f32 0.0, %v1330
      %v1332 = vpop.f32.mrb[0].mxu0
      %v1333 = vpop.f32.mrb[0].mxu0
      %v1334 = vadd.f32 0.0, %v1333
      %v1335 = vpop.f32.mrb[0].mxu0
      %1336 = vmatprep.mubr.bf16.mxu0 0
      %1337 = vmatmul.mubr.bf16.gmra.mrb[0].mxu0 %v891
      %v1338 = vpop.f32.mrb[0].mxu0
      %v1339 = vadd.f32 0.0, %v1338
      %v1340 = vpop.f32.mrb[0].mxu0
      %v1341 = vpop.f32.mrb[0].mxu0
      %v1342 = vadd.f32 0.0, %v1341
      %v1343 = vpop.f32.mrb[0].mxu0
      %1344 = vmatprep.mubr.bf16.mxu0 0
      %1345 = vmatmul.mubr.bf16.gmra.mrb[0].mxu0 %v894
      %v1346 = vpop.f32.mrb[0].mxu0
      %v1347 = vadd.f32 0.0, %v1346
      %v1348 = vpop.f32.mrb[0].mxu0
      %v1349 = vpop.f32.mrb[0].mxu0
      %v1350 = vadd.f32 0.0, %v1349
      %v1351 = vpop.f32.mrb[0].mxu0
      %1352 = vmatprep.mubr.bf16.mxu0 0
      %1353 = vmatmul.mubr.bf16.gmra.mrb[0].mxu0 %v897
      %v1354 = vpop.f32.mrb[0].mxu0
      %v1355 = vadd.f32 0.0, %v1354
      %v1356 = vpop.f32.mrb[0].mxu0
      %v1357 = vpop.f32.mrb[0].mxu0
      %v1358 = vadd.f32 0.0, %v1357
      %v1359 = vpop.f32.mrb[0].mxu0
      %1360 = vmatprep.mubr.bf16.mxu0 0
      %1361 = vmatmul.mubr.bf16.gmra.mrb[0].mxu0 %v900
      %v1362 = vpop.f32.mrb[0].mxu0
      %v1363 = vadd.f32 0.0, %v1362
      %v1364 = vpop.f32.mrb[0].mxu0
      %v1365 = vpop.f32.mrb[0].mxu0
      %v1366 = vadd.f32 0.0, %v1365
      %v1367 = vpop.f32.mrb[0].mxu0
      %1368 = vmatprep.mubr.bf16.mxu0 0
      %1369 = vmatmul.mubr.bf16.gmra.mrb[0].mxu0 %v903
      %v1370 = vpop.f32.mrb[0].mxu0
      %v1371 = vadd.f32 0.0, %v1370
      %v1372 = vpop.f32.mrb[0].mxu0
      %v1373 = vpop.f32.mrb[0].mxu0
      %v1374 = vadd.f32 0.0, %v1373
      %v1375 = vpop.f32.mrb[0].mxu0
      %1376 = vmatprep.mubr.bf16.mxu0 0
      %1377 = vmatmul.mubr.bf16.gmra.mrb[0].mxu0 %v906
      %v1378 = vpop.f32.mrb[0].mxu0
      %v1379 = vadd.f32 0.0, %v1378
      %v1380 = vpop.f32.mrb[0].mxu0
      %v1381 = vpop.f32.mrb[0].mxu0
      %v1382 = vadd.f32 0.0, %v1381
      %v1383 = vpop.f32.mrb[0].mxu0
      %1384 = vmatprep.mubr.bf16.mxu0 0
      %1385 = vmatmul.mubr.bf16.gmra.mrb[0].mxu0 %v909
      %v1386 = vpop.f32.mrb[0].mxu0
      %v1387 = vadd.f32 0.0, %v1386
      %v1388 = vpop.f32.mrb[0].mxu0
      %v1389 = vpop.f32.mrb[0].mxu0
      %v1390 = vadd.f32 0.0, %v1389
      %v1391 = vpop.f32.mrb[0].mxu0
      %1392 = vmatprep.mubr.bf16.mxu0 0
      %1393 = vmatmul.mubr.bf16.gmra.mrb[0].mxu0 %v912
      %v1394 = vpop.f32.mrb[0].mxu0
      %v1395 = vadd.f32 0.0, %v1394
      %v1396 = vpop.f32.mrb[0].mxu0
      %v1397 = vpop.f32.mrb[0].mxu0
      %v1398 = vadd.f32 0.0, %v1397
      %v1399 = vpop.f32.mrb[0].mxu0
      %1400 = vmatprep.mubr.bf16.mxu0 0
      %1401 = vmatmul.mubr.bf16.gmra.mrb[0].mxu0 %v915
      %v1402 = vpop.f32.mrb[0].mxu0
      %v1403 = vadd.f32 0.0, %v1402
      %v1404 = vpop.f32.mrb[0].mxu0
      %v1405 = vpop.f32.mrb[0].mxu0
      %v1406 = vadd.f32 0.0, %v1405
      %v1407 = vpop.f32.mrb[0].mxu0
      %1408 = vmatprep.mubr.bf16.mxu0 0
      %1409 = vmatmul.mubr.bf16.gmra.mrb[0].mxu0 %v918
      %v1410 = vpop.f32.mrb[0].mxu0
      %v1411 = vadd.f32 0.0, %v1410
      %v1412 = vpop.f32.mrb[0].mxu0
      %v1413 = vpop.f32.mrb[0].mxu0
      %v1414 = vadd.f32 0.0, %v1413
      %v1415 = vpop.f32.mrb[0].mxu0
      %1416 = vmatprep.mubr.bf16.mxu0 0
      %1417 = vmatmul.mubr.bf16.gmra.mrb[0].mxu0 %v921
      %v1418 = vpop.f32.mrb[0].mxu0
      %v1419 = vadd.f32 0.0, %v1418
      %v1420 = vpop.f32.mrb[0].mxu0
      %v1421 = vpop.f32.mrb[0].mxu0
      %v1422 = vadd.f32 0.0, %v1421
      %v1423 = vpop.f32.mrb[0].mxu0
      %1424 = vmatprep.mubr.bf16.mxu0 0
      %1425 = vmatmul.mubr.bf16.gmra.mrb[0].mxu0 %v924
      %v1426 = vpop.f32.mrb[0].mxu0
      %v1427 = vadd.f32 0.0, %v1426
      %v1428 = vpop.f32.mrb[0].mxu0
      %v1429 = vpop.f32.mrb[0].mxu0
      %v1430 = vadd.f32 0.0, %v1429
      %v1431 = vpop.f32.mrb[0].mxu0
      %1432 = vmatprep.mubr.bf16.mxu0 0
      %1433 = vmatmul.mubr.bf16.gmra.mrb[0].mxu0 %v927
      %v1434 = vpop.f32.mrb[0].mxu0
      %v1435 = vadd.f32 0.0, %v1434
      %v1436 = vpop.f32.mrb[0].mxu0
      %v1437 = vpop.f32.mrb[0].mxu0
      %v1438 = vadd.f32 0.0, %v1437
      %v1439 = vpop.f32.mrb[0].mxu0
      %1440 = vmatprep.mubr.bf16.mxu0 0
      %1441 = vmatmul.mubr.bf16.gmra.mrb[0].mxu0 %v930
      %v1442 = vpop.f32.mrb[0].mxu0
      %v1443 = vadd.f32 0.0, %v1442
      %v1444 = vpop.f32.mrb[0].mxu0
      %v1445 = vpop.f32.mrb[0].mxu0
      %v1446 = vadd.f32 0.0, %v1445
      %v1447 = vpop.f32.mrb[0].mxu0
      %1448 = vmatprep.mubr.bf16.mxu0 0
      %1449 = vmatmul.mubr.bf16.gmra.mrb[0].mxu0 %v933
      %v1450 = vpop.f32.mrb[0].mxu0
      %v1451 = vadd.f32 0.0, %v1450
      %v1452 = vpop.f32.mrb[0].mxu0
      %v1453 = vpop.f32.mrb[0].mxu0
      %v1454 = vadd.f32 0.0, %v1453
      %v1455 = vpop.f32.mrb[0].mxu0
      %1456 = vmatprep.mubr.bf16.mxu0 0
      %1457 = vmatmul.mubr.bf16.gmra.mrb[0].mxu0 %v936
      %v1458 = vpop.f32.mrb[0].mxu0
      %v1459 = vadd.f32 0.0, %v1458
      %v1460 = vpop.f32.mrb[0].mxu0
      %v1461 = vpop.f32.mrb[0].mxu0
      %v1462 = vadd.f32 0.0, %v1461
      %v1463 = vpop.f32.mrb[0].mxu0
      %1464 = vmatprep.mubr.bf16.mxu0 0
      %1465 = vmatmul.mubr.bf16.gmra.mrb[0].mxu0 %v939
      %v1466 = vpop.f32.mrb[0].mxu0
      %v1467 = vadd.f32 0.0, %v1466
      %v1468 = vpop.f32.mrb[0].mxu0
      %v1469 = vpop.f32.mrb[0].mxu0
      %v1470 = vadd.f32 0.0, %v1469
      %v1471 = vpop.f32.mrb[0].mxu0
      %1472 = vmatprep.mubr.bf16.mxu0 0
      %1473 = vmatmul.mubr.bf16.gmra.mrb[0].mxu0 %v942
      %v1474 = vpop.f32.mrb[0].mxu0
      %v1475 = vadd.f32 0.0, %v1474
      %v1476 = vpop.f32.mrb[0].mxu0
      %v1477 = vpop.f32.mrb[0].mxu0
      %v1478 = vadd.f32 0.0, %v1477
      %v1479 = vpop.f32.mrb[0].mxu0
      %1480 = vmatprep.mubr.bf16.mxu0 0
      %1481 = vmatmul.mubr.bf16.gmra.mrb[0].mxu0 %v945
      %v1482 = vpop.f32.mrb[0].mxu0
      %v1483 = vadd.f32 0.0, %v1482
      %v1484 = vpop.f32.mrb[0].mxu0
      %v1485 = vpop.f32.mrb[0].mxu0
      %v1486 = vadd.f32 0.0, %v1485
      %v1487 = vpop.f32.mrb[0].mxu0
      %1488 = vmatprep.mubr.bf16.mxu0 0
      %1489 = vmatmul.mubr.bf16.gmra.mrb[0].mxu0 %v948
      %v1490 = vpop.f32.mrb[0].mxu0
      %v1491 = vadd.f32 0.0, %v1490
      %v1492 = vpop.f32.mrb[0].mxu0
      %v1493 = vpop.f32.mrb[0].mxu0
      %v1494 = vadd.f32 0.0, %v1493
      %v1495 = vpop.f32.mrb[0].mxu0
      %1496 = vmatprep.mubr.bf16.mxu0 0
      %1497 = vmatmul.mubr.bf16.gmra.mrb[0].mxu0 %v951
      %v1498 = vpop.f32.mrb[0].mxu0
      %v1499 = vadd.f32 0.0, %v1498
      %v1500 = vpop.f32.mrb[0].mxu0
      %v1501 = vpop.f32.mrb[0].mxu0
      %v1502 = vadd.f32 0.0, %v1501
      %v1503 = vpop.f32.mrb[0].mxu0
      %1504 = vdwg.mxu0
      %v1505 = vld [vmem:[%s2] sm:$0x1]
      %v1507 = vlaneseq
      %v1508 = vshrl.u32 %v1507, 7
      %v1509 = vsub.s32 0, %v1508
      %v1510 = vrot.slane %v1505, %v1509
      %v1512 = vmul.f32 %v995, %v1510
      %v1513 = vmul.f32 %v998, %v1510
      %v1514 = vmul.f32 %v1003, %v1510
      %v1515 = vmul.f32 %v1006, %v1510
      %v1516 = vmul.f32 %v1011, %v1510
      %v1517 = vmul.f32 %v1014, %v1510
      %v1518 = vmul.f32 %v1019, %v1510
      %v1519 = vmul.f32 %v1022, %v1510
      %v1520 = vmul.f32 %v1027, %v1510
      %v1521 = vmul.f32 %v1030, %v1510
      %v1522 = vmul.f32 %v1035, %v1510
      %v1523 = vmul.f32 %v1038, %v1510
      %v1524 = vmul.f32 %v1043, %v1510
      %v1525 = vmul.f32 %v1046, %v1510
      %v1526 = vmul.f32 %v1051, %v1510
      %v1527 = vmul.f32 %v1054, %v1510
      %v1528 = vmul.f32 %v1059, %v1510
      %v1529 = vmul.f32 %v1062, %v1510
      %v1530 = vmul.f32 %v1067, %v1510
      %v1531 = vmul.f32 %v1070, %v1510
      %v1532 = vmul.f32 %v1075, %v1510
      %v1533 = vmul.f32 %v1078, %v1510
      %v1534 = vmul.f32 %v1083, %v1510
      %v1535 = vmul.f32 %v1086, %v1510
      %v1536 = vmul.f32 %v1091, %v1510
      %v1537 = vmul.f32 %v1094, %v1510
      %v1538 = vmul.f32 %v1099, %v1510
      %v1539 = vmul.f32 %v1102, %v1510
      %v1540 = vmul.f32 %v1107, %v1510
      %v1541 = vmul.f32 %v1110, %v1510
      %v1542 = vmul.f32 %v1115, %v1510
      %v1543 = vmul.f32 %v1118, %v1510
      %v1544 = vmul.f32 %v1123, %v1510
      %v1545 = vmul.f32 %v1126, %v1510
      %v1546 = vmul.f32 %v1131, %v1510
      %v1547 = vmul.f32 %v1134, %v1510
      %v1548 = vmul.f32 %v1139, %v1510
      %v1549 = vmul.f32 %v1142, %v1510
      %v1550 = vmul.f32 %v1147, %v1510
      %v1551 = vmul.f32 %v1150, %v1510
      %v1552 = vmul.f32 %v1155, %v1510
      %v1553 = vmul.f32 %v1158, %v1510
      %v1554 = vmul.f32 %v1163, %v1510
      %v1555 = vmul.f32 %v1166, %v1510
      %v1556 = vmul.f32 %v1171, %v1510
      %v1557 = vmul.f32 %v1174, %v1510
      %v1558 = vmul.f32 %v1179, %v1510
      %v1559 = vmul.f32 %v1182, %v1510
      %v1560 = vmul.f32 %v1187, %v1510
      %v1561 = vmul.f32 %v1190, %v1510
      %v1562 = vmul.f32 %v1195, %v1510
      %v1563 = vmul.f32 %v1198, %v1510
      %v1564 = vmul.f32 %v1203, %v1510
      %v1565 = vmul.f32 %v1206, %v1510
      %v1566 = vmul.f32 %v1211, %v1510
      %v1567 = vmul.f32 %v1214, %v1510
      %v1568 = vmul.f32 %v1219, %v1510
      %v1569 = vmul.f32 %v1222, %v1510
      %v1570 = vmul.f32 %v1227, %v1510
      %v1571 = vmul.f32 %v1230, %v1510
      %v1572 = vmul.f32 %v1235, %v1510
      %v1573 = vmul.f32 %v1238, %v1510
      %v1574 = vmul.f32 %v1243, %v1510
      %v1575 = vmul.f32 %v1246, %v1510
      %v1576 = vmul.f32 %v1251, %v1510
      %v1577 = vmul.f32 %v1254, %v1510
      %v1578 = vmul.f32 %v1259, %v1510
      %v1579 = vmul.f32 %v1262, %v1510
      %v1580 = vmul.f32 %v1267, %v1510
      %v1581 = vmul.f32 %v1270, %v1510
      %v1582 = vmul.f32 %v1275, %v1510
      %v1583 = vmul.f32 %v1278, %v1510
      %v1584 = vmul.f32 %v1283, %v1510
      %v1585 = vmul.f32 %v1286, %v1510
      %v1586 = vmul.f32 %v1291, %v1510
      %v1587 = vmul.f32 %v1294, %v1510
      %v1588 = vmul.f32 %v1299, %v1510
      %v1589 = vmul.f32 %v1302, %v1510
      %v1590 = vmul.f32 %v1307, %v1510
      %v1591 = vmul.f32 %v1310, %v1510
      %v1592 = vmul.f32 %v1315, %v1510
      %v1593 = vmul.f32 %v1318, %v1510
      %v1594 = vmul.f32 %v1323, %v1510
      %v1595 = vmul.f32 %v1326, %v1510
      %v1596 = vmul.f32 %v1331, %v1510
      %v1597 = vmul.f32 %v1334, %v1510
      %v1598 = vmul.f32 %v1339, %v1510
      %v1599 = vmul.f32 %v1342, %v1510
      %v1600 = vmul.f32 %v1347, %v1510
      %v1601 = vmul.f32 %v1350, %v1510
      %v1602 = vmul.f32 %v1355, %v1510
      %v1603 = vmul.f32 %v1358, %v1510
      %v1604 = vmul.f32 %v1363, %v1510
      %v1605 = vmul.f32 %v1366, %v1510
      %v1606 = vmul.f32 %v1371, %v1510
      %v1607 = vmul.f32 %v1374, %v1510
      %v1608 = vmul.f32 %v1379, %v1510
      %v1609 = vmul.f32 %v1382, %v1510
      %v1610 = vmul.f32 %v1387, %v1510
      %v1611 = vmul.f32 %v1390, %v1510
      %v1612 = vmul.f32 %v1395, %v1510
      %v1613 = vmul.f32 %v1398, %v1510
      %v1614 = vmul.f32 %v1403, %v1510
      %v1615 = vmul.f32 %v1406, %v1510
      %v1616 = vmul.f32 %v1411, %v1510
      %v1617 = vmul.f32 %v1414, %v1510
      %v1618 = vmul.f32 %v1419, %v1510
      %v1619 = vmul.f32 %v1422, %v1510
      %v1620 = vmul.f32 %v1427, %v1510
      %v1621 = vmul.f32 %v1430, %v1510
      %v1622 = vmul.f32 %v1435, %v1510
      %v1623 = vmul.f32 %v1438, %v1510
      %v1624 = vmul.f32 %v1443, %v1510
      %v1625 = vmul.f32 %v1446, %v1510
      %v1626 = vmul.f32 %v1451, %v1510
      %v1627 = vmul.f32 %v1454, %v1510
      %v1628 = vmul.f32 %v1459, %v1510
      %v1629 = vmul.f32 %v1462, %v1510
      %v1630 = vmul.f32 %v1467, %v1510
      %v1631 = vmul.f32 %v1470, %v1510
      %v1632 = vmul.f32 %v1475, %v1510
      %v1633 = vmul.f32 %v1478, %v1510
      %v1634 = vmul.f32 %v1483, %v1510
      %v1635 = vmul.f32 %v1486, %v1510
      %v1636 = vmul.f32 %v1491, %v1510
      %v1637 = vmul.f32 %v1494, %v1510
      %v1638 = vmul.f32 %v1499, %v1510
      %v1639 = vmul.f32 %v1502, %v1510
      %v1640 = vld [vmem:[%s3] sm:$0x1]
      %v1642 = vlaneseq
      %v1643 = vshrl.u32 %v1642, 7
      %v1644 = vsub.s32 0, %v1643
      %v1645 = vrot.slane %v1640, %v1644
      %v1647 = vadd.f32 %v1512, %v1645
      %v1648 = vadd.f32 %v1513, %v1645
      %v1649 = vadd.f32 %v1514, %v1645
      %v1650 = vadd.f32 %v1515, %v1645
      %v1651 = vadd.f32 %v1516, %v1645
      %v1652 = vadd.f32 %v1517, %v1645
      %v1653 = vadd.f32 %v1518, %v1645
      %v1654 = vadd.f32 %v1519, %v1645
      %v1655 = vadd.f32 %v1520, %v1645
      %v1656 = vadd.f32 %v1521, %v1645
      %v1657 = vadd.f32 %v1522, %v1645
      %v1658 = vadd.f32 %v1523, %v1645
      %v1659 = vadd.f32 %v1524, %v1645
      %v1660 = vadd.f32 %v1525, %v1645
      %v1661 = vadd.f32 %v1526, %v1645
      %v1662 = vadd.f32 %v1527, %v1645
      %v1663 = vadd.f32 %v1528, %v1645
      %v1664 = vadd.f32 %v1529, %v1645
      %v1665 = vadd.f32 %v1530, %v1645
      %v1666 = vadd.f32 %v1531, %v1645
      %v1667 = vadd.f32 %v1532, %v1645
      %v1668 = vadd.f32 %v1533, %v1645
      %v1669 = vadd.f32 %v1534, %v1645
      %v1670 = vadd.f32 %v1535, %v1645
      %v1671 = vadd.f32 %v1536, %v1645
      %v1672 = vadd.f32 %v1537, %v1645
      %v1673 = vadd.f32 %v1538, %v1645
      %v1674 = vadd.f32 %v1539, %v1645
      %v1675 = vadd.f32 %v1540, %v1645
      %v1676 = vadd.f32 %v1541, %v1645
      %v1677 = vadd.f32 %v1542, %v1645
      %v1678 = vadd.f32 %v1543, %v1645
      %v1679 = vadd.f32 %v1544, %v1645
      %v1680 = vadd.f32 %v1545, %v1645
      %v1681 = vadd.f32 %v1546, %v1645
      %v1682 = vadd.f32 %v1547, %v1645
      %v1683 = vadd.f32 %v1548, %v1645
      %v1684 = vadd.f32 %v1549, %v1645
      %v1685 = vadd.f32 %v1550, %v1645
      %v1686 = vadd.f32 %v1551, %v1645
      %v1687 = vadd.f32 %v1552, %v1645
      %v1688 = vadd.f32 %v1553, %v1645
      %v1689 = vadd.f32 %v1554, %v1645
      %v1690 = vadd.f32 %v1555, %v1645
      %v1691 = vadd.f32 %v1556, %v1645
      %v1692 = vadd.f32 %v1557, %v1645
      %v1693 = vadd.f32 %v1558, %v1645
      %v1694 = vadd.f32 %v1559, %v1645
      %v1695 = vadd.f32 %v1560, %v1645
      %v1696 = vadd.f32 %v1561, %v1645
      %v1697 = vadd.f32 %v1562, %v1645
      %v1698 = vadd.f32 %v1563, %v1645
      %v1699 = vadd.f32 %v1564, %v1645
      %v1700 = vadd.f32 %v1565, %v1645
      %v1701 = vadd.f32 %v1566, %v1645
      %v1702 = vadd.f32 %v1567, %v1645
      %v1703 = vadd.f32 %v1568, %v1645
      %v1704 = vadd.f32 %v1569, %v1645
      %v1705 = vadd.f32 %v1570, %v1645
      %v1706 = vadd.f32 %v1571, %v1645
      %v1707 = vadd.f32 %v1572, %v1645
      %v1708 = vadd.f32 %v1573, %v1645
      %v1709 = vadd.f32 %v1574, %v1645
      %v1710 = vadd.f32 %v1575, %v1645
      %v1711 = vadd.f32 %v1576, %v1645
      %v1712 = vadd.f32 %v1577, %v1645
      %v1713 = vadd.f32 %v1578, %v1645
      %v1714 = vadd.f32 %v1579, %v1645
      %v1715 = vadd.f32 %v1580, %v1645
      %v1716 = vadd.f32 %v1581, %v1645
      %v1717 = vadd.f32 %v1582, %v1645
      %v1718 = vadd.f32 %v1583, %v1645
      %v1719 = vadd.f32 %v1584, %v1645
      %v1720 = vadd.f32 %v1585, %v1645
      %v1721 = vadd.f32 %v1586, %v1645
      %v1722 = vadd.f32 %v1587, %v1645
      %v1723 = vadd.f32 %v1588, %v1645
      %v1724 = vadd.f32 %v1589, %v1645
      %v1725 = vadd.f32 %v1590, %v1645
      %v1726 = vadd.f32 %v1591, %v1645
      %v1727 = vadd.f32 %v1592, %v1645
      %v1728 = vadd.f32 %v1593, %v1645
      %v1729 = vadd.f32 %v1594, %v1645
      %v1730 = vadd.f32 %v1595, %v1645
      %v1731 = vadd.f32 %v1596, %v1645
      %v1732 = vadd.f32 %v1597, %v1645
      %v1733 = vadd.f32 %v1598, %v1645
      %v1734 = vadd.f32 %v1599, %v1645
      %v1735 = vadd.f32 %v1600, %v1645
      %v1736 = vadd.f32 %v1601, %v1645
      %v1737 = vadd.f32 %v1602, %v1645
      %v1738 = vadd.f32 %v1603, %v1645
      %v1739 = vadd.f32 %v1604, %v1645
      %v1740 = vadd.f32 %v1605, %v1645
      %v1741 = vadd.f32 %v1606, %v1645
      %v1742 = vadd.f32 %v1607, %v1645
      %v1743 = vadd.f32 %v1608, %v1645
      %v1744 = vadd.f32 %v1609, %v1645
      %v1745 = vadd.f32 %v1610, %v1645
      %v1746 = vadd.f32 %v1611, %v1645
      %v1747 = vadd.f32 %v1612, %v1645
      %v1748 = vadd.f32 %v1613, %v1645
      %v1749 = vadd.f32 %v1614, %v1645
      %v1750 = vadd.f32 %v1615, %v1645
      %v1751 = vadd.f32 %v1616, %v1645
      %v1752 = vadd.f32 %v1617, %v1645
      %v1753 = vadd.f32 %v1618, %v1645
      %v1754 = vadd.f32 %v1619, %v1645
      %v1755 = vadd.f32 %v1620, %v1645
      %v1756 = vadd.f32 %v1621, %v1645
      %v1757 = vadd.f32 %v1622, %v1645
      %v1758 = vadd.f32 %v1623, %v1645
      %v1759 = vadd.f32 %v1624, %v1645
      %v1760 = vadd.f32 %v1625, %v1645
      %v1761 = vadd.f32 %v1626, %v1645
      %v1762 = vadd.f32 %v1627, %v1645
      %v1763 = vadd.f32 %v1628, %v1645
      %v1764 = vadd.f32 %v1629, %v1645
      %v1765 = vadd.f32 %v1630, %v1645
      %v1766 = vadd.f32 %v1631, %v1645
      %v1767 = vadd.f32 %v1632, %v1645
      %v1768 = vadd.f32 %v1633, %v1645
      %v1769 = vadd.f32 %v1634, %v1645
      %v1770 = vadd.f32 %v1635, %v1645
      %v1771 = vadd.f32 %v1636, %v1645
      %v1772 = vadd.f32 %v1637, %v1645
      %v1773 = vadd.f32 %v1638, %v1645
      %v1774 = vadd.f32 %v1639, %v1645
      %v1775 = vmax.f32 %v1647, 0.0
      %v1776 = vmax.f32 %v1648, 0.0
      %v1777 = vmax.f32 %v1649, 0.0
      %v1778 = vmax.f32 %v1650, 0.0
      %v1779 = vmax.f32 %v1651, 0.0
      %v1780 = vmax.f32 %v1652, 0.0
      %v1781 = vmax.f32 %v1653, 0.0
      %v1782 = vmax.f32 %v1654, 0.0
      %v1783 = vmax.f32 %v1655, 0.0
      %v1784 = vmax.f32 %v1656, 0.0
      %v1785 = vmax.f32 %v1657, 0.0
      %v1786 = vmax.f32 %v1658, 0.0
      %v1787 = vmax.f32 %v1659, 0.0
      %v1788 = vmax.f32 %v1660, 0.0
      %v1789 = vmax.f32 %v1661, 0.0
      %v1790 = vmax.f32 %v1662, 0.0
      %v1791 = vmax.f32 %v1663, 0.0
      %v1792 = vmax.f32 %v1664, 0.0
      %v1793 = vmax.f32 %v1665, 0.0
      %v1794 = vmax.f32 %v1666, 0.0
      %v1795 = vmax.f32 %v1667, 0.0
      %v1796 = vmax.f32 %v1668, 0.0
      %v1797 = vmax.f32 %v1669, 0.0
      %v1798 = vmax.f32 %v1670, 0.0
      %v1799 = vmax.f32 %v1671, 0.0
      %v1800 = vmax.f32 %v1672, 0.0
      %v1801 = vmax.f32 %v1673, 0.0
      %v1802 = vmax.f32 %v1674, 0.0
      %v1803 = vmax.f32 %v1675, 0.0
      %v1804 = vmax.f32 %v1676, 0.0
      %v1805 = vmax.f32 %v1677, 0.0
      %v1806 = vmax.f32 %v1678, 0.0
      %v1807 = vmax.f32 %v1679, 0.0
      %v1808 = vmax.f32 %v1680, 0.0
      %v1809 = vmax.f32 %v1681, 0.0
      %v1810 = vmax.f32 %v1682, 0.0
      %v1811 = vmax.f32 %v1683, 0.0
      %v1812 = vmax.f32 %v1684, 0.0
      %v1813 = vmax.f32 %v1685, 0.0
      %v1814 = vmax.f32 %v1686, 0.0
      %v1815 = vmax.f32 %v1687, 0.0
      %v1816 = vmax.f32 %v1688, 0.0
      %v1817 = vmax.f32 %v1689, 0.0
      %v1818 = vmax.f32 %v1690, 0.0
      %v1819 = vmax.f32 %v1691, 0.0
      %v1820 = vmax.f32 %v1692, 0.0
      %v1821 = vmax.f32 %v1693, 0.0
      %v1822 = vmax.f32 %v1694, 0.0
      %v1823 = vmax.f32 %v1695, 0.0
      %v1824 = vmax.f32 %v1696, 0.0
      %v1825 = vmax.f32 %v1697, 0.0
      %v1826 = vmax.f32 %v1698, 0.0
      %v1827 = vmax.f32 %v1699, 0.0
      %v1828 = vmax.f32 %v1700, 0.0
      %v1829 = vmax.f32 %v1701, 0.0
      %v1830 = vmax.f32 %v1702, 0.0
      %v1831 = vmax.f32 %v1703, 0.0
      %v1832 = vmax.f32 %v1704, 0.0
      %v1833 = vmax.f32 %v1705, 0.0
      %v1834 = vmax.f32 %v1706, 0.0
      %v1835 = vmax.f32 %v1707, 0.0
      %v1836 = vmax.f32 %v1708, 0.0
      %v1837 = vmax.f32 %v1709, 0.0
      %v1838 = vmax.f32 %v1710, 0.0
      %v1839 = vmax.f32 %v1711, 0.0
      %v1840 = vmax.f32 %v1712, 0.0
      %v1841 = vmax.f32 %v1713, 0.0
      %v1842 = vmax.f32 %v1714, 0.0
      %v1843 = vmax.f32 %v1715, 0.0
      %v1844 = vmax.f32 %v1716, 0.0
      %v1845 = vmax.f32 %v1717, 0.0
      %v1846 = vmax.f32 %v1718, 0.0
      %v1847 = vmax.f32 %v1719, 0.0
      %v1848 = vmax.f32 %v1720, 0.0
      %v1849 = vmax.f32 %v1721, 0.0
      %v1850 = vmax.f32 %v1722, 0.0
      %v1851 = vmax.f32 %v1723, 0.0
      %v1852 = vmax.f32 %v1724, 0.0
      %v1853 = vmax.f32 %v1725, 0.0
      %v1854 = vmax.f32 %v1726, 0.0
      %v1855 = vmax.f32 %v1727, 0.0
      %v1856 = vmax.f32 %v1728, 0.0
      %v1857 = vmax.f32 %v1729, 0.0
      %v1858 = vmax.f32 %v1730, 0.0
      %v1859 = vmax.f32 %v1731, 0.0
      %v1860 = vmax.f32 %v1732, 0.0
      %v1861 = vmax.f32 %v1733, 0.0
      %v1862 = vmax.f32 %v1734, 0.0
      %v1863 = vmax.f32 %v1735, 0.0
      %v1864 = vmax.f32 %v1736, 0.0
      %v1865 = vmax.f32 %v1737, 0.0
      %v1866 = vmax.f32 %v1738, 0.0
      %v1867 = vmax.f32 %v1739, 0.0
      %v1868 = vmax.f32 %v1740, 0.0
      %v1869 = vmax.f32 %v1741, 0.0
      %v1870 = vmax.f32 %v1742, 0.0
      %v1871 = vmax.f32 %v1743, 0.0
      %v1872 = vmax.f32 %v1744, 0.0
      %v1873 = vmax.f32 %v1745, 0.0
      %v1874 = vmax.f32 %v1746, 0.0
      %v1875 = vmax.f32 %v1747, 0.0
      %v1876 = vmax.f32 %v1748, 0.0
      %v1877 = vmax.f32 %v1749, 0.0
      %v1878 = vmax.f32 %v1750, 0.0
      %v1879 = vmax.f32 %v1751, 0.0
      %v1880 = vmax.f32 %v1752, 0.0
      %v1881 = vmax.f32 %v1753, 0.0
      %v1882 = vmax.f32 %v1754, 0.0
      %v1883 = vmax.f32 %v1755, 0.0
      %v1884 = vmax.f32 %v1756, 0.0
      %v1885 = vmax.f32 %v1757, 0.0
      %v1886 = vmax.f32 %v1758, 0.0
      %v1887 = vmax.f32 %v1759, 0.0
      %v1888 = vmax.f32 %v1760, 0.0
      %v1889 = vmax.f32 %v1761, 0.0
      %v1890 = vmax.f32 %v1762, 0.0
      %v1891 = vmax.f32 %v1763, 0.0
      %v1892 = vmax.f32 %v1764, 0.0
      %v1893 = vmax.f32 %v1765, 0.0
      %v1894 = vmax.f32 %v1766, 0.0
      %v1895 = vmax.f32 %v1767, 0.0
      %v1896 = vmax.f32 %v1768, 0.0
      %v1897 = vmax.f32 %v1769, 0.0
      %v1898 = vmax.f32 %v1770, 0.0
      %v1899 = vmax.f32 %v1771, 0.0
      %v1900 = vmax.f32 %v1772, 0.0
      %v1901 = vmax.f32 %v1773, 0.0
      %v1902 = vmax.f32 %v1774, 0.0
      %v1903 = vpack.c.bf16 %v1776, %v1775
      %v1904 = vpack.c.bf16 %v1778, %v1777
      %v1905 = vpack.c.bf16 %v1780, %v1779
      %v1906 = vpack.c.bf16 %v1782, %v1781
      %v1907 = vpack.c.bf16 %v1784, %v1783
      %v1908 = vpack.c.bf16 %v1786, %v1785
      %v1909 = vpack.c.bf16 %v1788, %v1787
      %v1910 = vpack.c.bf16 %v1790, %v1789
      %v1911 = vpack.c.bf16 %v1792, %v1791
      %v1912 = vpack.c.bf16 %v1794, %v1793
      %v1913 = vpack.c.bf16 %v1796, %v1795
      %v1914 = vpack.c.bf16 %v1798, %v1797
      %v1915 = vpack.c.bf16 %v1800, %v1799
      %v1916 = vpack.c.bf16 %v1802, %v1801
      %v1917 = vpack.c.bf16 %v1804, %v1803
      %v1918 = vpack.c.bf16 %v1806, %v1805
      %v1919 = vpack.c.bf16 %v1808, %v1807
      %v1920 = vpack.c.bf16 %v1810, %v1809
      %v1921 = vpack.c.bf16 %v1812, %v1811
      %v1922 = vpack.c.bf16 %v1814, %v1813
      %v1923 = vpack.c.bf16 %v1816, %v1815
      %v1924 = vpack.c.bf16 %v1818, %v1817
      %v1925 = vpack.c.bf16 %v1820, %v1819
      %v1926 = vpack.c.bf16 %v1822, %v1821
      %v1927 = vpack.c.bf16 %v1824, %v1823
      %v1928 = vpack.c.bf16 %v1826, %v1825
      %v1929 = vpack.c.bf16 %v1828, %v1827
      %v1930 = vpack.c.bf16 %v1830, %v1829
      %v1931 = vpack.c.bf16 %v1832, %v1831
      %v1932 = vpack.c.bf16 %v1834, %v1833
      %v1933 = vpack.c.bf16 %v1836, %v1835
      %v1934 = vpack.c.bf16 %v1838, %v1837
      %v1935 = vpack.c.bf16 %v1840, %v1839
      %v1936 = vpack.c.bf16 %v1842, %v1841
      %v1937 = vpack.c.bf16 %v1844, %v1843
      %v1938 = vpack.c.bf16 %v1846, %v1845
      %v1939 = vpack.c.bf16 %v1848, %v1847
      %v1940 = vpack.c.bf16 %v1850, %v1849
      %v1941 = vpack.c.bf16 %v1852, %v1851
      %v1942 = vpack.c.bf16 %v1854, %v1853
      %v1943 = vpack.c.bf16 %v1856, %v1855
      %v1944 = vpack.c.bf16 %v1858, %v1857
      %v1945 = vpack.c.bf16 %v1860, %v1859
      %v1946 = vpack.c.bf16 %v1862, %v1861
      %v1947 = vpack.c.bf16 %v1864, %v1863
      %v1948 = vpack.c.bf16 %v1866, %v1865
      %v1949 = vpack.c.bf16 %v1868, %v1867
      %v1950 = vpack.c.bf16 %v1870, %v1869
      %v1951 = vpack.c.bf16 %v1872, %v1871
      %v1952 = vpack.c.bf16 %v1874, %v1873
      %v1953 = vpack.c.bf16 %v1876, %v1875
      %v1954 = vpack.c.bf16 %v1878, %v1877
      %v1955 = vpack.c.bf16 %v1880, %v1879
      %v1956 = vpack.c.bf16 %v1882, %v1881
      %v1957 = vpack.c.bf16 %v1884, %v1883
      %v1958 = vpack.c.bf16 %v1886, %v1885
      %v1959 = vpack.c.bf16 %v1888, %v1887
      %v1960 = vpack.c.bf16 %v1890, %v1889
      %v1961 = vpack.c.bf16 %v1892, %v1891
      %v1962 = vpack.c.bf16 %v1894, %v1893
      %v1963 = vpack.c.bf16 %v1896, %v1895
      %v1964 = vpack.c.bf16 %v1898, %v1897
      %v1965 = vpack.c.bf16 %v1900, %v1899
      %v1966 = vpack.c.bf16 %v1902, %v1901
      %v2031 = vunpack.c.l.b16 %v1903
      %v2032 = vunpack.c.h.b16 %v1903
      %v2033 = vunpack.c.l.b16 %v1904
      %v2034 = vunpack.c.h.b16 %v1904
      %v2035 = vunpack.c.l.b16 %v1905
      %v2036 = vunpack.c.h.b16 %v1905
      %v2037 = vunpack.c.l.b16 %v1906
      %v2038 = vunpack.c.h.b16 %v1906
      %v2039 = vunpack.c.l.b16 %v1907
      %v2040 = vunpack.c.h.b16 %v1907
      %v2041 = vunpack.c.l.b16 %v1908
      %v2042 = vunpack.c.h.b16 %v1908
      %v2043 = vunpack.c.l.b16 %v1909
      %v2044 = vunpack.c.h.b16 %v1909
      %v2045 = vunpack.c.l.b16 %v1910
      %v2046 = vunpack.c.h.b16 %v1910
      %v2047 = vunpack.c.l.b16 %v1911
      %v2048 = vunpack.c.h.b16 %v1911
      %v2049 = vunpack.c.l.b16 %v1912
      %v2050 = vunpack.c.h.b16 %v1912
      %v2051 = vunpack.c.l.b16 %v1913
      %v2052 = vunpack.c.h.b16 %v1913
      %v2053 = vunpack.c.l.b16 %v1914
      %v2054 = vunpack.c.h.b16 %v1914
      %v2055 = vunpack.c.l.b16 %v1915
      %v2056 = vunpack.c.h.b16 %v1915
      %v2057 = vunpack.c.l.b16 %v1916
      %v2058 = vunpack.c.h.b16 %v1916
      %v2059 = vunpack.c.l.b16 %v1917
      %v2060 = vunpack.c.h.b16 %v1917
      %v2061 = vunpack.c.l.b16 %v1918
      %v2062 = vunpack.c.h.b16 %v1918
      %v2063 = vunpack.c.l.b16 %v1919
      %v2064 = vunpack.c.h.b16 %v1919
      %v2065 = vunpack.c.l.b16 %v1920
      %v2066 = vunpack.c.h.b16 %v1920
      %v2067 = vunpack.c.l.b16 %v1921
      %v2068 = vunpack.c.h.b16 %v1921
      %v2069 = vunpack.c.l.b16 %v1922
      %v2070 = vunpack.c.h.b16 %v1922
      %v2071 = vunpack.c.l.b16 %v1923
      %v2072 = vunpack.c.h.b16 %v1923
      %v2073 = vunpack.c.l.b16 %v1924
      %v2074 = vunpack.c.h.b16 %v1924
      %v2075 = vunpack.c.l.b16 %v1925
      %v2076 = vunpack.c.h.b16 %v1925
      %v2077 = vunpack.c.l.b16 %v1926
      %v2078 = vunpack.c.h.b16 %v1926
      %v2079 = vunpack.c.l.b16 %v1927
      %v2080 = vunpack.c.h.b16 %v1927
      %v2081 = vunpack.c.l.b16 %v1928
      %v2082 = vunpack.c.h.b16 %v1928
      %v2083 = vunpack.c.l.b16 %v1929
      %v2084 = vunpack.c.h.b16 %v1929
      %v2085 = vunpack.c.l.b16 %v1930
      %v2086 = vunpack.c.h.b16 %v1930
      %v2087 = vunpack.c.l.b16 %v1931
      %v2088 = vunpack.c.h.b16 %v1931
      %v2089 = vunpack.c.l.b16 %v1932
      %v2090 = vunpack.c.h.b16 %v1932
      %v2091 = vunpack.c.l.b16 %v1933
      %v2092 = vunpack.c.h.b16 %v1933
      %v2093 = vunpack.c.l.b16 %v1934
      %v2094 = vunpack.c.h.b16 %v1934
      %v2095 = vunpack.c.l.b16 %v1935
      %v2096 = vunpack.c.h.b16 %v1935
      %v2097 = vunpack.c.l.b16 %v1936
      %v2098 = vunpack.c.h.b16 %v1936
      %v2099 = vunpack.c.l.b16 %v1937
      %v2100 = vunpack.c.h.b16 %v1937
      %v2101 = vunpack.c.l.b16 %v1938
      %v2102 = vunpack.c.h.b16 %v1938
      %v2103 = vunpack.c.l.b16 %v1939
      %v2104 = vunpack.c.h.b16 %v1939
      %v2105 = vunpack.c.l.b16 %v1940
      %v2106 = vunpack.c.h.b16 %v1940
      %v2107 = vunpack.c.l.b16 %v1941
      %v2108 = vunpack.c.h.b16 %v1941
      %v2109 = vunpack.c.l.b16 %v1942
      %v2110 = vunpack.c.h.b16 %v1942
      %v2111 = vunpack.c.l.b16 %v1943
      %v2112 = vunpack.c.h.b16 %v1943
      %v2113 = vunpack.c.l.b16 %v1944
      %v2114 = vunpack.c.h.b16 %v1944
      %v2115 = vunpack.c.l.b16 %v1945
      %v2116 = vunpack.c.h.b16 %v1945
      %v2117 = vunpack.c.l.b16 %v1946
      %v2118 = vunpack.c.h.b16 %v1946
      %v2119 = vunpack.c.l.b16 %v1947
      %v2120 = vunpack.c.h.b16 %v1947
      %v2121 = vunpack.c.l.b16 %v1948
      %v2122 = vunpack.c.h.b16 %v1948
      %v2123 = vunpack.c.l.b16 %v1949
      %v2124 = vunpack.c.h.b16 %v1949
      %v2125 = vunpack.c.l.b16 %v1950
      %v2126 = vunpack.c.h.b16 %v1950
      %v2127 = vunpack.c.l.b16 %v1951
      %v2128 = vunpack.c.h.b16 %v1951
      %v2129 = vunpack.c.l.b16 %v1952
      %v2130 = vunpack.c.h.b16 %v1952
      %v2131 = vunpack.c.l.b16 %v1953
      %v2132 = vunpack.c.h.b16 %v1953
      %v2133 = vunpack.c.l.b16 %v1954
      %v2134 = vunpack.c.h.b16 %v1954
      %v2135 = vunpack.c.l.b16 %v1955
      %v2136 = vunpack.c.h.b16 %v1955
      %v2137 = vunpack.c.l.b16 %v1956
      %v2138 = vunpack.c.h.b16 %v1956
      %v2139 = vunpack.c.l.b16 %v1957
      %v2140 = vunpack.c.h.b16 %v1957
      %v2141 = vunpack.c.l.b16 %v1958
      %v2142 = vunpack.c.h.b16 %v1958
      %v2143 = vunpack.c.l.b16 %v1959
      %v2144 = vunpack.c.h.b16 %v1959
      %v2145 = vunpack.c.l.b16 %v1960
      %v2146 = vunpack.c.h.b16 %v1960
      %v2147 = vunpack.c.l.b16 %v1961
      %v2148 = vunpack.c.h.b16 %v1961
      %v2149 = vunpack.c.l.b16 %v1962
      %v2150 = vunpack.c.h.b16 %v1962
      %v2151 = vunpack.c.l.b16 %v1963
      %v2152 = vunpack.c.h.b16 %v1963
      %v2153 = vunpack.c.l.b16 %v1964
      %v2154 = vunpack.c.h.b16 %v1964
      %v2155 = vunpack.c.l.b16 %v1965
      %v2156 = vunpack.c.h.b16 %v1965
      %v2157 = vunpack.c.l.b16 %v1966
      %v2158 = vunpack.c.h.b16 %v1966
      %v2159 = vpack.c.b16 %v2031, %v2031
      %v2160 = vpack.c.b16 %v2032, %v2032
      %v2161 = vpack.c.b16 %v2033, %v2033
      %v2162 = vpack.c.b16 %v2034, %v2034
      %v2163 = vpack.c.b16 %v2035, %v2035
      %v2164 = vpack.c.b16 %v2036, %v2036
      %v2165 = vpack.c.b16 %v2037, %v2037
      %v2166 = vpack.c.b16 %v2038, %v2038
      %v2167 = vpack.c.b16 %v2039, %v2039
      %v2168 = vpack.c.b16 %v2040, %v2040
      %v2169 = vpack.c.b16 %v2041, %v2041
      %v2170 = vpack.c.b16 %v2042, %v2042
      %v2171 = vpack.c.b16 %v2043, %v2043
      %v2172 = vpack.c.b16 %v2044, %v2044
      %v2173 = vpack.c.b16 %v2045, %v2045
      %v2174 = vpack.c.b16 %v2046, %v2046
      %v2175 = vpack.c.b16 %v2047, %v2047
      %v2176 = vpack.c.b16 %v2048, %v2048
      %v2177 = vpack.c.b16 %v2049, %v2049
      %v2178 = vpack.c.b16 %v2050, %v2050
      %v2179 = vpack.c.b16 %v2051, %v2051
      %v2180 = vpack.c.b16 %v2052, %v2052
      %v2181 = vpack.c.b16 %v2053, %v2053
      %v2182 = vpack.c.b16 %v2054, %v2054
      %v2183 = vpack.c.b16 %v2055, %v2055
      %v2184 = vpack.c.b16 %v2056, %v2056
      %v2185 = vpack.c.b16 %v2057, %v2057
      %v2186 = vpack.c.b16 %v2058, %v2058
      %v2187 = vpack.c.b16 %v2059, %v2059
      %v2188 = vpack.c.b16 %v2060, %v2060
      %v2189 = vpack.c.b16 %v2061, %v2061
      %v2190 = vpack.c.b16 %v2062, %v2062
      %v2191 = vpack.c.b16 %v2063, %v2063
      %v2192 = vpack.c.b16 %v2064, %v2064
      %v2193 = vpack.c.b16 %v2065, %v2065
      %v2194 = vpack.c.b16 %v2066, %v2066
      %v2195 = vpack.c.b16 %v2067, %v2067
      %v2196 = vpack.c.b16 %v2068, %v2068
      %v2197 = vpack.c.b16 %v2069, %v2069
      %v2198 = vpack.c.b16 %v2070, %v2070
      %v2199 = vpack.c.b16 %v2071, %v2071
      %v2200 = vpack.c.b16 %v2072, %v2072
      %v2201 = vpack.c.b16 %v2073, %v2073
      %v2202 = vpack.c.b16 %v2074, %v2074
      %v2203 = vpack.c.b16 %v2075, %v2075
      %v2204 = vpack.c.b16 %v2076, %v2076
      %v2205 = vpack.c.b16 %v2077, %v2077
      %v2206 = vpack.c.b16 %v2078, %v2078
      %v2207 = vpack.c.b16 %v2079, %v2079
      %v2208 = vpack.c.b16 %v2080, %v2080
      %v2209 = vpack.c.b16 %v2081, %v2081
      %v2210 = vpack.c.b16 %v2082, %v2082
      %v2211 = vpack.c.b16 %v2083, %v2083
      %v2212 = vpack.c.b16 %v2084, %v2084
      %v2213 = vpack.c.b16 %v2085, %v2085
      %v2214 = vpack.c.b16 %v2086, %v2086
      %v2215 = vpack.c.b16 %v2087, %v2087
      %v2216 = vpack.c.b16 %v2088, %v2088
      %v2217 = vpack.c.b16 %v2089, %v2089
      %v2218 = vpack.c.b16 %v2090, %v2090
      %v2219 = vpack.c.b16 %v2091, %v2091
      %v2220 = vpack.c.b16 %v2092, %v2092
      %v2221 = vpack.c.b16 %v2093, %v2093
      %v2222 = vpack.c.b16 %v2094, %v2094
      %v2223 = vpack.c.b16 %v2095, %v2095
      %v2224 = vpack.c.b16 %v2096, %v2096
      %v2225 = vpack.c.b16 %v2097, %v2097
      %v2226 = vpack.c.b16 %v2098, %v2098
      %v2227 = vpack.c.b16 %v2099, %v2099
      %v2228 = vpack.c.b16 %v2100, %v2100
      %v2229 = vpack.c.b16 %v2101, %v2101
      %v2230 = vpack.c.b16 %v2102, %v2102
      %v2231 = vpack.c.b16 %v2103, %v2103
      %v2232 = vpack.c.b16 %v2104, %v2104
      %v2233 = vpack.c.b16 %v2105, %v2105
      %v2234 = vpack.c.b16 %v2106, %v2106
      %v2235 = vpack.c.b16 %v2107, %v2107
      %v2236 = vpack.c.b16 %v2108, %v2108
      %v2237 = vpack.c.b16 %v2109, %v2109
      %v2238 = vpack.c.b16 %v2110, %v2110
      %v2239 = vpack.c.b16 %v2111, %v2111
      %v2240 = vpack.c.b16 %v2112, %v2112
      %v2241 = vpack.c.b16 %v2113, %v2113
      %v2242 = vpack.c.b16 %v2114, %v2114
      %v2243 = vpack.c.b16 %v2115, %v2115
      %v2244 = vpack.c.b16 %v2116, %v2116
      %v2245 = vpack.c.b16 %v2117, %v2117
      %v2246 = vpack.c.b16 %v2118, %v2118
      %v2247 = vpack.c.b16 %v2119, %v2119
      %v2248 = vpack.c.b16 %v2120, %v2120
      %v2249 = vpack.c.b16 %v2121, %v2121
      %v2250 = vpack.c.b16 %v2122, %v2122
      %v2251 = vpack.c.b16 %v2123, %v2123
      %v2252 = vpack.c.b16 %v2124, %v2124
      %v2253 = vpack.c.b16 %v2125, %v2125
      %v2254 = vpack.c.b16 %v2126, %v2126
      %v2255 = vpack.c.b16 %v2127, %v2127
      %v2256 = vpack.c.b16 %v2128, %v2128
      %v2257 = vpack.c.b16 %v2129, %v2129
      %v2258 = vpack.c.b16 %v2130, %v2130
      %v2259 = vpack.c.b16 %v2131, %v2131
      %v2260 = vpack.c.b16 %v2132, %v2132
      %v2261 = vpack.c.b16 %v2133, %v2133
      %v2262 = vpack.c.b16 %v2134, %v2134
      %v2263 = vpack.c.b16 %v2135, %v2135
      %v2264 = vpack.c.b16 %v2136, %v2136
      %v2265 = vpack.c.b16 %v2137, %v2137
      %v2266 = vpack.c.b16 %v2138, %v2138
      %v2267 = vpack.c.b16 %v2139, %v2139
      %v2268 = vpack.c.b16 %v2140, %v2140
      %v2269 = vpack.c.b16 %v2141, %v2141
      %v2270 = vpack.c.b16 %v2142, %v2142
      %v2271 = vpack.c.b16 %v2143, %v2143
      %v2272 = vpack.c.b16 %v2144, %v2144
      %v2273 = vpack.c.b16 %v2145, %v2145
      %v2274 = vpack.c.b16 %v2146, %v2146
      %v2275 = vpack.c.b16 %v2147, %v2147
      %v2276 = vpack.c.b16 %v2148, %v2148
      %v2277 = vpack.c.b16 %v2149, %v2149
      %v2278 = vpack.c.b16 %v2150, %v2150
      %v2279 = vpack.c.b16 %v2151, %v2151
      %v2280 = vpack.c.b16 %v2152, %v2152
      %v2281 = vpack.c.b16 %v2153, %v2153
      %v2282 = vpack.c.b16 %v2154, %v2154
      %v2283 = vpack.c.b16 %v2155, %v2155
      %v2284 = vpack.c.b16 %v2156, %v2156
      %v2285 = vpack.c.b16 %v2157, %v2157
      %v2286 = vpack.c.b16 %v2158, %v2158
      %vm2415 = vcmask 519168
      %2416 = vst.msk [vmem:[%s294] sm:$0xf] %vm2415, %v2159
      %2417 = vst.msk [vmem:[%s294 + $0x4] sm:$0xf] %vm2415, %v2160
      %2418 = vst.msk [vmem:[%s294 + $0x8] sm:$0xf] %vm2415, %v2161
      %2419 = vst.msk [vmem:[%s294 + $0xc] sm:$0xf] %vm2415, %v2162
      %2420 = vst.msk [vmem:[%s294 + $0x10] sm:$0xf] %vm2415, %v2163
      %2421 = vst.msk [vmem:[%s294 + $0x14] sm:$0xf] %vm2415, %v2164
      %2422 = vst.msk [vmem:[%s294 + $0x18] sm:$0xf] %vm2415, %v2165
      %2423 = vst.msk [vmem:[%s294 + $0x1c] sm:$0xf] %vm2415, %v2166
      %2424 = vst.msk [vmem:[%s294 + $0x20] sm:$0xf] %vm2415, %v2167
      %2425 = vst.msk [vmem:[%s294 + $0x24] sm:$0xf] %vm2415, %v2168
      %2426 = vst.msk [vmem:[%s294 + $0x28] sm:$0xf] %vm2415, %v2169
      %2427 = vst.msk [vmem:[%s294 + $0x2c] sm:$0xf] %vm2415, %v2170
      %2428 = vst.msk [vmem:[%s294 + $0x30] sm:$0xf] %vm2415, %v2171
      %2429 = vst.msk [vmem:[%s294 + $0x34] sm:$0xf] %vm2415, %v2172
      %2430 = vst.msk [vmem:[%s294 + $0x38] sm:$0xf] %vm2415, %v2173
      %2431 = vst.msk [vmem:[%s294 + $0x3c] sm:$0xf] %vm2415, %v2174
      %2432 = vst.msk [vmem:[%s294 + $0x40] sm:$0xf] %vm2415, %v2175
      %2433 = vst.msk [vmem:[%s294 + $0x44] sm:$0xf] %vm2415, %v2176
      %2434 = vst.msk [vmem:[%s294 + $0x48] sm:$0xf] %vm2415, %v2177
      %2435 = vst.msk [vmem:[%s294 + $0x4c] sm:$0xf] %vm2415, %v2178
      %2436 = vst.msk [vmem:[%s294 + $0x50] sm:$0xf] %vm2415, %v2179
      %2437 = vst.msk [vmem:[%s294 + $0x54] sm:$0xf] %vm2415, %v2180
      %2438 = vst.msk [vmem:[%s294 + $0x58] sm:$0xf] %vm2415, %v2181
      %2439 = vst.msk [vmem:[%s294 + $0x5c] sm:$0xf] %vm2415, %v2182
      %2440 = vst.msk [vmem:[%s294 + $0x60] sm:$0xf] %vm2415, %v2183
      %2441 = vst.msk [vmem:[%s294 + $0x64] sm:$0xf] %vm2415, %v2184
      %2442 = vst.msk [vmem:[%s294 + $0x68] sm:$0xf] %vm2415, %v2185
      %2443 = vst.msk [vmem:[%s294 + $0x6c] sm:$0xf] %vm2415, %v2186
      %2444 = vst.msk [vmem:[%s294 + $0x70] sm:$0xf] %vm2415, %v2187
      %2445 = vst.msk [vmem:[%s294 + $0x74] sm:$0xf] %vm2415, %v2188
      %2446 = vst.msk [vmem:[%s294 + $0x78] sm:$0xf] %vm2415, %v2189
      %2447 = vst.msk [vmem:[%s294 + $0x7c] sm:$0xf] %vm2415, %v2190
      %2448 = vst.msk [vmem:[%s294 + $0x80] sm:$0xf] %vm2415, %v2191
      %2449 = vst.msk [vmem:[%s294 + $0x84] sm:$0xf] %vm2415, %v2192
      %2450 = vst.msk [vmem:[%s294 + $0x88] sm:$0xf] %vm2415, %v2193
      %2451 = vst.msk [vmem:[%s294 + $0x8c] sm:$0xf] %vm2415, %v2194
      %2452 = vst.msk [vmem:[%s294 + $0x90] sm:$0xf] %vm2415, %v2195
      %2453 = vst.msk [vmem:[%s294 + $0x94] sm:$0xf] %vm2415, %v2196
      %2454 = vst.msk [vmem:[%s294 + $0x98] sm:$0xf] %vm2415, %v2197
      %2455 = vst.msk [vmem:[%s294 + $0x9c] sm:$0xf] %vm2415, %v2198
      %2456 = vst.msk [vmem:[%s294 + $0xa0] sm:$0xf] %vm2415, %v2199
      %2457 = vst.msk [vmem:[%s294 + $0xa4] sm:$0xf] %vm2415, %v2200
      %2458 = vst.msk [vmem:[%s294 + $0xa8] sm:$0xf] %vm2415, %v2201
      %2459 = vst.msk [vmem:[%s294 + $0xac] sm:$0xf] %vm2415, %v2202
      %2460 = vst.msk [vmem:[%s294 + $0xb0] sm:$0xf] %vm2415, %v2203
      %2461 = vst.msk [vmem:[%s294 + $0xb4] sm:$0xf] %vm2415, %v2204
      %2462 = vst.msk [vmem:[%s294 + $0xb8] sm:$0xf] %vm2415, %v2205
      %2463 = vst.msk [vmem:[%s294 + $0xbc] sm:$0xf] %vm2415, %v2206
      %2464 = vst.msk [vmem:[%s294 + $0xc0] sm:$0xf] %vm2415, %v2207
      %2465 = vst.msk [vmem:[%s294 + $0xc4] sm:$0xf] %vm2415, %v2208
      %2466 = vst.msk [vmem:[%s294 + $0xc8] sm:$0xf] %vm2415, %v2209
      %2467 = vst.msk [vmem:[%s294 + $0xcc] sm:$0xf] %vm2415, %v2210
      %2468 = vst.msk [vmem:[%s294 + $0xd0] sm:$0xf] %vm2415, %v2211
      %2469 = vst.msk [vmem:[%s294 + $0xd4] sm:$0xf] %vm2415, %v2212
      %2470 = vst.msk [vmem:[%s294 + $0xd8] sm:$0xf] %vm2415, %v2213
      %2471 = vst.msk [vmem:[%s294 + $0xdc] sm:$0xf] %vm2415, %v2214
      %2472 = vst.msk [vmem:[%s294 + $0xe0] sm:$0xf] %vm2415, %v2215
      %2473 = vst.msk [vmem:[%s294 + $0xe4] sm:$0xf] %vm2415, %v2216
      %2474 = vst.msk [vmem:[%s294 + $0xe8] sm:$0xf] %vm2415, %v2217
      %2475 = vst.msk [vmem:[%s294 + $0xec] sm:$0xf] %vm2415, %v2218
      %2476 = vst.msk [vmem:[%s294 + $0xf0] sm:$0xf] %vm2415, %v2219
      %2477 = vst.msk [vmem:[%s294 + $0xf4] sm:$0xf] %vm2415, %v2220
      %2478 = vst.msk [vmem:[%s294 + $0xf8] sm:$0xf] %vm2415, %v2221
      %2479 = vst.msk [vmem:[%s294 + $0xfc] sm:$0xf] %vm2415, %v2222
      %2480 = vst.msk [vmem:[%s294 + $0x100] sm:$0xf] %vm2415, %v2223
      %2481 = vst.msk [vmem:[%s294 + $0x104] sm:$0xf] %vm2415, %v2224
      %2482 = vst.msk [vmem:[%s294 + $0x108] sm:$0xf] %vm2415, %v2225
      %2483 = vst.msk [vmem:[%s294 + $0x10c] sm:$0xf] %vm2415, %v2226
      %2484 = vst.msk [vmem:[%s294 + $0x110] sm:$0xf] %vm2415, %v2227
      %2485 = vst.msk [vmem:[%s294 + $0x114] sm:$0xf] %vm2415, %v2228
      %2486 = vst.msk [vmem:[%s294 + $0x118] sm:$0xf] %vm2415, %v2229
      %2487 = vst.msk [vmem:[%s294 + $0x11c] sm:$0xf] %vm2415, %v2230
      %2488 = vst.msk [vmem:[%s294 + $0x120] sm:$0xf] %vm2415, %v2231
      %2489 = vst.msk [vmem:[%s294 + $0x124] sm:$0xf] %vm2415, %v2232
      %2490 = vst.msk [vmem:[%s294 + $0x128] sm:$0xf] %vm2415, %v2233
      %2491 = vst.msk [vmem:[%s294 + $0x12c] sm:$0xf] %vm2415, %v2234
      %2492 = vst.msk [vmem:[%s294 + $0x130] sm:$0xf] %vm2415, %v2235
      %2493 = vst.msk [vmem:[%s294 + $0x134] sm:$0xf] %vm2415, %v2236
      %2494 = vst.msk [vmem:[%s294 + $0x138] sm:$0xf] %vm2415, %v2237
      %2495 = vst.msk [vmem:[%s294 + $0x13c] sm:$0xf] %vm2415, %v2238
      %2496 = vst.msk [vmem:[%s294 + $0x140] sm:$0xf] %vm2415, %v2239
      %2497 = vst.msk [vmem:[%s294 + $0x144] sm:$0xf] %vm2415, %v2240
      %2498 = vst.msk [vmem:[%s294 + $0x148] sm:$0xf] %vm2415, %v2241
      %2499 = vst.msk [vmem:[%s294 + $0x14c] sm:$0xf] %vm2415, %v2242
      %2500 = vst.msk [vmem:[%s294 + $0x150] sm:$0xf] %vm2415, %v2243
      %2501 = vst.msk [vmem:[%s294 + $0x154] sm:$0xf] %vm2415, %v2244
      %2502 = vst.msk [vmem:[%s294 + $0x158] sm:$0xf] %vm2415, %v2245
      %2503 = vst.msk [vmem:[%s294 + $0x15c] sm:$0xf] %vm2415, %v2246
      %2504 = vst.msk [vmem:[%s294 + $0x160] sm:$0xf] %vm2415, %v2247
      %2505 = vst.msk [vmem:[%s294 + $0x164] sm:$0xf] %vm2415, %v2248
      %2506 = vst.msk [vmem:[%s294 + $0x168] sm:$0xf] %vm2415, %v2249
      %2507 = vst.msk [vmem:[%s294 + $0x16c] sm:$0xf] %vm2415, %v2250
      %2508 = vst.msk [vmem:[%s294 + $0x170] sm:$0xf] %vm2415, %v2251
      %2509 = vst.msk [vmem:[%s294 + $0x174] sm:$0xf] %vm2415, %v2252
      %2510 = vst.msk [vmem:[%s294 + $0x178] sm:$0xf] %vm2415, %v2253
      %2511 = vst.msk [vmem:[%s294 + $0x17c] sm:$0xf] %vm2415, %v2254
      %2512 = vst.msk [vmem:[%s294 + $0x180] sm:$0xf] %vm2415, %v2255
      %2513 = vst.msk [vmem:[%s294 + $0x184] sm:$0xf] %vm2415, %v2256
      %2514 = vst.msk [vmem:[%s294 + $0x188] sm:$0xf] %vm2415, %v2257
      %2515 = vst.msk [vmem:[%s294 + $0x18c] sm:$0xf] %vm2415, %v2258
      %2516 = vst.msk [vmem:[%s294 + $0x190] sm:$0xf] %vm2415, %v2259
      %2517 = vst.msk [vmem:[%s294 + $0x194] sm:$0xf] %vm2415, %v2260
      %2518 = vst.msk [vmem:[%s294 + $0x198] sm:$0xf] %vm2415, %v2261
      %2519 = vst.msk [vmem:[%s294 + $0x19c] sm:$0xf] %vm2415, %v2262
      %2520 = vst.msk [vmem:[%s294 + $0x1a0] sm:$0xf] %vm2415, %v2263
      %2521 = vst.msk [vmem:[%s294 + $0x1a4] sm:$0xf] %vm2415, %v2264
      %2522 = vst.msk [vmem:[%s294 + $0x1a8] sm:$0xf] %vm2415, %v2265
      %2523 = vst.msk [vmem:[%s294 + $0x1ac] sm:$0xf] %vm2415, %v2266
      %2524 = vst.msk [vmem:[%s294 + $0x1b0] sm:$0xf] %vm2415, %v2267
      %2525 = vst.msk [vmem:[%s294 + $0x1b4] sm:$0xf] %vm2415, %v2268
      %2526 = vst.msk [vmem:[%s294 + $0x1b8] sm:$0xf] %vm2415, %v2269
      %2527 = vst.msk [vmem:[%s294 + $0x1bc] sm:$0xf] %vm2415, %v2270
      %2528 = vst.msk [vmem:[%s294 + $0x1c0] sm:$0xf] %vm2415, %v2271
      %2529 = vst.msk [vmem:[%s294 + $0x1c4] sm:$0xf] %vm2415, %v2272
      %2530 = vst.msk [vmem:[%s294 + $0x1c8] sm:$0xf] %vm2415, %v2273
      %2531 = vst.msk [vmem:[%s294 + $0x1cc] sm:$0xf] %vm2415, %v2274
      %2532 = vst.msk [vmem:[%s294 + $0x1d0] sm:$0xf] %vm2415, %v2275
      %2533 = vst.msk [vmem:[%s294 + $0x1d4] sm:$0xf] %vm2415, %v2276
      %2534 = vst.msk [vmem:[%s294 + $0x1d8] sm:$0xf] %vm2415, %v2277
      %2535 = vst.msk [vmem:[%s294 + $0x1dc] sm:$0xf] %vm2415, %v2278
      %2536 = vst.msk [vmem:[%s294 + $0x1e0] sm:$0xf] %vm2415, %v2279
      %2537 = vst.msk [vmem:[%s294 + $0x1e4] sm:$0xf] %vm2415, %v2280
      %2538 = vst.msk [vmem:[%s294 + $0x1e8] sm:$0xf] %vm2415, %v2281
      %2539 = vst.msk [vmem:[%s294 + $0x1ec] sm:$0xf] %vm2415, %v2282
      %2540 = vst.msk [vmem:[%s294 + $0x1f0] sm:$0xf] %vm2415, %v2283
      %2541 = vst.msk [vmem:[%s294 + $0x1f4] sm:$0xf] %vm2415, %v2284
      %2542 = vst.msk [vmem:[%s294 + $0x1f8] sm:$0xf] %vm2415, %v2285
      %2543 = vst.msk [vmem:[%s294 + $0x1fc] sm:$0xf] %vm2415, %v2286
      %v2544 = vld [vmem:[%s4] sm:$0x1]
      %v2546 = vlaneseq
      %v2547 = vshrl.u32 %v2546, 7
      %v2548 = vsub.s32 0, %v2547
      %v2549 = vrot.slane %v2544, %v2548
      %v2551 = vmul.f32 %v1775, %v2549
      %v2552 = vmul.f32 %v1776, %v2549
      %v2553 = vmul.f32 %v1777, %v2549
      %v2554 = vmul.f32 %v1778, %v2549
      %v2555 = vmul.f32 %v1779, %v2549
      %v2556 = vmul.f32 %v1780, %v2549
      %v2557 = vmul.f32 %v1781, %v2549
      %v2558 = vmul.f32 %v1782, %v2549
      %v2559 = vmul.f32 %v1783, %v2549
      %v2560 = vmul.f32 %v1784, %v2549
      %v2561 = vmul.f32 %v1785, %v2549
      %v2562 = vmul.f32 %v1786, %v2549
      %v2563 = vmul.f32 %v1787, %v2549
      %v2564 = vmul.f32 %v1788, %v2549
      %v2565 = vmul.f32 %v1789, %v2549
      %v2566 = vmul.f32 %v1790, %v2549
      %v2567 = vmul.f32 %v1791, %v2549
      %v2568 = vmul.f32 %v1792, %v2549
      %v2569 = vmul.f32 %v1793, %v2549
      %v2570 = vmul.f32 %v1794, %v2549
      %v2571 = vmul.f32 %v1795, %v2549
      %v2572 = vmul.f32 %v1796, %v2549
      %v2573 = vmul.f32 %v1797, %v2549
      %v2574 = vmul.f32 %v1798, %v2549
      %v2575 = vmul.f32 %v1799, %v2549
      %v2576 = vmul.f32 %v1800, %v2549
      %v2577 = vmul.f32 %v1801, %v2549
      %v2578 = vmul.f32 %v1802, %v2549
      %v2579 = vmul.f32 %v1803, %v2549
      %v2580 = vmul.f32 %v1804, %v2549
      %v2581 = vmul.f32 %v1805, %v2549
      %v2582 = vmul.f32 %v1806, %v2549
      %v2583 = vmul.f32 %v1807, %v2549
      %v2584 = vmul.f32 %v1808, %v2549
      %v2585 = vmul.f32 %v1809, %v2549
      %v2586 = vmul.f32 %v1810, %v2549
      %v2587 = vmul.f32 %v1811, %v2549
      %v2588 = vmul.f32 %v1812, %v2549
      %v2589 = vmul.f32 %v1813, %v2549
      %v2590 = vmul.f32 %v1814, %v2549
      %v2591 = vmul.f32 %v1815, %v2549
      %v2592 = vmul.f32 %v1816, %v2549
      %v2593 = vmul.f32 %v1817, %v2549
      %v2594 = vmul.f32 %v1818, %v2549
      %v2595 = vmul.f32 %v1819, %v2549
      %v2596 = vmul.f32 %v1820, %v2549
      %v2597 = vmul.f32 %v1821, %v2549
      %v2598 = vmul.f32 %v1822, %v2549
      %v2599 = vmul.f32 %v1823, %v2549
      %v2600 = vmul.f32 %v1824, %v2549
      %v2601 = vmul.f32 %v1825, %v2549
      %v2602 = vmul.f32 %v1826, %v2549
      %v2603 = vmul.f32 %v1827, %v2549
      %v2604 = vmul.f32 %v1828, %v2549
      %v2605 = vmul.f32 %v1829, %v2549
      %v2606 = vmul.f32 %v1830, %v2549
      %v2607 = vmul.f32 %v1831, %v2549
      %v2608 = vmul.f32 %v1832, %v2549
      %v2609 = vmul.f32 %v1833, %v2549
      %v2610 = vmul.f32 %v1834, %v2549
      %v2611 = vmul.f32 %v1835, %v2549
      %v2612 = vmul.f32 %v1836, %v2549
      %v2613 = vmul.f32 %v1837, %v2549
      %v2614 = vmul.f32 %v1838, %v2549
      %v2615 = vmul.f32 %v1839, %v2549
      %v2616 = vmul.f32 %v1840, %v2549
      %v2617 = vmul.f32 %v1841, %v2549
      %v2618 = vmul.f32 %v1842, %v2549
      %v2619 = vmul.f32 %v1843, %v2549
      %v2620 = vmul.f32 %v1844, %v2549
      %v2621 = vmul.f32 %v1845, %v2549
      %v2622 = vmul.f32 %v1846, %v2549
      %v2623 = vmul.f32 %v1847, %v2549
      %v2624 = vmul.f32 %v1848, %v2549
      %v2625 = vmul.f32 %v1849, %v2549
      %v2626 = vmul.f32 %v1850, %v2549
      %v2627 = vmul.f32 %v1851, %v2549
      %v2628 = vmul.f32 %v1852, %v2549
      %v2629 = vmul.f32 %v1853, %v2549
      %v2630 = vmul.f32 %v1854, %v2549
      %v2631 = vmul.f32 %v1855, %v2549
      %v2632 = vmul.f32 %v1856, %v2549
      %v2633 = vmul.f32 %v1857, %v2549
      %v2634 = vmul.f32 %v1858, %v2549
      %v2635 = vmul.f32 %v1859, %v2549
      %v2636 = vmul.f32 %v1860, %v2549
      %v2637 = vmul.f32 %v1861, %v2549
      %v2638 = vmul.f32 %v1862, %v2549
      %v2639 = vmul.f32 %v1863, %v2549
      %v2640 = vmul.f32 %v1864, %v2549
      %v2641 = vmul.f32 %v1865, %v2549
      %v2642 = vmul.f32 %v1866, %v2549
      %v2643 = vmul.f32 %v1867, %v2549
      %v2644 = vmul.f32 %v1868, %v2549
      %v2645 = vmul.f32 %v1869, %v2549
      %v2646 = vmul.f32 %v1870, %v2549
      %v2647 = vmul.f32 %v1871, %v2549
      %v2648 = vmul.f32 %v1872, %v2549
      %v2649 = vmul.f32 %v1873, %v2549
      %v2650 = vmul.f32 %v1874, %v2549
      %v2651 = vmul.f32 %v1875, %v2549
      %v2652 = vmul.f32 %v1876, %v2549
      %v2653 = vmul.f32 %v1877, %v2549
      %v2654 = vmul.f32 %v1878, %v2549
      %v2655 = vmul.f32 %v1879, %v2549
      %v2656 = vmul.f32 %v1880, %v2549
      %v2657 = vmul.f32 %v1881, %v2549
      %v2658 = vmul.f32 %v1882, %v2549
      %v2659 = vmul.f32 %v1883, %v2549
      %v2660 = vmul.f32 %v1884, %v2549
      %v2661 = vmul.f32 %v1885, %v2549
      %v2662 = vmul.f32 %v1886, %v2549
      %v2663 = vmul.f32 %v1887, %v2549
      %v2664 = vmul.f32 %v1888, %v2549
      %v2665 = vmul.f32 %v1889, %v2549
      %v2666 = vmul.f32 %v1890, %v2549
      %v2667 = vmul.f32 %v1891, %v2549
      %v2668 = vmul.f32 %v1892, %v2549
      %v2669 = vmul.f32 %v1893, %v2549
      %v2670 = vmul.f32 %v1894, %v2549
      %v2671 = vmul.f32 %v1895, %v2549
      %v2672 = vmul.f32 %v1896, %v2549
      %v2673 = vmul.f32 %v1897, %v2549
      %v2674 = vmul.f32 %v1898, %v2549
      %v2675 = vmul.f32 %v1899, %v2549
      %v2676 = vmul.f32 %v1900, %v2549
      %v2677 = vmul.f32 %v1901, %v2549
      %v2678 = vmul.f32 %v1902, %v2549
      %v2679 = vld [vmem:[%s5] sm:$0x1]
      %v2681 = vlaneseq
      %v2682 = vshrl.u32 %v2681, 7
      %v2683 = vsub.s32 0, %v2682
      %v2684 = vrot.slane %v2679, %v2683
      %v2686 = vadd.f32 %v2551, %v2684
      %v2687 = vadd.f32 %v2552, %v2684
      %v2688 = vadd.f32 %v2553, %v2684
      %v2689 = vadd.f32 %v2554, %v2684
      %v2690 = vadd.f32 %v2555, %v2684
      %v2691 = vadd.f32 %v2556, %v2684
      %v2692 = vadd.f32 %v2557, %v2684
      %v2693 = vadd.f32 %v2558, %v2684
      %v2694 = vadd.f32 %v2559, %v2684
      %v2695 = vadd.f32 %v2560, %v2684
      %v2696 = vadd.f32 %v2561, %v2684
      %v2697 = vadd.f32 %v2562, %v2684
      %v2698 = vadd.f32 %v2563, %v2684
      %v2699 = vadd.f32 %v2564, %v2684
      %v2700 = vadd.f32 %v2565, %v2684
      %v2701 = vadd.f32 %v2566, %v2684
      %v2702 = vadd.f32 %v2567, %v2684
      %v2703 = vadd.f32 %v2568, %v2684
      %v2704 = vadd.f32 %v2569, %v2684
      %v2705 = vadd.f32 %v2570, %v2684
      %v2706 = vadd.f32 %v2571, %v2684
      %v2707 = vadd.f32 %v2572, %v2684
      %v2708 = vadd.f32 %v2573, %v2684
      %v2709 = vadd.f32 %v2574, %v2684
      %v2710 = vadd.f32 %v2575, %v2684
      %v2711 = vadd.f32 %v2576, %v2684
      %v2712 = vadd.f32 %v2577, %v2684
      %v2713 = vadd.f32 %v2578, %v2684
      %v2714 = vadd.f32 %v2579, %v2684
      %v2715 = vadd.f32 %v2580, %v2684
      %v2716 = vadd.f32 %v2581, %v2684
      %v2717 = vadd.f32 %v2582, %v2684
      %v2718 = vadd.f32 %v2583, %v2684
      %v2719 = vadd.f32 %v2584, %v2684
      %v2720 = vadd.f32 %v2585, %v2684
      %v2721 = vadd.f32 %v2586, %v2684
      %v2722 = vadd.f32 %v2587, %v2684
      %v2723 = vadd.f32 %v2588, %v2684
      %v2724 = vadd.f32 %v2589, %v2684
      %v2725 = vadd.f32 %v2590, %v2684
      %v2726 = vadd.f32 %v2591, %v2684
      %v2727 = vadd.f32 %v2592, %v2684
      %v2728 = vadd.f32 %v2593, %v2684
      %v2729 = vadd.f32 %v2594, %v2684
      %v2730 = vadd.f32 %v2595, %v2684
      %v2731 = vadd.f32 %v2596, %v2684
      %v2732 = vadd.f32 %v2597, %v2684
      %v2733 = vadd.f32 %v2598, %v2684
      %v2734 = vadd.f32 %v2599, %v2684
      %v2735 = vadd.f32 %v2600, %v2684
      %v2736 = vadd.f32 %v2601, %v2684
      %v2737 = vadd.f32 %v2602, %v2684
      %v2738 = vadd.f32 %v2603, %v2684
      %v2739 = vadd.f32 %v2604, %v2684
      %v2740 = vadd.f32 %v2605, %v2684
      %v2741 = vadd.f32 %v2606, %v2684
      %v2742 = vadd.f32 %v2607, %v2684
      %v2743 = vadd.f32 %v2608, %v2684
      %v2744 = vadd.f32 %v2609, %v2684
      %v2745 = vadd.f32 %v2610, %v2684
      %v2746 = vadd.f32 %v2611, %v2684
      %v2747 = vadd.f32 %v2612, %v2684
      %v2748 = vadd.f32 %v2613, %v2684
      %v2749 = vadd.f32 %v2614, %v2684
      %v2750 = vadd.f32 %v2615, %v2684
      %v2751 = vadd.f32 %v2616, %v2684
      %v2752 = vadd.f32 %v2617, %v2684
      %v2753 = vadd.f32 %v2618, %v2684
      %v2754 = vadd.f32 %v2619, %v2684
      %v2755 = vadd.f32 %v2620, %v2684
      %v2756 = vadd.f32 %v2621, %v2684
      %v2757 = vadd.f32 %v2622, %v2684
      %v2758 = vadd.f32 %v2623, %v2684
      %v2759 = vadd.f32 %v2624, %v2684
      %v2760 = vadd.f32 %v2625, %v2684
      %v2761 = vadd.f32 %v2626, %v2684
      %v2762 = vadd.f32 %v2627, %v2684
      %v2763 = vadd.f32 %v2628, %v2684
      %v2764 = vadd.f32 %v2629, %v2684
      %v2765 = vadd.f32 %v2630, %v2684
      %v2766 = vadd.f32 %v2631, %v2684
      %v2767 = vadd.f32 %v2632, %v2684
      %v2768 = vadd.f32 %v2633, %v2684
      %v2769 = vadd.f32 %v2634, %v2684
      %v2770 = vadd.f32 %v2635, %v2684
      %v2771 = vadd.f32 %v2636, %v2684
      %v2772 = vadd.f32 %v2637, %v2684
      %v2773 = vadd.f32 %v2638, %v2684
      %v2774 = vadd.f32 %v2639, %v2684
      %v2775 = vadd.f32 %v2640, %v2684
      %v2776 = vadd.f32 %v2641, %v2684
      %v2777 = vadd.f32 %v2642, %v2684
      %v2778 = vadd.f32 %v2643, %v2684
      %v2779 = vadd.f32 %v2644, %v2684
      %v2780 = vadd.f32 %v2645, %v2684
      %v2781 = vadd.f32 %v2646, %v2684
      %v2782 = vadd.f32 %v2647, %v2684
      %v2783 = vadd.f32 %v2648, %v2684
      %v2784 = vadd.f32 %v2649, %v2684
      %v2785 = vadd.f32 %v2650, %v2684
      %v2786 = vadd.f32 %v2651, %v2684
      %v2787 = vadd.f32 %v2652, %v2684
      %v2788 = vadd.f32 %v2653, %v2684
      %v2789 = vadd.f32 %v2654, %v2684
      %v2790 = vadd.f32 %v2655, %v2684
      %v2791 = vadd.f32 %v2656, %v2684
      %v2792 = vadd.f32 %v2657, %v2684
      %v2793 = vadd.f32 %v2658, %v2684
      %v2794 = vadd.f32 %v2659, %v2684
      %v2795 = vadd.f32 %v2660, %v2684
      %v2796 = vadd.f32 %v2661, %v2684
      %v2797 = vadd.f32 %v2662, %v2684
      %v2798 = vadd.f32 %v2663, %v2684
      %v2799 = vadd.f32 %v2664, %v2684
      %v2800 = vadd.f32 %v2665, %v2684
      %v2801 = vadd.f32 %v2666, %v2684
      %v2802 = vadd.f32 %v2667, %v2684
      %v2803 = vadd.f32 %v2668, %v2684
      %v2804 = vadd.f32 %v2669, %v2684
      %v2805 = vadd.f32 %v2670, %v2684
      %v2806 = vadd.f32 %v2671, %v2684
      %v2807 = vadd.f32 %v2672, %v2684
      %v2808 = vadd.f32 %v2673, %v2684
      %v2809 = vadd.f32 %v2674, %v2684
      %v2810 = vadd.f32 %v2675, %v2684
      %v2811 = vadd.f32 %v2676, %v2684
      %v2812 = vadd.f32 %v2677, %v2684
      %v2813 = vadd.f32 %v2678, %v2684
      %v2814 = vmax.f32 %v2686, 0.0
      %v2815 = vmax.f32 %v2687, 0.0
      %v2816 = vmax.f32 %v2688, 0.0
      %v2817 = vmax.f32 %v2689, 0.0
      %v2818 = vmax.f32 %v2690, 0.0
      %v2819 = vmax.f32 %v2691, 0.0
      %v2820 = vmax.f32 %v2692, 0.0
      %v2821 = vmax.f32 %v2693, 0.0
      %v2822 = vmax.f32 %v2694, 0.0
      %v2823 = vmax.f32 %v2695, 0.0
      %v2824 = vmax.f32 %v2696, 0.0
      %v2825 = vmax.f32 %v2697, 0.0
      %v2826 = vmax.f32 %v2698, 0.0
      %v2827 = vmax.f32 %v2699, 0.0
      %v2828 = vmax.f32 %v2700, 0.0
      %v2829 = vmax.f32 %v2701, 0.0
      %v2830 = vmax.f32 %v2702, 0.0
      %v2831 = vmax.f32 %v2703, 0.0
      %v2832 = vmax.f32 %v2704, 0.0
      %v2833 = vmax.f32 %v2705, 0.0
      %v2834 = vmax.f32 %v2706, 0.0
      %v2835 = vmax.f32 %v2707, 0.0
      %v2836 = vmax.f32 %v2708, 0.0
      %v2837 = vmax.f32 %v2709, 0.0
      %v2838 = vmax.f32 %v2710, 0.0
      %v2839 = vmax.f32 %v2711, 0.0
      %v2840 = vmax.f32 %v2712, 0.0
      %v2841 = vmax.f32 %v2713, 0.0
      %v2842 = vmax.f32 %v2714, 0.0
      %v2843 = vmax.f32 %v2715, 0.0
      %v2844 = vmax.f32 %v2716, 0.0
      %v2845 = vmax.f32 %v2717, 0.0
      %v2846 = vmax.f32 %v2718, 0.0
      %v2847 = vmax.f32 %v2719, 0.0
      %v2848 = vmax.f32 %v2720, 0.0
      %v2849 = vmax.f32 %v2721, 0.0
      %v2850 = vmax.f32 %v2722, 0.0
      %v2851 = vmax.f32 %v2723, 0.0
      %v2852 = vmax.f32 %v2724, 0.0
      %v2853 = vmax.f32 %v2725, 0.0
      %v2854 = vmax.f32 %v2726, 0.0
      %v2855 = vmax.f32 %v2727, 0.0
      %v2856 = vmax.f32 %v2728, 0.0
      %v2857 = vmax.f32 %v2729, 0.0
      %v2858 = vmax.f32 %v2730, 0.0
      %v2859 = vmax.f32 %v2731, 0.0
      %v2860 = vmax.f32 %v2732, 0.0
      %v2861 = vmax.f32 %v2733, 0.0
      %v2862 = vmax.f32 %v2734, 0.0
      %v2863 = vmax.f32 %v2735, 0.0
      %v2864 = vmax.f32 %v2736, 0.0
      %v2865 = vmax.f32 %v2737, 0.0
      %v2866 = vmax.f32 %v2738, 0.0
      %v2867 = vmax.f32 %v2739, 0.0
      %v2868 = vmax.f32 %v2740, 0.0
      %v2869 = vmax.f32 %v2741, 0.0
      %v2870 = vmax.f32 %v2742, 0.0
      %v2871 = vmax.f32 %v2743, 0.0
      %v2872 = vmax.f32 %v2744, 0.0
      %v2873 = vmax.f32 %v2745, 0.0
      %v2874 = vmax.f32 %v2746, 0.0
      %v2875 = vmax.f32 %v2747, 0.0
      %v2876 = vmax.f32 %v2748, 0.0
      %v2877 = vmax.f32 %v2749, 0.0
      %v2878 = vmax.f32 %v2750, 0.0
      %v2879 = vmax.f32 %v2751, 0.0
      %v2880 = vmax.f32 %v2752, 0.0
      %v2881 = vmax.f32 %v2753, 0.0
      %v2882 = vmax.f32 %v2754, 0.0
      %v2883 = vmax.f32 %v2755, 0.0
      %v2884 = vmax.f32 %v2756, 0.0
      %v2885 = vmax.f32 %v2757, 0.0
      %v2886 = vmax.f32 %v2758, 0.0
      %v2887 = vmax.f32 %v2759, 0.0
      %v2888 = vmax.f32 %v2760, 0.0
      %v2889 = vmax.f32 %v2761, 0.0
      %v2890 = vmax.f32 %v2762, 0.0
      %v2891 = vmax.f32 %v2763, 0.0
      %v2892 = vmax.f32 %v2764, 0.0
      %v2893 = vmax.f32 %v2765, 0.0
      %v2894 = vmax.f32 %v2766, 0.0
      %v2895 = vmax.f32 %v2767, 0.0
      %v2896 = vmax.f32 %v2768, 0.0
      %v2897 = vmax.f32 %v2769, 0.0
      %v2898 = vmax.f32 %v2770, 0.0
      %v2899 = vmax.f32 %v2771, 0.0
      %v2900 = vmax.f32 %v2772, 0.0
      %v2901 = vmax.f32 %v2773, 0.0
      %v2902 = vmax.f32 %v2774, 0.0
      %v2903 = vmax.f32 %v2775, 0.0
      %v2904 = vmax.f32 %v2776, 0.0
      %v2905 = vmax.f32 %v2777, 0.0
      %v2906 = vmax.f32 %v2778, 0.0
      %v2907 = vmax.f32 %v2779, 0.0
      %v2908 = vmax.f32 %v2780, 0.0
      %v2909 = vmax.f32 %v2781, 0.0
      %v2910 = vmax.f32 %v2782, 0.0
      %v2911 = vmax.f32 %v2783, 0.0
      %v2912 = vmax.f32 %v2784, 0.0
      %v2913 = vmax.f32 %v2785, 0.0
      %v2914 = vmax.f32 %v2786, 0.0
      %v2915 = vmax.f32 %v2787, 0.0
      %v2916 = vmax.f32 %v2788, 0.0
      %v2917 = vmax.f32 %v2789, 0.0
      %v2918 = vmax.f32 %v2790, 0.0
      %v2919 = vmax.f32 %v2791, 0.0
      %v2920 = vmax.f32 %v2792, 0.0
      %v2921 = vmax.f32 %v2793, 0.0
      %v2922 = vmax.f32 %v2794, 0.0
      %v2923 = vmax.f32 %v2795, 0.0
      %v2924 = vmax.f32 %v2796, 0.0
      %v2925 = vmax.f32 %v2797, 0.0
      %v2926 = vmax.f32 %v2798, 0.0
      %v2927 = vmax.f32 %v2799, 0.0
      %v2928 = vmax.f32 %v2800, 0.0
      %v2929 = vmax.f32 %v2801, 0.0
      %v2930 = vmax.f32 %v2802, 0.0
      %v2931 = vmax.f32 %v2803, 0.0
      %v2932 = vmax.f32 %v2804, 0.0
      %v2933 = vmax.f32 %v2805, 0.0
      %v2934 = vmax.f32 %v2806, 0.0
      %v2935 = vmax.f32 %v2807, 0.0
      %v2936 = vmax.f32 %v2808, 0.0
      %v2937 = vmax.f32 %v2809, 0.0
      %v2938 = vmax.f32 %v2810, 0.0
      %v2939 = vmax.f32 %v2811, 0.0
      %v2940 = vmax.f32 %v2812, 0.0
      %v2941 = vmax.f32 %v2813, 0.0
      %v2942 = vpack.c.bf16 %v2815, %v2814
      %v2943 = vpack.c.bf16 %v2817, %v2816
      %v2944 = vpack.c.bf16 %v2819, %v2818
      %v2945 = vpack.c.bf16 %v2821, %v2820
      %v2946 = vpack.c.bf16 %v2823, %v2822
      %v2947 = vpack.c.bf16 %v2825, %v2824
      %v2948 = vpack.c.bf16 %v2827, %v2826
      %v2949 = vpack.c.bf16 %v2829, %v2828
      %v2950 = vpack.c.bf16 %v2831, %v2830
      %v2951 = vpack.c.bf16 %v2833, %v2832
      %v2952 = vpack.c.bf16 %v2835, %v2834
      %v2953 = vpack.c.bf16 %v2837, %v2836
      %v2954 = vpack.c.bf16 %v2839, %v2838
      %v2955 = vpack.c.bf16 %v2841, %v2840
      %v2956 = vpack.c.bf16 %v2843, %v2842
      %v2957 = vpack.c.bf16 %v2845, %v2844
      %v2958 = vpack.c.bf16 %v2847, %v2846
      %v2959 = vpack.c.bf16 %v2849, %v2848
      %v2960 = vpack.c.bf16 %v2851, %v2850
      %v2961 = vpack.c.bf16 %v2853, %v2852
      %v2962 = vpack.c.bf16 %v2855, %v2854
      %v2963 = vpack.c.bf16 %v2857, %v2856
      %v2964 = vpack.c.bf16 %v2859, %v2858
      %v2965 = vpack.c.bf16 %v2861, %v2860
      %v2966 = vpack.c.bf16 %v2863, %v2862
      %v2967 = vpack.c.bf16 %v2865, %v2864
      %v2968 = vpack.c.bf16 %v2867, %v2866
      %v2969 = vpack.c.bf16 %v2869, %v2868
      %v2970 = vpack.c.bf16 %v2871, %v2870
      %v2971 = vpack.c.bf16 %v2873, %v2872
      %v2972 = vpack.c.bf16 %v2875, %v2874
      %v2973 = vpack.c.bf16 %v2877, %v2876
      %v2974 = vpack.c.bf16 %v2879, %v2878
      %v2975 = vpack.c.bf16 %v2881, %v2880
      %v2976 = vpack.c.bf16 %v2883, %v2882
      %v2977 = vpack.c.bf16 %v2885, %v2884
      %v2978 = vpack.c.bf16 %v2887, %v2886
      %v2979 = vpack.c.bf16 %v2889, %v2888
      %v2980 = vpack.c.bf16 %v2891, %v2890
      %v2981 = vpack.c.bf16 %v2893, %v2892
      %v2982 = vpack.c.bf16 %v2895, %v2894
      %v2983 = vpack.c.bf16 %v2897, %v2896
      %v2984 = vpack.c.bf16 %v2899, %v2898
      %v2985 = vpack.c.bf16 %v2901, %v2900
      %v2986 = vpack.c.bf16 %v2903, %v2902
      %v2987 = vpack.c.bf16 %v2905, %v2904
      %v2988 = vpack.c.bf16 %v2907, %v2906
      %v2989 = vpack.c.bf16 %v2909, %v2908
      %v2990 = vpack.c.bf16 %v2911, %v2910
      %v2991 = vpack.c.bf16 %v2913, %v2912
      %v2992 = vpack.c.bf16 %v2915, %v2914
      %v2993 = vpack.c.bf16 %v2917, %v2916
      %v2994 = vpack.c.bf16 %v2919, %v2918
      %v2995 = vpack.c.bf16 %v2921, %v2920
      %v2996 = vpack.c.bf16 %v2923, %v2922
      %v2997 = vpack.c.bf16 %v2925, %v2924
      %v2998 = vpack.c.bf16 %v2927, %v2926
      %v2999 = vpack.c.bf16 %v2929, %v2928
      %v3000 = vpack.c.bf16 %v2931, %v2930
      %v3001 = vpack.c.bf16 %v2933, %v2932
      %v3002 = vpack.c.bf16 %v2935, %v2934
      %v3003 = vpack.c.bf16 %v2937, %v2936
      %v3004 = vpack.c.bf16 %v2939, %v2938
      %v3005 = vpack.c.bf16 %v2941, %v2940
      %v3070 = vunpack.c.l.b16 %v2942
      %v3071 = vunpack.c.h.b16 %v2942
      %v3072 = vunpack.c.l.b16 %v2943
      %v3073 = vunpack.c.h.b16 %v2943
      %v3074 = vunpack.c.l.b16 %v2944
      %v3075 = vunpack.c.h.b16 %v2944
      %v3076 = vunpack.c.l.b16 %v2945
      %v3077 = vunpack.c.h.b16 %v2945
      %v3078 = vunpack.c.l.b16 %v2946
      %v3079 = vunpack.c.h.b16 %v2946
      %v3080 = vunpack.c.l.b16 %v2947
      %v3081 = vunpack.c.h.b16 %v2947
      %v3082 = vunpack.c.l.b16 %v2948
      %v3083 = vunpack.c.h.b16 %v2948
      %v3084 = vunpack.c.l.b16 %v2949
      %v3085 = vunpack.c.h.b16 %v2949
      %v3086 = vunpack.c.l.b16 %v2950
      %v3087 = vunpack.c.h.b16 %v2950
      %v3088 = vunpack.c.l.b16 %v2951
      %v3089 = vunpack.c.h.b16 %v2951
      %v3090 = vunpack.c.l.b16 %v2952
      %v3091 = vunpack.c.h.b16 %v2952
      %v3092 = vunpack.c.l.b16 %v2953
      %v3093 = vunpack.c.h.b16 %v2953
      %v3094 = vunpack.c.l.b16 %v2954
      %v3095 = vunpack.c.h.b16 %v2954
      %v3096 = vunpack.c.l.b16 %v2955
      %v3097 = vunpack.c.h.b16 %v2955
      %v3098 = vunpack.c.l.b16 %v2956
      %v3099 = vunpack.c.h.b16 %v2956
      %v3100 = vunpack.c.l.b16 %v2957
      %v3101 = vunpack.c.h.b16 %v2957
      %v3102 = vunpack.c.l.b16 %v2958
      %v3103 = vunpack.c.h.b16 %v2958
      %v3104 = vunpack.c.l.b16 %v2959
      %v3105 = vunpack.c.h.b16 %v2959
      %v3106 = vunpack.c.l.b16 %v2960
      %v3107 = vunpack.c.h.b16 %v2960
      %v3108 = vunpack.c.l.b16 %v2961
      %v3109 = vunpack.c.h.b16 %v2961
      %v3110 = vunpack.c.l.b16 %v2962
      %v3111 = vunpack.c.h.b16 %v2962
      %v3112 = vunpack.c.l.b16 %v2963
      %v3113 = vunpack.c.h.b16 %v2963
      %v3114 = vunpack.c.l.b16 %v2964
      %v3115 = vunpack.c.h.b16 %v2964
      %v3116 = vunpack.c.l.b16 %v2965
      %v3117 = vunpack.c.h.b16 %v2965
      %v3118 = vunpack.c.l.b16 %v2966
      %v3119 = vunpack.c.h.b16 %v2966
      %v3120 = vunpack.c.l.b16 %v2967
      %v3121 = vunpack.c.h.b16 %v2967
      %v3122 = vunpack.c.l.b16 %v2968
      %v3123 = vunpack.c.h.b16 %v2968
      %v3124 = vunpack.c.l.b16 %v2969
      %v3125 = vunpack.c.h.b16 %v2969
      %v3126 = vunpack.c.l.b16 %v2970
      %v3127 = vunpack.c.h.b16 %v2970
      %v3128 = vunpack.c.l.b16 %v2971
      %v3129 = vunpack.c.h.b16 %v2971
      %v3130 = vunpack.c.l.b16 %v2972
      %v3131 = vunpack.c.h.b16 %v2972
      %v3132 = vunpack.c.l.b16 %v2973
      %v3133 = vunpack.c.h.b16 %v2973
      %v3134 = vunpack.c.l.b16 %v2974
      %v3135 = vunpack.c.h.b16 %v2974
      %v3136 = vunpack.c.l.b16 %v2975
      %v3137 = vunpack.c.h.b16 %v2975
      %v3138 = vunpack.c.l.b16 %v2976
      %v3139 = vunpack.c.h.b16 %v2976
      %v3140 = vunpack.c.l.b16 %v2977
      %v3141 = vunpack.c.h.b16 %v2977
      %v3142 = vunpack.c.l.b16 %v2978
      %v3143 = vunpack.c.h.b16 %v2978
      %v3144 = vunpack.c.l.b16 %v2979
      %v3145 = vunpack.c.h.b16 %v2979
      %v3146 = vunpack.c.l.b16 %v2980
      %v3147 = vunpack.c.h.b16 %v2980
      %v3148 = vunpack.c.l.b16 %v2981
      %v3149 = vunpack.c.h.b16 %v2981
      %v3150 = vunpack.c.l.b16 %v2982
      %v3151 = vunpack.c.h.b16 %v2982
      %v3152 = vunpack.c.l.b16 %v2983
      %v3153 = vunpack.c.h.b16 %v2983
      %v3154 = vunpack.c.l.b16 %v2984
      %v3155 = vunpack.c.h.b16 %v2984
      %v3156 = vunpack.c.l.b16 %v2985
      %v3157 = vunpack.c.h.b16 %v2985
      %v3158 = vunpack.c.l.b16 %v2986
      %v3159 = vunpack.c.h.b16 %v2986
      %v3160 = vunpack.c.l.b16 %v2987
      %v3161 = vunpack.c.h.b16 %v2987
      %v3162 = vunpack.c.l.b16 %v2988
      %v3163 = vunpack.c.h.b16 %v2988
      %v3164 = vunpack.c.l.b16 %v2989
      %v3165 = vunpack.c.h.b16 %v2989
      %v3166 = vunpack.c.l.b16 %v2990
      %v3167 = vunpack.c.h.b16 %v2990
      %v3168 = vunpack.c.l.b16 %v2991
      %v3169 = vunpack.c.h.b16 %v2991
      %v3170 = vunpack.c.l.b16 %v2992
      %v3171 = vunpack.c.h.b16 %v2992
      %v3172 = vunpack.c.l.b16 %v2993
      %v3173 = vunpack.c.h.b16 %v2993
      %v3174 = vunpack.c.l.b16 %v2994
      %v3175 = vunpack.c.h.b16 %v2994
      %v3176 = vunpack.c.l.b16 %v2995
      %v3177 = vunpack.c.h.b16 %v2995
      %v3178 = vunpack.c.l.b16 %v2996
      %v3179 = vunpack.c.h.b16 %v2996
      %v3180 = vunpack.c.l.b16 %v2997
      %v3181 = vunpack.c.h.b16 %v2997
      %v3182 = vunpack.c.l.b16 %v2998
      %v3183 = vunpack.c.h.b16 %v2998
      %v3184 = vunpack.c.l.b16 %v2999
      %v3185 = vunpack.c.h.b16 %v2999
      %v3186 = vunpack.c.l.b16 %v3000
      %v3187 = vunpack.c.h.b16 %v3000
      %v3188 = vunpack.c.l.b16 %v3001
      %v3189 = vunpack.c.h.b16 %v3001
      %v3190 = vunpack.c.l.b16 %v3002
      %v3191 = vunpack.c.h.b16 %v3002
      %v3192 = vunpack.c.l.b16 %v3003
      %v3193 = vunpack.c.h.b16 %v3003
      %v3194 = vunpack.c.l.b16 %v3004
      %v3195 = vunpack.c.h.b16 %v3004
      %v3196 = vunpack.c.l.b16 %v3005
      %v3197 = vunpack.c.h.b16 %v3005
      %v3198 = vpack.c.b16 %v3070, %v3070
      %v3199 = vpack.c.b16 %v3071, %v3071
      %v3200 = vpack.c.b16 %v3072, %v3072
      %v3201 = vpack.c.b16 %v3073, %v3073
      %v3202 = vpack.c.b16 %v3074, %v3074
      %v3203 = vpack.c.b16 %v3075, %v3075
      %v3204 = vpack.c.b16 %v3076, %v3076
      %v3205 = vpack.c.b16 %v3077, %v3077
      %v3206 = vpack.c.b16 %v3078, %v3078
      %v3207 = vpack.c.b16 %v3079, %v3079
      %v3208 = vpack.c.b16 %v3080, %v3080
      %v3209 = vpack.c.b16 %v3081, %v3081
      %v3210 = vpack.c.b16 %v3082, %v3082
      %v3211 = vpack.c.b16 %v3083, %v3083
      %v3212 = vpack.c.b16 %v3084, %v3084
      %v3213 = vpack.c.b16 %v3085, %v3085
      %v3214 = vpack.c.b16 %v3086, %v3086
      %v3215 = vpack.c.b16 %v3087, %v3087
      %v3216 = vpack.c.b16 %v3088, %v3088
      %v3217 = vpack.c.b16 %v3089, %v3089
      %v3218 = vpack.c.b16 %v3090, %v3090
      %v3219 = vpack.c.b16 %v3091, %v3091
      %v3220 = vpack.c.b16 %v3092, %v3092
      %v3221 = vpack.c.b16 %v3093, %v3093
      %v3222 = vpack.c.b16 %v3094, %v3094
      %v3223 = vpack.c.b16 %v3095, %v3095
      %v3224 = vpack.c.b16 %v3096, %v3096
      %v3225 = vpack.c.b16 %v3097, %v3097
      %v3226 = vpack.c.b16 %v3098, %v3098
      %v3227 = vpack.c.b16 %v3099, %v3099
      %v3228 = vpack.c.b16 %v3100, %v3100
      %v3229 = vpack.c.b16 %v3101, %v3101
      %v3230 = vpack.c.b16 %v3102, %v3102
      %v3231 = vpack.c.b16 %v3103, %v3103
      %v3232 = vpack.c.b16 %v3104, %v3104
      %v3233 = vpack.c.b16 %v3105, %v3105
      %v3234 = vpack.c.b16 %v3106, %v3106
      %v3235 = vpack.c.b16 %v3107, %v3107
      %v3236 = vpack.c.b16 %v3108, %v3108
      %v3237 = vpack.c.b16 %v3109, %v3109
      %v3238 = vpack.c.b16 %v3110, %v3110
      %v3239 = vpack.c.b16 %v3111, %v3111
      %v3240 = vpack.c.b16 %v3112, %v3112
      %v3241 = vpack.c.b16 %v3113, %v3113
      %v3242 = vpack.c.b16 %v3114, %v3114
      %v3243 = vpack.c.b16 %v3115, %v3115
      %v3244 = vpack.c.b16 %v3116, %v3116
      %v3245 = vpack.c.b16 %v3117, %v3117
      %v3246 = vpack.c.b16 %v3118, %v3118
      %v3247 = vpack.c.b16 %v3119, %v3119
      %v3248 = vpack.c.b16 %v3120, %v3120
      %v3249 = vpack.c.b16 %v3121, %v3121
      %v3250 = vpack.c.b16 %v3122, %v3122
      %v3251 = vpack.c.b16 %v3123, %v3123
      %v3252 = vpack.c.b16 %v3124, %v3124
      %v3253 = vpack.c.b16 %v3125, %v3125
      %v3254 = vpack.c.b16 %v3126, %v3126
      %v3255 = vpack.c.b16 %v3127, %v3127
      %v3256 = vpack.c.b16 %v3128, %v3128
      %v3257 = vpack.c.b16 %v3129, %v3129
      %v3258 = vpack.c.b16 %v3130, %v3130
      %v3259 = vpack.c.b16 %v3131, %v3131
      %v3260 = vpack.c.b16 %v3132, %v3132
      %v3261 = vpack.c.b16 %v3133, %v3133
      %v3262 = vpack.c.b16 %v3134, %v3134
      %v3263 = vpack.c.b16 %v3135, %v3135
      %v3264 = vpack.c.b16 %v3136, %v3136
      %v3265 = vpack.c.b16 %v3137, %v3137
      %v3266 = vpack.c.b16 %v3138, %v3138
      %v3267 = vpack.c.b16 %v3139, %v3139
      %v3268 = vpack.c.b16 %v3140, %v3140
      %v3269 = vpack.c.b16 %v3141, %v3141
      %v3270 = vpack.c.b16 %v3142, %v3142
      %v3271 = vpack.c.b16 %v3143, %v3143
      %v3272 = vpack.c.b16 %v3144, %v3144
      %v3273 = vpack.c.b16 %v3145, %v3145
      %v3274 = vpack.c.b16 %v3146, %v3146
      %v3275 = vpack.c.b16 %v3147, %v3147
      %v3276 = vpack.c.b16 %v3148, %v3148
      %v3277 = vpack.c.b16 %v3149, %v3149
      %v3278 = vpack.c.b16 %v3150, %v3150
      %v3279 = vpack.c.b16 %v3151, %v3151
      %v3280 = vpack.c.b16 %v3152, %v3152
      %v3281 = vpack.c.b16 %v3153, %v3153
      %v3282 = vpack.c.b16 %v3154, %v3154
      %v3283 = vpack.c.b16 %v3155, %v3155
      %v3284 = vpack.c.b16 %v3156, %v3156
      %v3285 = vpack.c.b16 %v3157, %v3157
      %v3286 = vpack.c.b16 %v3158, %v3158
      %v3287 = vpack.c.b16 %v3159, %v3159
      %v3288 = vpack.c.b16 %v3160, %v3160
      %v3289 = vpack.c.b16 %v3161, %v3161
      %v3290 = vpack.c.b16 %v3162, %v3162
      %v3291 = vpack.c.b16 %v3163, %v3163
      %v3292 = vpack.c.b16 %v3164, %v3164
      %v3293 = vpack.c.b16 %v3165, %v3165
      %v3294 = vpack.c.b16 %v3166, %v3166
      %v3295 = vpack.c.b16 %v3167, %v3167
      %v3296 = vpack.c.b16 %v3168, %v3168
      %v3297 = vpack.c.b16 %v3169, %v3169
      %v3298 = vpack.c.b16 %v3170, %v3170
      %v3299 = vpack.c.b16 %v3171, %v3171
      %v3300 = vpack.c.b16 %v3172, %v3172
      %v3301 = vpack.c.b16 %v3173, %v3173
      %v3302 = vpack.c.b16 %v3174, %v3174
      %v3303 = vpack.c.b16 %v3175, %v3175
      %v3304 = vpack.c.b16 %v3176, %v3176
      %v3305 = vpack.c.b16 %v3177, %v3177
      %v3306 = vpack.c.b16 %v3178, %v3178
      %v3307 = vpack.c.b16 %v3179, %v3179
      %v3308 = vpack.c.b16 %v3180, %v3180
      %v3309 = vpack.c.b16 %v3181, %v3181
      %v3310 = vpack.c.b16 %v3182, %v3182
      %v3311 = vpack.c.b16 %v3183, %v3183
      %v3312 = vpack.c.b16 %v3184, %v3184
      %v3313 = vpack.c.b16 %v3185, %v3185
      %v3314 = vpack.c.b16 %v3186, %v3186
      %v3315 = vpack.c.b16 %v3187, %v3187
      %v3316 = vpack.c.b16 %v3188, %v3188
      %v3317 = vpack.c.b16 %v3189, %v3189
      %v3318 = vpack.c.b16 %v3190, %v3190
      %v3319 = vpack.c.b16 %v3191, %v3191
      %v3320 = vpack.c.b16 %v3192, %v3192
      %v3321 = vpack.c.b16 %v3193, %v3193
      %v3322 = vpack.c.b16 %v3194, %v3194
      %v3323 = vpack.c.b16 %v3195, %v3195
      %v3324 = vpack.c.b16 %v3196, %v3196
      %v3325 = vpack.c.b16 %v3197, %v3197
      %3454 = vst.msk [vmem:[%s288] sm:$0xf] %vm2415, %v3198
      %3455 = vst.msk [vmem:[%s288 + $0x4] sm:$0xf] %vm2415, %v3199
      %3456 = vst.msk [vmem:[%s288 + $0x8] sm:$0xf] %vm2415, %v3200
      %3457 = vst.msk [vmem:[%s288 + $0xc] sm:$0xf] %vm2415, %v3201
      %3458 = vst.msk [vmem:[%s288 + $0x10] sm:$0xf] %vm2415, %v3202
      %3459 = vst.msk [vmem:[%s288 + $0x14] sm:$0xf] %vm2415, %v3203
      %3460 = vst.msk [vmem:[%s288 + $0x18] sm:$0xf] %vm2415, %v3204
      %3461 = vst.msk [vmem:[%s288 + $0x1c] sm:$0xf] %vm2415, %v3205
      %3462 = vst.msk [vmem:[%s288 + $0x20] sm:$0xf] %vm2415, %v3206
      %3463 = vst.msk [vmem:[%s288 + $0x24] sm:$0xf] %vm2415, %v3207
      %3464 = vst.msk [vmem:[%s288 + $0x28] sm:$0xf] %vm2415, %v3208
      %3465 = vst.msk [vmem:[%s288 + $0x2c] sm:$0xf] %vm2415, %v3209
      %3466 = vst.msk [vmem:[%s288 + $0x30] sm:$0xf] %vm2415, %v3210
      %3467 = vst.msk [vmem:[%s288 + $0x34] sm:$0xf] %vm2415, %v3211
      %3468 = vst.msk [vmem:[%s288 + $0x38] sm:$0xf] %vm2415, %v3212
      %3469 = vst.msk [vmem:[%s288 + $0x3c] sm:$0xf] %vm2415, %v3213
      %3470 = vst.msk [vmem:[%s288 + $0x40] sm:$0xf] %vm2415, %v3214
      %3471 = vst.msk [vmem:[%s288 + $0x44] sm:$0xf] %vm2415, %v3215
      %3472 = vst.msk [vmem:[%s288 + $0x48] sm:$0xf] %vm2415, %v3216
      %3473 = vst.msk [vmem:[%s288 + $0x4c] sm:$0xf] %vm2415, %v3217
      %3474 = vst.msk [vmem:[%s288 + $0x50] sm:$0xf] %vm2415, %v3218
      %3475 = vst.msk [vmem:[%s288 + $0x54] sm:$0xf] %vm2415, %v3219
      %3476 = vst.msk [vmem:[%s288 + $0x58] sm:$0xf] %vm2415, %v3220
      %3477 = vst.msk [vmem:[%s288 + $0x5c] sm:$0xf] %vm2415, %v3221
      %3478 = vst.msk [vmem:[%s288 + $0x60] sm:$0xf] %vm2415, %v3222
      %3479 = vst.msk [vmem:[%s288 + $0x64] sm:$0xf] %vm2415, %v3223
      %3480 = vst.msk [vmem:[%s288 + $0x68] sm:$0xf] %vm2415, %v3224
      %3481 = vst.msk [vmem:[%s288 + $0x6c] sm:$0xf] %vm2415, %v3225
      %3482 = vst.msk [vmem:[%s288 + $0x70] sm:$0xf] %vm2415, %v3226
      %3483 = vst.msk [vmem:[%s288 + $0x74] sm:$0xf] %vm2415, %v3227
      %3484 = vst.msk [vmem:[%s288 + $0x78] sm:$0xf] %vm2415, %v3228
      %3485 = vst.msk [vmem:[%s288 + $0x7c] sm:$0xf] %vm2415, %v3229
      %3486 = vst.msk [vmem:[%s288 + $0x80] sm:$0xf] %vm2415, %v3230
      %3487 = vst.msk [vmem:[%s288 + $0x84] sm:$0xf] %vm2415, %v3231
      %3488 = vst.msk [vmem:[%s288 + $0x88] sm:$0xf] %vm2415, %v3232
      %3489 = vst.msk [vmem:[%s288 + $0x8c] sm:$0xf] %vm2415, %v3233
      %3490 = vst.msk [vmem:[%s288 + $0x90] sm:$0xf] %vm2415, %v3234
      %3491 = vst.msk [vmem:[%s288 + $0x94] sm:$0xf] %vm2415, %v3235
      %3492 = vst.msk [vmem:[%s288 + $0x98] sm:$0xf] %vm2415, %v3236
      %3493 = vst.msk [vmem:[%s288 + $0x9c] sm:$0xf] %vm2415, %v3237
      %3494 = vst.msk [vmem:[%s288 + $0xa0] sm:$0xf] %vm2415, %v3238
      %3495 = vst.msk [vmem:[%s288 + $0xa4] sm:$0xf] %vm2415, %v3239
      %3496 = vst.msk [vmem:[%s288 + $0xa8] sm:$0xf] %vm2415, %v3240
      %3497 = vst.msk [vmem:[%s288 + $0xac] sm:$0xf] %vm2415, %v3241
      %3498 = vst.msk [vmem:[%s288 + $0xb0] sm:$0xf] %vm2415, %v3242
      %3499 = vst.msk [vmem:[%s288 + $0xb4] sm:$0xf] %vm2415, %v3243
      %3500 = vst.msk [vmem:[%s288 + $0xb8] sm:$0xf] %vm2415, %v3244
      %3501 = vst.msk [vmem:[%s288 + $0xbc] sm:$0xf] %vm2415, %v3245
      %3502 = vst.msk [vmem:[%s288 + $0xc0] sm:$0xf] %vm2415, %v3246
      %3503 = vst.msk [vmem:[%s288 + $0xc4] sm:$0xf] %vm2415, %v3247
      %3504 = vst.msk [vmem:[%s288 + $0xc8] sm:$0xf] %vm2415, %v3248
      %3505 = vst.msk [vmem:[%s288 + $0xcc] sm:$0xf] %vm2415, %v3249
      %3506 = vst.msk [vmem:[%s288 + $0xd0] sm:$0xf] %vm2415, %v3250
      %3507 = vst.msk [vmem:[%s288 + $0xd4] sm:$0xf] %vm2415, %v3251
      %3508 = vst.msk [vmem:[%s288 + $0xd8] sm:$0xf] %vm2415, %v3252
      %3509 = vst.msk [vmem:[%s288 + $0xdc] sm:$0xf] %vm2415, %v3253
      %3510 = vst.msk [vmem:[%s288 + $0xe0] sm:$0xf] %vm2415, %v3254
      %3511 = vst.msk [vmem:[%s288 + $0xe4] sm:$0xf] %vm2415, %v3255
      %3512 = vst.msk [vmem:[%s288 + $0xe8] sm:$0xf] %vm2415, %v3256
      %3513 = vst.msk [vmem:[%s288 + $0xec] sm:$0xf] %vm2415, %v3257
      %3514 = vst.msk [vmem:[%s288 + $0xf0] sm:$0xf] %vm2415, %v3258
      %3515 = vst.msk [vmem:[%s288 + $0xf4] sm:$0xf] %vm2415, %v3259
      %3516 = vst.msk [vmem:[%s288 + $0xf8] sm:$0xf] %vm2415, %v3260
      %3517 = vst.msk [vmem:[%s288 + $0xfc] sm:$0xf] %vm2415, %v3261
      %3518 = vst.msk [vmem:[%s288 + $0x100] sm:$0xf] %vm2415, %v3262
      %3519 = vst.msk [vmem:[%s288 + $0x104] sm:$0xf] %vm2415, %v3263
      %3520 = vst.msk [vmem:[%s288 + $0x108] sm:$0xf] %vm2415, %v3264
      %3521 = vst.msk [vmem:[%s288 + $0x10c] sm:$0xf] %vm2415, %v3265
      %3522 = vst.msk [vmem:[%s288 + $0x110] sm:$0xf] %vm2415, %v3266
      %3523 = vst.msk [vmem:[%s288 + $0x114] sm:$0xf] %vm2415, %v3267
      %3524 = vst.msk [vmem:[%s288 + $0x118] sm:$0xf] %vm2415, %v3268
      %3525 = vst.msk [vmem:[%s288 + $0x11c] sm:$0xf] %vm2415, %v3269
      %3526 = vst.msk [vmem:[%s288 + $0x120] sm:$0xf] %vm2415, %v3270
      %3527 = vst.msk [vmem:[%s288 + $0x124] sm:$0xf] %vm2415, %v3271
      %3528 = vst.msk [vmem:[%s288 + $0x128] sm:$0xf] %vm2415, %v3272
      %3529 = vst.msk [vmem:[%s288 + $0x12c] sm:$0xf] %vm2415, %v3273
      %3530 = vst.msk [vmem:[%s288 + $0x130] sm:$0xf] %vm2415, %v3274
      %3531 = vst.msk [vmem:[%s288 + $0x134] sm:$0xf] %vm2415, %v3275
      %3532 = vst.msk [vmem:[%s288 + $0x138] sm:$0xf] %vm2415, %v3276
      %3533 = vst.msk [vmem:[%s288 + $0x13c] sm:$0xf] %vm2415, %v3277
      %3534 = vst.msk [vmem:[%s288 + $0x140] sm:$0xf] %vm2415, %v3278
      %3535 = vst.msk [vmem:[%s288 + $0x144] sm:$0xf] %vm2415, %v3279
      %3536 = vst.msk [vmem:[%s288 + $0x148] sm:$0xf] %vm2415, %v3280
      %3537 = vst.msk [vmem:[%s288 + $0x14c] sm:$0xf] %vm2415, %v3281
      %3538 = vst.msk [vmem:[%s288 + $0x150] sm:$0xf] %vm2415, %v3282
      %3539 = vst.msk [vmem:[%s288 + $0x154] sm:$0xf] %vm2415, %v3283
      %3540 = vst.msk [vmem:[%s288 + $0x158] sm:$0xf] %vm2415, %v3284
      %3541 = vst.msk [vmem:[%s288 + $0x15c] sm:$0xf] %vm2415, %v3285
      %3542 = vst.msk [vmem:[%s288 + $0x160] sm:$0xf] %vm2415, %v3286
      %3543 = vst.msk [vmem:[%s288 + $0x164] sm:$0xf] %vm2415, %v3287
      %3544 = vst.msk [vmem:[%s288 + $0x168] sm:$0xf] %vm2415, %v3288
      %3545 = vst.msk [vmem:[%s288 + $0x16c] sm:$0xf] %vm2415, %v3289
      %3546 = vst.msk [vmem:[%s288 + $0x170] sm:$0xf] %vm2415, %v3290
      %3547 = vst.msk [vmem:[%s288 + $0x174] sm:$0xf] %vm2415, %v3291
      %3548 = vst.msk [vmem:[%s288 + $0x178] sm:$0xf] %vm2415, %v3292
      %3549 = vst.msk [vmem:[%s288 + $0x17c] sm:$0xf] %vm2415, %v3293
      %3550 = vst.msk [vmem:[%s288 + $0x180] sm:$0xf] %vm2415, %v3294
      %3551 = vst.msk [vmem:[%s288 + $0x184] sm:$0xf] %vm2415, %v3295
      %3552 = vst.msk [vmem:[%s288 + $0x188] sm:$0xf] %vm2415, %v3296
      %3553 = vst.msk [vmem:[%s288 + $0x18c] sm:$0xf] %vm2415, %v3297
      %3554 = vst.msk [vmem:[%s288 + $0x190] sm:$0xf] %vm2415, %v3298
      %3555 = vst.msk [vmem:[%s288 + $0x194] sm:$0xf] %vm2415, %v3299
      %3556 = vst.msk [vmem:[%s288 + $0x198] sm:$0xf] %vm2415, %v3300
      %3557 = vst.msk [vmem:[%s288 + $0x19c] sm:$0xf] %vm2415, %v3301
      %3558 = vst.msk [vmem:[%s288 + $0x1a0] sm:$0xf] %vm2415, %v3302
      %3559 = vst.msk [vmem:[%s288 + $0x1a4] sm:$0xf] %vm2415, %v3303
      %3560 = vst.msk [vmem:[%s288 + $0x1a8] sm:$0xf] %vm2415, %v3304
      %3561 = vst.msk [vmem:[%s288 + $0x1ac] sm:$0xf] %vm2415, %v3305
      %3562 = vst.msk [vmem:[%s288 + $0x1b0] sm:$0xf] %vm2415, %v3306
      %3563 = vst.msk [vmem:[%s288 + $0x1b4] sm:$0xf] %vm2415, %v3307
      %3564 = vst.msk [vmem:[%s288 + $0x1b8] sm:$0xf] %vm2415, %v3308
      %3565 = vst.msk [vmem:[%s288 + $0x1bc] sm:$0xf] %vm2415, %v3309
      %3566 = vst.msk [vmem:[%s288 + $0x1c0] sm:$0xf] %vm2415, %v3310
      %3567 = vst.msk [vmem:[%s288 + $0x1c4] sm:$0xf] %vm2415, %v3311
      %3568 = vst.msk [vmem:[%s288 + $0x1c8] sm:$0xf] %vm2415, %v3312
      %3569 = vst.msk [vmem:[%s288 + $0x1cc] sm:$0xf] %vm2415, %v3313
      %3570 = vst.msk [vmem:[%s288 + $0x1d0] sm:$0xf] %vm2415, %v3314
      %3571 = vst.msk [vmem:[%s288 + $0x1d4] sm:$0xf] %vm2415, %v3315
      %3572 = vst.msk [vmem:[%s288 + $0x1d8] sm:$0xf] %vm2415, %v3316
      %3573 = vst.msk [vmem:[%s288 + $0x1dc] sm:$0xf] %vm2415, %v3317
      %3574 = vst.msk [vmem:[%s288 + $0x1e0] sm:$0xf] %vm2415, %v3318
      %3575 = vst.msk [vmem:[%s288 + $0x1e4] sm:$0xf] %vm2415, %v3319
      %3576 = vst.msk [vmem:[%s288 + $0x1e8] sm:$0xf] %vm2415, %v3320
      %3577 = vst.msk [vmem:[%s288 + $0x1ec] sm:$0xf] %vm2415, %v3321
      %3578 = vst.msk [vmem:[%s288 + $0x1f0] sm:$0xf] %vm2415, %v3322
      %3579 = vst.msk [vmem:[%s288 + $0x1f4] sm:$0xf] %vm2415, %v3323
      %3580 = vst.msk [vmem:[%s288 + $0x1f8] sm:$0xf] %vm2415, %v3324
      %3581 = vst.msk [vmem:[%s288 + $0x1fc] sm:$0xf] %vm2415, %v3325
      %s3582 = smul.u32 128, %s19
      %p3583 = scmp.lt.s32.totalorder %s3582, 255
      %s3584 = scalar_select %p3583, %s3582, 255
      %s3585 = smul.addr %s3584, 4
      %s3586 = scalar_lea.vmem %s6, %s3585
      %s3587 = smul.u32 128, %s19
      %p3588 = scmp.lt.s32.totalorder %s3587, 255
      %s3589 = scalar_select %p3588, %s3587, 255
      %s3590 = smul.addr %s3589, 4
      %s3591 = scalar_lea.vmem %s7, %s3590
      // Predicated region
      $region45: #{tpu_custom_call.1} parent=43 // pred_check
        %p3592 = pneg %p168
      $region46: #{tpu_custom_call.1} parent=43 // pred_check_branch
        %3594 = sbr.rel (%p3592) target = $region48
      $region47: #{tpu_custom_call.1} parent=43 // pred_region
        %s3595 = smul.u32 128, %s19
      $region48: #{tpu_custom_call.1} parent=43 // pred_fallthru
        _
      // Predicated region
      $region49: #{tpu_custom_call.1} parent=43 // pred_check
        %p3596 = pneg %p194
      $region50: #{tpu_custom_call.1} parent=43 // pred_check_branch
        %3598 = sbr.rel (%p3596) target = $region52
      $region51: #{tpu_custom_call.1} parent=43 // pred_region
        %s3599 = smul.u32 128, %s19
      $region52: #{tpu_custom_call.1} parent=43 // pred_fallthru
        _
    $region44: #{tpu_custom_call.1} parent=5 // pred_fallthru
      _
    %p3600 = scmp.le.s32.totalorder 2, %s14
    // Predicated region
    $region53: #{tpu_custom_call.1} parent=5 // pred_check
      %p3601 = pneg %p3600
    $region54: #{tpu_custom_call.1} parent=5 // pred_check_branch
      %3603 = sbr.rel (%p3601) target = $region56
    $region55: #{tpu_custom_call.1} parent=5 // pred_region
      %s3604 = ssub.s32 %s14, 2
      // Predicated region
      $region57: #{tpu_custom_call.1} parent=55 // pred_check
        %p3605 = pneg %p174
      $region58: #{tpu_custom_call.1} parent=55 // pred_check_branch
        %3607 = sbr.rel (%p3605) target = $region60
      $region59: #{tpu_custom_call.1} parent=55 // pred_region
        %s3608 = smul.u32 128, %s20
        %p3609 = scmp.lt.s32.totalorder %s3608, 255
        %s3610 = scalar_select %p3609, %s3608, 255
        %s3611 = smul.addr %s3610, 4
        %s3612 = scalar_lea.vmem %s6, %s3611
      $region60: #{tpu_custom_call.1} parent=55 // pred_fallthru
        _
      // Predicated region
      $region61: #{tpu_custom_call.1} parent=55 // pred_check
        %p3613 = pneg %p200
      $region62: #{tpu_custom_call.1} parent=55 // pred_check_branch
        %3615 = sbr.rel (%p3613) target = $region64
      $region63: #{tpu_custom_call.1} parent=55 // pred_region
        %s3616 = smul.u32 128, %s20
        %p3617 = scmp.lt.s32.totalorder %s3616, 255
        %s3618 = scalar_select %p3617, %s3616, 255
        %s3619 = smul.addr %s3618, 4
        %s3620 = scalar_lea.vmem %s7, %s3619
      $region64: #{tpu_custom_call.1} parent=55 // pred_fallthru
        _
    $region56: #{tpu_custom_call.1} parent=5 // pred_fallthru
      _
  $region6: #{tpu_custom_call.1} parent=0 // loop_footer
    %s18 = sadd.s32 1, %s14
  $region7: #{tpu_custom_call.1} parent=0 // loop_footer_branch
    %13 = sbr.rel target = $region3
  $region8: #{tpu_custom_call.1} parent=0 // loop_exit
    _

</llo_original>
